<compile_context>
chip_gen: v7x
topology: tpu7x:2x2x1
jax: 0.10.0
libtpu: 0.0.40
codegen_flags: <defaults>
</compile_context>

<pallas_src>
import functools
import math

import jax
import jax.numpy as jnp
from jax.experimental import pallas as pl
from jax.experimental.pallas import tpu as pltpu


def _round_up(x, m):
    return (x + m - 1) // m * m


# ----------------------------------------------------------------------------
# Fused encoder layer kernel: one batch element per grid step.
#   ln_ref rows: 0 = ln1_gamma, 1 = ln1_beta, 2 = b2, 3 = ln2_gamma, 4 = ln2_beta
# ----------------------------------------------------------------------------
def _encoder_layer_kernel(x_ref, m_ref, wq_ref, wk_ref, wv_ref, wfc_ref,
                          w1_ref, b1_ref, w2_ref, ln_ref,
                          out_ref, attn_ref, ctx_scr,
                          *, n_heads, d_k, d_v):
    scale = jnp.float32(1.0 / math.sqrt(d_k))

    xf = x_ref[0]                                    # (S, d_model) f32 residual
    x16 = xf.astype(jnp.bfloat16)

    # Projections: bf16 operands, f32 accumulation on the MXU.
    q = jnp.dot(x16, wq_ref[...], preferred_element_type=jnp.float32)
    k = jnp.dot(x16, wk_ref[...], preferred_element_type=jnp.float32)
    v = jnp.dot(x16, wv_ref[...], preferred_element_type=jnp.float32)
    mask = m_ref[0]                                  # (S, S) f32, 1.0 = masked key

    for h in range(n_heads):                         # static unroll over heads
        qh = q[:, h * d_k:(h + 1) * d_k]
        kh = k[:, h * d_k:(h + 1) * d_k]
        vh = v[:, h * d_v:(h + 1) * d_v]
        s = jax.lax.dot_general(
            qh, kh, (((1,), (1,)), ((), ())),
            preferred_element_type=jnp.float32) * scale
        s = jnp.where(mask > 0.0, jnp.float32(-1e9), s)
        s = s - jnp.max(s, axis=-1, keepdims=True)   # numerically-safe softmax
        e = jnp.exp(s)                               # EUP
        a = e / jnp.sum(e, axis=-1, keepdims=True)
        attn_ref[0, h] = a.astype(attn_ref.dtype)
        ctx_scr[:, h * d_v:(h + 1) * d_v] = jnp.dot(
            a, vh, preferred_element_type=jnp.float32)

    ctx = jnp.dot(ctx_scr[...].astype(jnp.bfloat16), wfc_ref[...],
                  preferred_element_type=jnp.float32)            # (S, d_model)

    # ---- residual + LayerNorm 1 (f32) ----
    z = xf + ctx
    mean = jnp.mean(z, axis=-1, keepdims=True)
    zc = z - mean
    var = jnp.mean(zc * zc, axis=-1, keepdims=True)
    inv = jax.lax.rsqrt(var + 1e-5)                  # EUP
    out1 = zc * inv * ln_ref[0:1, :] + ln_ref[1:2, :]

    # ---- FFN: relu(out1 @ W1 + b1) @ W2 + b2 ----
    hmid = jnp.dot(out1.astype(jnp.bfloat16), w1_ref[...],
                   preferred_element_type=jnp.float32) + b1_ref[...]
    hmid = jnp.maximum(hmid, 0.0)                    # ReLU in f32
    y = jnp.dot(hmid.astype(jnp.bfloat16), w2_ref[...],
                preferred_element_type=jnp.float32) + ln_ref[2:3, :]

    # ---- residual + LayerNorm 2 (f32) ----
    z2 = out1 + y
    mean2 = jnp.mean(z2, axis=-1, keepdims=True)
    zc2 = z2 - mean2
    var2 = jnp.mean(zc2 * zc2, axis=-1, keepdims=True)
    inv2 = jax.lax.rsqrt(var2 + 1e-5)
    out_ref[0] = (zc2 * inv2 * ln_ref[3:4, :] + ln_ref[4:5, :]).astype(out_ref.dtype)


def encoder_layer(x, pad_mask, p, *, n_heads=8, d_k=64, d_v=64):
    """x: (B, S, d_model); pad_mask: (B, S, S) bool (True = masked key).

    Returns (out, attn): out (B, S, d_model) f32, attn (B, n_heads, S, S) f32.
    """
    B, S, d_model = x.shape
    d_qk = n_heads * d_k
    d_hv = n_heads * d_v
    d_ff = p["w1"].shape[1]

    x_f = x.astype(jnp.float32)
    mask_f = pad_mask.astype(jnp.float32)
    wq_b = p["wq"].astype(jnp.bfloat16)
    wk_b = p["wk"].astype(jnp.bfloat16)
    wv_b = p["wv"].astype(jnp.bfloat16)
    wfc_b = p["wfc"].astype(jnp.bfloat16)
    w1_b = p["w1"].astype(jnp.bfloat16)
    w2_b = p["w2"].astype(jnp.bfloat16)
    b1_2 = p["b1"].reshape(1, d_ff).astype(jnp.float32)
    ln_pack = jnp.stack([p["ln1_g"], p["ln1_b"], p["b2"],
                         p["ln2_g"], p["ln2_b"]]).astype(jnp.float32)  # (5, dm)

    kernel = functools.partial(_encoder_layer_kernel,
                               n_heads=n_heads, d_k=d_k, d_v=d_v)

    # ---- VMEM budget (double-buffered per-batch tiles + resident weights) ----
    w_bytes = 2 * (d_model * d_qk * 2 + d_model * d_qk + d_hv * d_model
                   + d_model * d_ff + d_ff * d_model) * 2        # bf16, 2 bufs
    tile_bytes = 2 * (S * d_model * 4 + S * S * 4                # x + mask
                      + S * d_model * 4 + n_heads * S * S * 4)   # out + attn
    small_bytes = 2 * (_round_up(d_ff, 128) * 8 * 4
                       + _round_up(d_model, 128) * 8 * 4)        # b1 + ln pack
    scratch_bytes = S * d_hv * 4
    live_bytes = S * (d_qk * 2 + d_hv) * 4 + S * d_ff * 4 + 4 * S * d_model * 4
    vmem_limit = int(min(max(2 * (w_bytes + tile_bytes + small_bytes
                                  + scratch_bytes + live_bytes),
                             16 * 1024 * 1024),
                         48 * 1024 * 1024))          # fits v7x's 64 MiB VMEM

    flops = (2 * B * S * d_model * (2 * d_qk + d_hv)             # Q/K/V proj
             + 2 * B * n_heads * S * S * (d_k + d_v)             # scores + attn@V
             + 2 * B * S * d_hv * d_model                        # fc
             + 4 * B * S * d_model * d_ff)                       # FFN
    cost = pl.CostEstimate(
        flops=flops,
        transcendentals=B * n_heads * S * S + 2 * B * S,
        bytes_accessed=(2 * B * S * d_model * 4 + B * S * S * 4
                        + B * n_heads * S * S * 4 + w_bytes // 2))

    out, attn = pl.pallas_call(
        kernel,
        out_shape=(jax.ShapeDtypeStruct((B, S, d_model), jnp.float32),
                   jax.ShapeDtypeStruct((B, n_heads, S, S), jnp.float32)),
        grid_spec=pltpu.PrefetchScalarGridSpec(
            num_scalar_prefetch=0,
            grid=(B,),
            in_specs=[
                pl.BlockSpec((1, S, d_model), lambda b: (b, 0, 0)),   # x
                pl.BlockSpec((1, S, S), lambda b: (b, 0, 0)),         # pad mask
                pl.BlockSpec((d_model, d_qk), lambda b: (0, 0)),      # Wq (bf16)
                pl.BlockSpec((d_model, d_qk), lambda b: (0, 0)),      # Wk (bf16)
                pl.BlockSpec((d_model, d_hv), lambda b: (0, 0)),      # Wv (bf16)
                pl.BlockSpec((d_hv, d_model), lambda b: (0, 0)),      # Wfc (bf16)
                pl.BlockSpec((d_model, d_ff), lambda b: (0, 0)),      # W1 (bf16)
                pl.BlockSpec((1, d_ff), lambda b: (0, 0)),            # b1
                pl.BlockSpec((d_ff, d_model), lambda b: (0, 0)),      # W2 (bf16)
                pl.BlockSpec((5, d_model), lambda b: (0, 0)),         # ln1/b2/ln2
            ],
            out_specs=[
                pl.BlockSpec((1, S, d_model), lambda b: (b, 0, 0)),
                pl.BlockSpec((1, n_heads, S, S), lambda b: (b, 0, 0, 0)),
            ],
            scratch_shapes=[pltpu.VMEM((S, d_hv), jnp.float32)],
        ),
        compiler_params=pltpu.CompilerParams(
            dimension_semantics=("parallel",),       # shards across v7x 2 TCs
            vmem_limit_bytes=vmem_limit),
        cost_estimate=cost,
    )(x_f, mask_f, wq_b, wk_b, wv_b, wfc_b, w1_b, b1_2, w2_b, ln_pack)
    return out, attn


# ----------------------------------------------------------------------------
# Pure-JAX reference (emulates bf16-operand / f32-accumulate matmuls).
# ----------------------------------------------------------------------------
def _ref_encoder_layer(x, pad_mask, p, n_heads, d_k, d_v):
    f32 = jnp.float32

    def bdot(a, b):
        return jnp.dot(a.astype(jnp.bfloat16).astype(f32),
                       b.astype(jnp.bfloat16).astype(f32),
                       preferred_element_type=f32)

    B, S, d_model = x.shape
    x2 = x.reshape(-1, d_model).astype(f32)
    q = bdot(x2, p["wq"]).reshape(B, S, n_heads, d_k).transpose(0, 2, 1, 3)
    k = bdot(x2, p["wk"]).reshape(B, S, n_heads, d_k).transpose(0, 2, 1, 3)
    v = bdot(x2, p["wv"]).reshape(B, S, n_heads, d_v).transpose(0, 2, 1, 3)
    scores = jnp.einsum("bhqd,bhkd->bhqk", q, k) / math.sqrt(d_k)
    scores = jnp.where(pad_mask[:, None, :, :], -1e9, scores)
    attn = jax.nn.softmax(scores, axis=-1)
    ctx = jnp.einsum("bhqk,bhkd->bhqd", attn, v)
    ctx = ctx.transpose(0, 2, 1, 3).reshape(B * S, n_heads * d_v)
    fc = bdot(ctx, p["wfc"]).reshape(B, S, d_model)

    def ln(z, g, b):
        mu = z.mean(-1, keepdims=True)
        var = ((z - mu) ** 2).mean(-1, keepdims=True)
        return (z - mu) / jnp.sqrt(var + 1e-5) * g + b

    out1 = ln(x.astype(f32) + fc, p["ln1_g"], p["ln1_b"])
    h = jnp.maximum(bdot(out1.reshape(-1, d_model), p["w1"]) + p["b1"], 0.0)
    y = (bdot(h, p["w2"]) + p["b2"]).reshape(B, S, d_model)
    out = ln(out1 + y, p["ln2_g"], p["ln2_b"])
    return out, attn


if __name__ == "__main__":
    B, S = 2, 8
    d_model, d_ff, n_heads, d_k, d_v = 256, 512, 8, 64, 64

    key = jax.random.PRNGKey(0)
    ks = jax.random.split(key, 10)
    x = jax.random.normal(ks[0], (B, S, d_model), dtype=jnp.float32)

    p = {
        "wq": jax.random.normal(ks[1], (d_model, n_heads * d_k), jnp.float32) * 0.05,
        "wk": jax.random.normal(ks[2], (d_model, n_heads * d_k), jnp.float32) * 0.05,
        "wv": jax.random.normal(ks[3], (d_model, n_heads * d_v), jnp.float32) * 0.05,
        "wfc": jax.random.normal(ks[4], (n_heads * d_v, d_model), jnp.float32) * 0.05,
        "ln1_g": jnp.ones((d_model,), jnp.float32),
        "ln1_b": jnp.zeros((d_model,), jnp.float32),
        "w1": jax.random.normal(ks[5], (d_model, d_ff), jnp.float32) * 0.05,
        "b1": jax.random.normal(ks[6], (d_ff,), jnp.float32) * 0.05,
        "w2": jax.random.normal(ks[7], (d_ff, d_model), jnp.float32) * 0.05,
        "b2": jax.random.normal(ks[8], (d_model,), jnp.float32) * 0.05,
        "ln2_g": jnp.ones((d_model,), jnp.float32),
        "ln2_b": jnp.zeros((d_model,), jnp.float32),
    }

    # Pad mask: batch 0 fully valid, batch 1 has its last two key positions padded.
    valid_len = jnp.array([S, S - 2])
    pad_keys = jnp.arange(S)[None, :] >= valid_len[:, None]       # (B, S)
    pad_mask = jnp.broadcast_to(pad_keys[:, None, :], (B, S, S))  # (B, S, S) bool

    out, attn = encoder_layer(x, pad_mask, p, n_heads=n_heads, d_k=d_k, d_v=d_v)
    out, attn = jax.block_until_ready((out, attn))

    ref_out, ref_attn = _ref_encoder_layer(x, pad_mask, p, n_heads, d_k, d_v)
    assert out.shape == (B, S, d_model) and attn.shape == (B, n_heads, S, S)
    assert jnp.allclose(attn, ref_attn, atol=2e-2, rtol=2e-2), "attn mismatch"
    assert jnp.allclose(out, ref_out, atol=2e-2, rtol=2e-2), "output mismatch"

    print("KERNEL_OK")
</pallas_src>

<mosaic_0001>
module attributes {stable_mosaic.version = 11 : i64} {
  func.func @_encoder_layer_kernel(%arg0: i32, %arg1: memref<1x8x256xf32, #tpu.memory_space<vmem>>, %arg2: memref<1x8x8xf32, #tpu.memory_space<vmem>>, %arg3: memref<256x512xbf16, #tpu.memory_space<vmem>>, %arg4: memref<256x512xbf16, #tpu.memory_space<vmem>>, %arg5: memref<256x512xbf16, #tpu.memory_space<vmem>>, %arg6: memref<512x256xbf16, #tpu.memory_space<vmem>>, %arg7: memref<256x512xbf16, #tpu.memory_space<vmem>>, %arg8: memref<1x512xf32, #tpu.memory_space<vmem>>, %arg9: memref<512x256xbf16, #tpu.memory_space<vmem>>, %arg10: memref<5x256xf32, #tpu.memory_space<vmem>>, %arg11: memref<1x8x256xf32, #tpu.memory_space<vmem>>, %arg12: memref<1x8x8x8xf32, #tpu.memory_space<vmem>>, %arg13: memref<8x512xf32, #tpu.memory_space<vmem>>) attributes {dimension_semantics = [#tpu.dimension_semantics<parallel>], iteration_bounds = array<i64: 2>, scalar_prefetch = 0 : i64, scratch_operands = 1 : i64, tpu.core_type = #tpu.core_type<tc>, window_params = [{transform_indices = @transform_0, window_bounds = array<i64: 1, 8, 256>}, {transform_indices = @transform_1, window_bounds = array<i64: 1, 8, 8>}, {pipeline_mode = #tpu.pipeline_mode<synchronous>, transform_indices = @transform_2, window_bounds = array<i64: 256, 512>}, {pipeline_mode = #tpu.pipeline_mode<synchronous>, transform_indices = @transform_3, window_bounds = array<i64: 256, 512>}, {pipeline_mode = #tpu.pipeline_mode<synchronous>, transform_indices = @transform_4, window_bounds = array<i64: 256, 512>}, {pipeline_mode = #tpu.pipeline_mode<synchronous>, transform_indices = @transform_5, window_bounds = array<i64: 512, 256>}, {pipeline_mode = #tpu.pipeline_mode<synchronous>, transform_indices = @transform_6, window_bounds = array<i64: 256, 512>}, {pipeline_mode = #tpu.pipeline_mode<synchronous>, transform_indices = @transform_7, window_bounds = array<i64: 1, 512>}, {pipeline_mode = #tpu.pipeline_mode<synchronous>, transform_indices = @transform_8, window_bounds = array<i64: 512, 256>}, {pipeline_mode = #tpu.pipeline_mode<synchronous>, transform_indices = @transform_9, window_bounds = array<i64: 5, 256>}, {transform_indices = @transform_10, window_bounds = array<i64: 1, 8, 256>}, {transform_indices = @transform_11, window_bounds = array<i64: 1, 8, 8, 8>}]} {
    %c0 = arith.constant 0 : index
    %c0_0 = arith.constant 0 : index
    %c0_1 = arith.constant 0 : index
    %0 = vector.load %arg1[%c0, %c0_0, %c0_1] : memref<1x8x256xf32, #tpu.memory_space<vmem>>, vector<1x8x256xf32>
    %1 = vector.shape_cast %0 : vector<1x8x256xf32> to vector<8x256xf32>
    %2 = arith.truncf %1 : vector<8x256xf32> to vector<8x256xbf16>
    %c0_2 = arith.constant 0 : index
    %c0_3 = arith.constant 0 : index
    %3 = vector.load %arg3[%c0_2, %c0_3] : memref<256x512xbf16, #tpu.memory_space<vmem>>, vector<256x512xbf16>
    %cst = arith.constant dense<0.000000e+00> : vector<8x512xf32>
    %4 = tpu.matmul %2, %3, %cst {dimension_numbers = #tpu.dot_dimension_numbers<[1], [0], [0], [1], [0, 0, 1, 1], [], []>} : vector<8x256xbf16>, vector<256x512xbf16>, vector<8x512xf32> -> vector<8x512xf32>
    %c0_4 = arith.constant 0 : index
    %c0_5 = arith.constant 0 : index
    %5 = vector.load %arg4[%c0_4, %c0_5] : memref<256x512xbf16, #tpu.memory_space<vmem>>, vector<256x512xbf16>
    %cst_6 = arith.constant dense<0.000000e+00> : vector<8x512xf32>
    %6 = tpu.matmul %2, %5, %cst_6 {dimension_numbers = #tpu.dot_dimension_numbers<[1], [0], [0], [1], [0, 0, 1, 1], [], []>} : vector<8x256xbf16>, vector<256x512xbf16>, vector<8x512xf32> -> vector<8x512xf32>
    %c0_7 = arith.constant 0 : index
    %c0_8 = arith.constant 0 : index
    %7 = vector.load %arg5[%c0_7, %c0_8] : memref<256x512xbf16, #tpu.memory_space<vmem>>, vector<256x512xbf16>
    %cst_9 = arith.constant dense<0.000000e+00> : vector<8x512xf32>
    %8 = tpu.matmul %2, %7, %cst_9 {dimension_numbers = #tpu.dot_dimension_numbers<[1], [0], [0], [1], [0, 0, 1, 1], [], []>} : vector<8x256xbf16>, vector<256x512xbf16>, vector<8x512xf32> -> vector<8x512xf32>
    %c0_10 = arith.constant 0 : index
    %c0_11 = arith.constant 0 : index
    %c0_12 = arith.constant 0 : index
    %9 = vector.load %arg2[%c0_10, %c0_11, %c0_12] : memref<1x8x8xf32, #tpu.memory_space<vmem>>, vector<1x8x8xf32>
    %10 = vector.shape_cast %9 : vector<1x8x8xf32> to vector<8x8xf32>
    %11 = vector.extract_strided_slice %4 {offsets = [0, 0], sizes = [8, 64], strides = [1, 1]} : vector<8x512xf32> to vector<8x64xf32>
    %12 = vector.extract_strided_slice %6 {offsets = [0, 0], sizes = [8, 64], strides = [1, 1]} : vector<8x512xf32> to vector<8x64xf32>
    %13 = vector.extract_strided_slice %8 {offsets = [0, 0], sizes = [8, 64], strides = [1, 1]} : vector<8x512xf32> to vector<8x64xf32>
    %cst_13 = arith.constant dense<0.000000e+00> : vector<8x8xf32>
    %14 = tpu.matmul %11, %12, %cst_13 {dimension_numbers = #tpu.dot_dimension_numbers<[1], [1], [0], [0], [0, 0, 1, 0], [], []>} : vector<8x64xf32>, vector<8x64xf32>, vector<8x8xf32> -> vector<8x8xf32>
    %cst_14 = arith.constant 1.250000e-01 : f32
    %15 = vector.broadcast %cst_14 : f32 to vector<8x8xf32>
    %16 = arith.mulf %14, %15 : vector<8x8xf32>
    %cst_15 = arith.constant 0.000000e+00 : f32
    %17 = vector.broadcast %cst_15 : f32 to vector<8x8xf32>
    %18 = arith.cmpf ogt, %10, %17 : vector<8x8xf32>
    %cst_16 = arith.constant -1.000000e+09 : f32
    %19 = vector.broadcast %cst_16 : f32 to vector<8x8xf32>
    %20 = arith.select %18, %19, %16 : vector<8x8xi1>, vector<8x8xf32>
    %cst_17 = arith.constant dense<0xFF800000> : vector<8xf32>
    %21 = vector.multi_reduction <maximumf>, %20, %cst_17 [1] : vector<8x8xf32> to vector<8xf32>
    %22 = vector.shape_cast %21 : vector<8xf32> to vector<8x1xf32>
    %23 = vector.broadcast %22 : vector<8x1xf32> to vector<8x8xf32>
    %24 = arith.subf %20, %23 : vector<8x8xf32>
    %25 = math.exp %24 : vector<8x8xf32>
    %cst_18 = arith.constant dense<0.000000e+00> : vector<8xf32>
    %26 = vector.multi_reduction <add>, %25, %cst_18 [1] : vector<8x8xf32> to vector<8xf32>
    %27 = vector.shape_cast %26 : vector<8xf32> to vector<8x1xf32>
    %28 = vector.broadcast %27 : vector<8x1xf32> to vector<8x8xf32>
    %29 = arith.divf %25, %28 : vector<8x8xf32>
    %c0_19 = arith.constant 0 : index
    %c0_20 = arith.constant 0 : index
    %c0_21 = arith.constant 0 : index
    %c0_22 = arith.constant 0 : index
    %30 = vector.load %arg12[%c0_19, %c0_20, %c0_21, %c0_22] : memref<1x8x8x8xf32, #tpu.memory_space<vmem>>, vector<1x1x8x8xf32>
    %31 = vector.shape_cast %30 : vector<1x1x8x8xf32> to vector<8x8xf32>
    %32 = vector.shape_cast %29 : vector<8x8xf32> to vector<1x1x8x8xf32>
    tpu.vector_store %arg12[%c0_19, %c0_20, %c0_21, %c0_22], %32 {strides = array<i32>} : memref<1x8x8x8xf32, #tpu.memory_space<vmem>>, vector<1x1x8x8xf32>,
    %cst_23 = arith.constant dense<0.000000e+00> : vector<8x64xf32>
    %33 = tpu.matmul %29, %13, %cst_23 {dimension_numbers = #tpu.dot_dimension_numbers<[1], [0], [0], [1], [0, 0, 1, 1], [], []>} : vector<8x8xf32>, vector<8x64xf32>, vector<8x64xf32> -> vector<8x64xf32>
    %c0_24 = arith.constant 0 : index
    %c0_25 = arith.constant 0 : index
    %34 = vector.load %arg13[%c0_24, %c0_25] : memref<8x512xf32, #tpu.memory_space<vmem>>, vector<8x64xf32>
    tpu.vector_store %arg13[%c0_24, %c0_25], %33 {strides = array<i32>} : memref<8x512xf32, #tpu.memory_space<vmem>>, vector<8x64xf32>,
    %35 = vector.extract_strided_slice %4 {offsets = [0, 64], sizes = [8, 64], strides = [1, 1]} : vector<8x512xf32> to vector<8x64xf32>
    %36 = vector.extract_strided_slice %6 {offsets = [0, 64], sizes = [8, 64], strides = [1, 1]} : vector<8x512xf32> to vector<8x64xf32>
    %37 = vector.extract_strided_slice %8 {offsets = [0, 64], sizes = [8, 64], strides = [1, 1]} : vector<8x512xf32> to vector<8x64xf32>
    %cst_26 = arith.constant dense<0.000000e+00> : vector<8x8xf32>
    %38 = tpu.matmul %35, %36, %cst_26 {dimension_numbers = #tpu.dot_dimension_numbers<[1], [1], [0], [0], [0, 0, 1, 0], [], []>} : vector<8x64xf32>, vector<8x64xf32>, vector<8x8xf32> -> vector<8x8xf32>
    %cst_27 = arith.constant 1.250000e-01 : f32
    %39 = vector.broadcast %cst_27 : f32 to vector<8x8xf32>
    %40 = arith.mulf %38, %39 : vector<8x8xf32>
    %cst_28 = arith.constant 0.000000e+00 : f32
    %41 = vector.broadcast %cst_28 : f32 to vector<8x8xf32>
    %42 = arith.cmpf ogt, %10, %41 : vector<8x8xf32>
    %cst_29 = arith.constant -1.000000e+09 : f32
    %43 = vector.broadcast %cst_29 : f32 to vector<8x8xf32>
    %44 = arith.select %42, %43, %40 : vector<8x8xi1>, vector<8x8xf32>
    %cst_30 = arith.constant dense<0xFF800000> : vector<8xf32>
    %45 = vector.multi_reduction <maximumf>, %44, %cst_30 [1] : vector<8x8xf32> to vector<8xf32>
    %46 = vector.shape_cast %45 : vector<8xf32> to vector<8x1xf32>
    %47 = vector.broadcast %46 : vector<8x1xf32> to vector<8x8xf32>
    %48 = arith.subf %44, %47 : vector<8x8xf32>
    %49 = math.exp %48 : vector<8x8xf32>
    %cst_31 = arith.constant dense<0.000000e+00> : vector<8xf32>
    %50 = vector.multi_reduction <add>, %49, %cst_31 [1] : vector<8x8xf32> to vector<8xf32>
    %51 = vector.shape_cast %50 : vector<8xf32> to vector<8x1xf32>
    %52 = vector.broadcast %51 : vector<8x1xf32> to vector<8x8xf32>
    %53 = arith.divf %49, %52 : vector<8x8xf32>
    %c0_32 = arith.constant 0 : index
    %c1 = arith.constant 1 : index
    %c0_33 = arith.constant 0 : index
    %c0_34 = arith.constant 0 : index
    %54 = vector.load %arg12[%c0_32, %c1, %c0_33, %c0_34] : memref<1x8x8x8xf32, #tpu.memory_space<vmem>>, vector<1x1x8x8xf32>
    %55 = vector.shape_cast %54 : vector<1x1x8x8xf32> to vector<8x8xf32>
    %56 = vector.shape_cast %53 : vector<8x8xf32> to vector<1x1x8x8xf32>
    tpu.vector_store %arg12[%c0_32, %c1, %c0_33, %c0_34], %56 {strides = array<i32>} : memref<1x8x8x8xf32, #tpu.memory_space<vmem>>, vector<1x1x8x8xf32>,
    %cst_35 = arith.constant dense<0.000000e+00> : vector<8x64xf32>
    %57 = tpu.matmul %53, %37, %cst_35 {dimension_numbers = #tpu.dot_dimension_numbers<[1], [0], [0], [1], [0, 0, 1, 1], [], []>} : vector<8x8xf32>, vector<8x64xf32>, vector<8x64xf32> -> vector<8x64xf32>
    %c0_36 = arith.constant 0 : index
    %c64 = arith.constant 64 : index
    %58 = vector.load %arg13[%c0_36, %c64] : memref<8x512xf32, #tpu.memory_space<vmem>>, vector<8x64xf32>
    tpu.vector_store %arg13[%c0_36, %c64], %57 {strides = array<i32>} : memref<8x512xf32, #tpu.memory_space<vmem>>, vector<8x64xf32>,
    %59 = vector.extract_strided_slice %4 {offsets = [0, 128], sizes = [8, 64], strides = [1, 1]} : vector<8x512xf32> to vector<8x64xf32>
    %60 = vector.extract_strided_slice %6 {offsets = [0, 128], sizes = [8, 64], strides = [1, 1]} : vector<8x512xf32> to vector<8x64xf32>
    %61 = vector.extract_strided_slice %8 {offsets = [0, 128], sizes = [8, 64], strides = [1, 1]} : vector<8x512xf32> to vector<8x64xf32>
    %cst_37 = arith.constant dense<0.000000e+00> : vector<8x8xf32>
    %62 = tpu.matmul %59, %60, %cst_37 {dimension_numbers = #tpu.dot_dimension_numbers<[1], [1], [0], [0], [0, 0, 1, 0], [], []>} : vector<8x64xf32>, vector<8x64xf32>, vector<8x8xf32> -> vector<8x8xf32>
    %cst_38 = arith.constant 1.250000e-01 : f32
    %63 = vector.broadcast %cst_38 : f32 to vector<8x8xf32>
    %64 = arith.mulf %62, %63 : vector<8x8xf32>
    %cst_39 = arith.constant 0.000000e+00 : f32
    %65 = vector.broadcast %cst_39 : f32 to vector<8x8xf32>
    %66 = arith.cmpf ogt, %10, %65 : vector<8x8xf32>
    %cst_40 = arith.constant -1.000000e+09 : f32
    %67 = vector.broadcast %cst_40 : f32 to vector<8x8xf32>
    %68 = arith.select %66, %67, %64 : vector<8x8xi1>, vector<8x8xf32>
    %cst_41 = arith.constant dense<0xFF800000> : vector<8xf32>
    %69 = vector.multi_reduction <maximumf>, %68, %cst_41 [1] : vector<8x8xf32> to vector<8xf32>
    %70 = vector.shape_cast %69 : vector<8xf32> to vector<8x1xf32>
    %71 = vector.broadcast %70 : vector<8x1xf32> to vector<8x8xf32>
    %72 = arith.subf %68, %71 : vector<8x8xf32>
    %73 = math.exp %72 : vector<8x8xf32>
    %cst_42 = arith.constant dense<0.000000e+00> : vector<8xf32>
    %74 = vector.multi_reduction <add>, %73, %cst_42 [1] : vector<8x8xf32> to vector<8xf32>
    %75 = vector.shape_cast %74 : vector<8xf32> to vector<8x1xf32>
    %76 = vector.broadcast %75 : vector<8x1xf32> to vector<8x8xf32>
    %77 = arith.divf %73, %76 : vector<8x8xf32>
    %c0_43 = arith.constant 0 : index
    %c2 = arith.constant 2 : index
    %c0_44 = arith.constant 0 : index
    %c0_45 = arith.constant 0 : index
    %78 = vector.load %arg12[%c0_43, %c2, %c0_44, %c0_45] : memref<1x8x8x8xf32, #tpu.memory_space<vmem>>, vector<1x1x8x8xf32>
    %79 = vector.shape_cast %78 : vector<1x1x8x8xf32> to vector<8x8xf32>
    %80 = vector.shape_cast %77 : vector<8x8xf32> to vector<1x1x8x8xf32>
    tpu.vector_store %arg12[%c0_43, %c2, %c0_44, %c0_45], %80 {strides = array<i32>} : memref<1x8x8x8xf32, #tpu.memory_space<vmem>>, vector<1x1x8x8xf32>,
    %cst_46 = arith.constant dense<0.000000e+00> : vector<8x64xf32>
    %81 = tpu.matmul %77, %61, %cst_46 {dimension_numbers = #tpu.dot_dimension_numbers<[1], [0], [0], [1], [0, 0, 1, 1], [], []>} : vector<8x8xf32>, vector<8x64xf32>, vector<8x64xf32> -> vector<8x64xf32>
    %c0_47 = arith.constant 0 : index
    %c128 = arith.constant 128 : index
    %82 = vector.load %arg13[%c0_47, %c128] : memref<8x512xf32, #tpu.memory_space<vmem>>, vector<8x64xf32>
    tpu.vector_store %arg13[%c0_47, %c128], %81 {strides = array<i32>} : memref<8x512xf32, #tpu.memory_space<vmem>>, vector<8x64xf32>,
    %83 = vector.extract_strided_slice %4 {offsets = [0, 192], sizes = [8, 64], strides = [1, 1]} : vector<8x512xf32> to vector<8x64xf32>
    %84 = vector.extract_strided_slice %6 {offsets = [0, 192], sizes = [8, 64], strides = [1, 1]} : vector<8x512xf32> to vector<8x64xf32>
    %85 = vector.extract_strided_slice %8 {offsets = [0, 192], sizes = [8, 64], strides = [1, 1]} : vector<8x512xf32> to vector<8x64xf32>
    %cst_48 = arith.constant dense<0.000000e+00> : vector<8x8xf32>
    %86 = tpu.matmul %83, %84, %cst_48 {dimension_numbers = #tpu.dot_dimension_numbers<[1], [1], [0], [0], [0, 0, 1, 0], [], []>} : vector<8x64xf32>, vector<8x64xf32>, vector<8x8xf32> -> vector<8x8xf32>
    %cst_49 = arith.constant 1.250000e-01 : f32
    %87 = vector.broadcast %cst_49 : f32 to vector<8x8xf32>
    %88 = arith.mulf %86, %87 : vector<8x8xf32>
    %cst_50 = arith.constant 0.000000e+00 : f32
    %89 = vector.broadcast %cst_50 : f32 to vector<8x8xf32>
    %90 = arith.cmpf ogt, %10, %89 : vector<8x8xf32>
    %cst_51 = arith.constant -1.000000e+09 : f32
    %91 = vector.broadcast %cst_51 : f32 to vector<8x8xf32>
    %92 = arith.select %90, %91, %88 : vector<8x8xi1>, vector<8x8xf32>
    %cst_52 = arith.constant dense<0xFF800000> : vector<8xf32>
    %93 = vector.multi_reduction <maximumf>, %92, %cst_52 [1] : vector<8x8xf32> to vector<8xf32>
    %94 = vector.shape_cast %93 : vector<8xf32> to vector<8x1xf32>
    %95 = vector.broadcast %94 : vector<8x1xf32> to vector<8x8xf32>
    %96 = arith.subf %92, %95 : vector<8x8xf32>
    %97 = math.exp %96 : vector<8x8xf32>
    %cst_53 = arith.constant dense<0.000000e+00> : vector<8xf32>
    %98 = vector.multi_reduction <add>, %97, %cst_53 [1] : vector<8x8xf32> to vector<8xf32>
    %99 = vector.shape_cast %98 : vector<8xf32> to vector<8x1xf32>
    %100 = vector.broadcast %99 : vector<8x1xf32> to vector<8x8xf32>
    %101 = arith.divf %97, %100 : vector<8x8xf32>
    %c0_54 = arith.constant 0 : index
    %c3 = arith.constant 3 : index
    %c0_55 = arith.constant 0 : index
    %c0_56 = arith.constant 0 : index
    %102 = vector.load %arg12[%c0_54, %c3, %c0_55, %c0_56] : memref<1x8x8x8xf32, #tpu.memory_space<vmem>>, vector<1x1x8x8xf32>
    %103 = vector.shape_cast %102 : vector<1x1x8x8xf32> to vector<8x8xf32>
    %104 = vector.shape_cast %101 : vector<8x8xf32> to vector<1x1x8x8xf32>
    tpu.vector_store %arg12[%c0_54, %c3, %c0_55, %c0_56], %104 {strides = array<i32>} : memref<1x8x8x8xf32, #tpu.memory_space<vmem>>, vector<1x1x8x8xf32>,
    %cst_57 = arith.constant dense<0.000000e+00> : vector<8x64xf32>
    %105 = tpu.matmul %101, %85, %cst_57 {dimension_numbers = #tpu.dot_dimension_numbers<[1], [0], [0], [1], [0, 0, 1, 1], [], []>} : vector<8x8xf32>, vector<8x64xf32>, vector<8x64xf32> -> vector<8x64xf32>
    %c0_58 = arith.constant 0 : index
    %c192 = arith.constant 192 : index
    %106 = vector.load %arg13[%c0_58, %c192] : memref<8x512xf32, #tpu.memory_space<vmem>>, vector<8x64xf32>
    tpu.vector_store %arg13[%c0_58, %c192], %105 {strides = array<i32>} : memref<8x512xf32, #tpu.memory_space<vmem>>, vector<8x64xf32>,
    %107 = vector.extract_strided_slice %4 {offsets = [0, 256], sizes = [8, 64], strides = [1, 1]} : vector<8x512xf32> to vector<8x64xf32>
    %108 = vector.extract_strided_slice %6 {offsets = [0, 256], sizes = [8, 64], strides = [1, 1]} : vector<8x512xf32> to vector<8x64xf32>
    %109 = vector.extract_strided_slice %8 {offsets = [0, 256], sizes = [8, 64], strides = [1, 1]} : vector<8x512xf32> to vector<8x64xf32>
    %cst_59 = arith.constant dense<0.000000e+00> : vector<8x8xf32>
    %110 = tpu.matmul %107, %108, %cst_59 {dimension_numbers = #tpu.dot_dimension_numbers<[1], [1], [0], [0], [0, 0, 1, 0], [], []>} : vector<8x64xf32>, vector<8x64xf32>, vector<8x8xf32> -> vector<8x8xf32>
    %cst_60 = arith.constant 1.250000e-01 : f32
    %111 = vector.broadcast %cst_60 : f32 to vector<8x8xf32>
    %112 = arith.mulf %110, %111 : vector<8x8xf32>
    %cst_61 = arith.constant 0.000000e+00 : f32
    %113 = vector.broadcast %cst_61 : f32 to vector<8x8xf32>
    %114 = arith.cmpf ogt, %10, %113 : vector<8x8xf32>
    %cst_62 = arith.constant -1.000000e+09 : f32
    %115 = vector.broadcast %cst_62 : f32 to vector<8x8xf32>
    %116 = arith.select %114, %115, %112 : vector<8x8xi1>, vector<8x8xf32>
    %cst_63 = arith.constant dense<0xFF800000> : vector<8xf32>
    %117 = vector.multi_reduction <maximumf>, %116, %cst_63 [1] : vector<8x8xf32> to vector<8xf32>
    %118 = vector.shape_cast %117 : vector<8xf32> to vector<8x1xf32>
    %119 = vector.broadcast %118 : vector<8x1xf32> to vector<8x8xf32>
    %120 = arith.subf %116, %119 : vector<8x8xf32>
    %121 = math.exp %120 : vector<8x8xf32>
    %cst_64 = arith.constant dense<0.000000e+00> : vector<8xf32>
    %122 = vector.multi_reduction <add>, %121, %cst_64 [1] : vector<8x8xf32> to vector<8xf32>
    %123 = vector.shape_cast %122 : vector<8xf32> to vector<8x1xf32>
    %124 = vector.broadcast %123 : vector<8x1xf32> to vector<8x8xf32>
    %125 = arith.divf %121, %124 : vector<8x8xf32>
    %c0_65 = arith.constant 0 : index
    %c4 = arith.constant 4 : index
    %c0_66 = arith.constant 0 : index
    %c0_67 = arith.constant 0 : index
    %126 = vector.load %arg12[%c0_65, %c4, %c0_66, %c0_67] : memref<1x8x8x8xf32, #tpu.memory_space<vmem>>, vector<1x1x8x8xf32>
    %127 = vector.shape_cast %126 : vector<1x1x8x8xf32> to vector<8x8xf32>
    %128 = vector.shape_cast %125 : vector<8x8xf32> to vector<1x1x8x8xf32>
    tpu.vector_store %arg12[%c0_65, %c4, %c0_66, %c0_67], %128 {strides = array<i32>} : memref<1x8x8x8xf32, #tpu.memory_space<vmem>>, vector<1x1x8x8xf32>,
    %cst_68 = arith.constant dense<0.000000e+00> : vector<8x64xf32>
    %129 = tpu.matmul %125, %109, %cst_68 {dimension_numbers = #tpu.dot_dimension_numbers<[1], [0], [0], [1], [0, 0, 1, 1], [], []>} : vector<8x8xf32>, vector<8x64xf32>, vector<8x64xf32> -> vector<8x64xf32>
    %c0_69 = arith.constant 0 : index
    %c256 = arith.constant 256 : index
    %130 = vector.load %arg13[%c0_69, %c256] : memref<8x512xf32, #tpu.memory_space<vmem>>, vector<8x64xf32>
    tpu.vector_store %arg13[%c0_69, %c256], %129 {strides = array<i32>} : memref<8x512xf32, #tpu.memory_space<vmem>>, vector<8x64xf32>,
    %131 = vector.extract_strided_slice %4 {offsets = [0, 320], sizes = [8, 64], strides = [1, 1]} : vector<8x512xf32> to vector<8x64xf32>
    %132 = vector.extract_strided_slice %6 {offsets = [0, 320], sizes = [8, 64], strides = [1, 1]} : vector<8x512xf32> to vector<8x64xf32>
    %133 = vector.extract_strided_slice %8 {offsets = [0, 320], sizes = [8, 64], strides = [1, 1]} : vector<8x512xf32> to vector<8x64xf32>
    %cst_70 = arith.constant dense<0.000000e+00> : vector<8x8xf32>
    %134 = tpu.matmul %131, %132, %cst_70 {dimension_numbers = #tpu.dot_dimension_numbers<[1], [1], [0], [0], [0, 0, 1, 0], [], []>} : vector<8x64xf32>, vector<8x64xf32>, vector<8x8xf32> -> vector<8x8xf32>
    %cst_71 = arith.constant 1.250000e-01 : f32
    %135 = vector.broadcast %cst_71 : f32 to vector<8x8xf32>
    %136 = arith.mulf %134, %135 : vector<8x8xf32>
    %cst_72 = arith.constant 0.000000e+00 : f32
    %137 = vector.broadcast %cst_72 : f32 to vector<8x8xf32>
    %138 = arith.cmpf ogt, %10, %137 : vector<8x8xf32>
    %cst_73 = arith.constant -1.000000e+09 : f32
    %139 = vector.broadcast %cst_73 : f32 to vector<8x8xf32>
    %140 = arith.select %138, %139, %136 : vector<8x8xi1>, vector<8x8xf32>
    %cst_74 = arith.constant dense<0xFF800000> : vector<8xf32>
    %141 = vector.multi_reduction <maximumf>, %140, %cst_74 [1] : vector<8x8xf32> to vector<8xf32>
    %142 = vector.shape_cast %141 : vector<8xf32> to vector<8x1xf32>
    %143 = vector.broadcast %142 : vector<8x1xf32> to vector<8x8xf32>
    %144 = arith.subf %140, %143 : vector<8x8xf32>
    %145 = math.exp %144 : vector<8x8xf32>
    %cst_75 = arith.constant dense<0.000000e+00> : vector<8xf32>
    %146 = vector.multi_reduction <add>, %145, %cst_75 [1] : vector<8x8xf32> to vector<8xf32>
    %147 = vector.shape_cast %146 : vector<8xf32> to vector<8x1xf32>
    %148 = vector.broadcast %147 : vector<8x1xf32> to vector<8x8xf32>
    %149 = arith.divf %145, %148 : vector<8x8xf32>
    %c0_76 = arith.constant 0 : index
    %c5 = arith.constant 5 : index
    %c0_77 = arith.constant 0 : index
    %c0_78 = arith.constant 0 : index
    %150 = vector.load %arg12[%c0_76, %c5, %c0_77, %c0_78] : memref<1x8x8x8xf32, #tpu.memory_space<vmem>>, vector<1x1x8x8xf32>
    %151 = vector.shape_cast %150 : vector<1x1x8x8xf32> to vector<8x8xf32>
    %152 = vector.shape_cast %149 : vector<8x8xf32> to vector<1x1x8x8xf32>
    tpu.vector_store %arg12[%c0_76, %c5, %c0_77, %c0_78], %152 {strides = array<i32>} : memref<1x8x8x8xf32, #tpu.memory_space<vmem>>, vector<1x1x8x8xf32>,
    %cst_79 = arith.constant dense<0.000000e+00> : vector<8x64xf32>
    %153 = tpu.matmul %149, %133, %cst_79 {dimension_numbers = #tpu.dot_dimension_numbers<[1], [0], [0], [1], [0, 0, 1, 1], [], []>} : vector<8x8xf32>, vector<8x64xf32>, vector<8x64xf32> -> vector<8x64xf32>
    %c0_80 = arith.constant 0 : index
    %c320 = arith.constant 320 : index
    %154 = vector.load %arg13[%c0_80, %c320] : memref<8x512xf32, #tpu.memory_space<vmem>>, vector<8x64xf32>
    tpu.vector_store %arg13[%c0_80, %c320], %153 {strides = array<i32>} : memref<8x512xf32, #tpu.memory_space<vmem>>, vector<8x64xf32>,
    %155 = vector.extract_strided_slice %4 {offsets = [0, 384], sizes = [8, 64], strides = [1, 1]} : vector<8x512xf32> to vector<8x64xf32>
    %156 = vector.extract_strided_slice %6 {offsets = [0, 384], sizes = [8, 64], strides = [1, 1]} : vector<8x512xf32> to vector<8x64xf32>
    %157 = vector.extract_strided_slice %8 {offsets = [0, 384], sizes = [8, 64], strides = [1, 1]} : vector<8x512xf32> to vector<8x64xf32>
    %cst_81 = arith.constant dense<0.000000e+00> : vector<8x8xf32>
    %158 = tpu.matmul %155, %156, %cst_81 {dimension_numbers = #tpu.dot_dimension_numbers<[1], [1], [0], [0], [0, 0, 1, 0], [], []>} : vector<8x64xf32>, vector<8x64xf32>, vector<8x8xf32> -> vector<8x8xf32>
    %cst_82 = arith.constant 1.250000e-01 : f32
    %159 = vector.broadcast %cst_82 : f32 to vector<8x8xf32>
    %160 = arith.mulf %158, %159 : vector<8x8xf32>
    %cst_83 = arith.constant 0.000000e+00 : f32
    %161 = vector.broadcast %cst_83 : f32 to vector<8x8xf32>
    %162 = arith.cmpf ogt, %10, %161 : vector<8x8xf32>
    %cst_84 = arith.constant -1.000000e+09 : f32
    %163 = vector.broadcast %cst_84 : f32 to vector<8x8xf32>
    %164 = arith.select %162, %163, %160 : vector<8x8xi1>, vector<8x8xf32>
    %cst_85 = arith.constant dense<0xFF800000> : vector<8xf32>
    %165 = vector.multi_reduction <maximumf>, %164, %cst_85 [1] : vector<8x8xf32> to vector<8xf32>
    %166 = vector.shape_cast %165 : vector<8xf32> to vector<8x1xf32>
    %167 = vector.broadcast %166 : vector<8x1xf32> to vector<8x8xf32>
    %168 = arith.subf %164, %167 : vector<8x8xf32>
    %169 = math.exp %168 : vector<8x8xf32>
    %cst_86 = arith.constant dense<0.000000e+00> : vector<8xf32>
    %170 = vector.multi_reduction <add>, %169, %cst_86 [1] : vector<8x8xf32> to vector<8xf32>
    %171 = vector.shape_cast %170 : vector<8xf32> to vector<8x1xf32>
    %172 = vector.broadcast %171 : vector<8x1xf32> to vector<8x8xf32>
    %173 = arith.divf %169, %172 : vector<8x8xf32>
    %c0_87 = arith.constant 0 : index
    %c6 = arith.constant 6 : index
    %c0_88 = arith.constant 0 : index
    %c0_89 = arith.constant 0 : index
    %174 = vector.load %arg12[%c0_87, %c6, %c0_88, %c0_89] : memref<1x8x8x8xf32, #tpu.memory_space<vmem>>, vector<1x1x8x8xf32>
    %175 = vector.shape_cast %174 : vector<1x1x8x8xf32> to vector<8x8xf32>
    %176 = vector.shape_cast %173 : vector<8x8xf32> to vector<1x1x8x8xf32>
    tpu.vector_store %arg12[%c0_87, %c6, %c0_88, %c0_89], %176 {strides = array<i32>} : memref<1x8x8x8xf32, #tpu.memory_space<vmem>>, vector<1x1x8x8xf32>,
    %cst_90 = arith.constant dense<0.000000e+00> : vector<8x64xf32>
    %177 = tpu.matmul %173, %157, %cst_90 {dimension_numbers = #tpu.dot_dimension_numbers<[1], [0], [0], [1], [0, 0, 1, 1], [], []>} : vector<8x8xf32>, vector<8x64xf32>, vector<8x64xf32> -> vector<8x64xf32>
    %c0_91 = arith.constant 0 : index
    %c384 = arith.constant 384 : index
    %178 = vector.load %arg13[%c0_91, %c384] : memref<8x512xf32, #tpu.memory_space<vmem>>, vector<8x64xf32>
    tpu.vector_store %arg13[%c0_91, %c384], %177 {strides = array<i32>} : memref<8x512xf32, #tpu.memory_space<vmem>>, vector<8x64xf32>,
    %179 = vector.extract_strided_slice %4 {offsets = [0, 448], sizes = [8, 64], strides = [1, 1]} : vector<8x512xf32> to vector<8x64xf32>
    %180 = vector.extract_strided_slice %6 {offsets = [0, 448], sizes = [8, 64], strides = [1, 1]} : vector<8x512xf32> to vector<8x64xf32>
    %181 = vector.extract_strided_slice %8 {offsets = [0, 448], sizes = [8, 64], strides = [1, 1]} : vector<8x512xf32> to vector<8x64xf32>
    %cst_92 = arith.constant dense<0.000000e+00> : vector<8x8xf32>
    %182 = tpu.matmul %179, %180, %cst_92 {dimension_numbers = #tpu.dot_dimension_numbers<[1], [1], [0], [0], [0, 0, 1, 0], [], []>} : vector<8x64xf32>, vector<8x64xf32>, vector<8x8xf32> -> vector<8x8xf32>
    %cst_93 = arith.constant 1.250000e-01 : f32
    %183 = vector.broadcast %cst_93 : f32 to vector<8x8xf32>
    %184 = arith.mulf %182, %183 : vector<8x8xf32>
    %cst_94 = arith.constant 0.000000e+00 : f32
    %185 = vector.broadcast %cst_94 : f32 to vector<8x8xf32>
    %186 = arith.cmpf ogt, %10, %185 : vector<8x8xf32>
    %cst_95 = arith.constant -1.000000e+09 : f32
    %187 = vector.broadcast %cst_95 : f32 to vector<8x8xf32>
    %188 = arith.select %186, %187, %184 : vector<8x8xi1>, vector<8x8xf32>
    %cst_96 = arith.constant dense<0xFF800000> : vector<8xf32>
    %189 = vector.multi_reduction <maximumf>, %188, %cst_96 [1] : vector<8x8xf32> to vector<8xf32>
    %190 = vector.shape_cast %189 : vector<8xf32> to vector<8x1xf32>
    %191 = vector.broadcast %190 : vector<8x1xf32> to vector<8x8xf32>
    %192 = arith.subf %188, %191 : vector<8x8xf32>
    %193 = math.exp %192 : vector<8x8xf32>
    %cst_97 = arith.constant dense<0.000000e+00> : vector<8xf32>
    %194 = vector.multi_reduction <add>, %193, %cst_97 [1] : vector<8x8xf32> to vector<8xf32>
    %195 = vector.shape_cast %194 : vector<8xf32> to vector<8x1xf32>
    %196 = vector.broadcast %195 : vector<8x1xf32> to vector<8x8xf32>
    %197 = arith.divf %193, %196 : vector<8x8xf32>
    %c0_98 = arith.constant 0 : index
    %c7 = arith.constant 7 : index
    %c0_99 = arith.constant 0 : index
    %c0_100 = arith.constant 0 : index
    %198 = vector.load %arg12[%c0_98, %c7, %c0_99, %c0_100] : memref<1x8x8x8xf32, #tpu.memory_space<vmem>>, vector<1x1x8x8xf32>
    %199 = vector.shape_cast %198 : vector<1x1x8x8xf32> to vector<8x8xf32>
    %200 = vector.shape_cast %197 : vector<8x8xf32> to vector<1x1x8x8xf32>
    tpu.vector_store %arg12[%c0_98, %c7, %c0_99, %c0_100], %200 {strides = array<i32>} : memref<1x8x8x8xf32, #tpu.memory_space<vmem>>, vector<1x1x8x8xf32>,
    %cst_101 = arith.constant dense<0.000000e+00> : vector<8x64xf32>
    %201 = tpu.matmul %197, %181, %cst_101 {dimension_numbers = #tpu.dot_dimension_numbers<[1], [0], [0], [1], [0, 0, 1, 1], [], []>} : vector<8x8xf32>, vector<8x64xf32>, vector<8x64xf32> -> vector<8x64xf32>
    %c0_102 = arith.constant 0 : index
    %c448 = arith.constant 448 : index
    %202 = vector.load %arg13[%c0_102, %c448] : memref<8x512xf32, #tpu.memory_space<vmem>>, vector<8x64xf32>
    tpu.vector_store %arg13[%c0_102, %c448], %201 {strides = array<i32>} : memref<8x512xf32, #tpu.memory_space<vmem>>, vector<8x64xf32>,
    %c0_103 = arith.constant 0 : index
    %c0_104 = arith.constant 0 : index
    %203 = vector.load %arg13[%c0_103, %c0_104] : memref<8x512xf32, #tpu.memory_space<vmem>>, vector<8x512xf32>
    %204 = arith.truncf %203 : vector<8x512xf32> to vector<8x512xbf16>
    %c0_105 = arith.constant 0 : index
    %c0_106 = arith.constant 0 : index
    %205 = vector.load %arg6[%c0_105, %c0_106] : memref<512x256xbf16, #tpu.memory_space<vmem>>, vector<512x256xbf16>
    %cst_107 = arith.constant dense<0.000000e+00> : vector<8x256xf32>
    %206 = tpu.matmul %204, %205, %cst_107 {dimension_numbers = #tpu.dot_dimension_numbers<[1], [0], [0], [1], [0, 0, 1, 1], [], []>} : vector<8x512xbf16>, vector<512x256xbf16>, vector<8x256xf32> -> vector<8x256xf32>
    %207 = arith.addf %1, %206 : vector<8x256xf32>
    %cst_108 = arith.constant dense<0.000000e+00> : vector<8xf32>
    %208 = vector.multi_reduction <add>, %207, %cst_108 [1] : vector<8x256xf32> to vector<8xf32>
    %209 = vector.shape_cast %208 : vector<8xf32> to vector<8x1xf32>
    %cst_109 = arith.constant 2.560000e+02 : f32
    %210 = vector.broadcast %cst_109 : f32 to vector<8x1xf32>
    %211 = arith.divf %209, %210 : vector<8x1xf32>
    %212 = vector.broadcast %211 : vector<8x1xf32> to vector<8x256xf32>
    %213 = arith.subf %207, %212 : vector<8x256xf32>
    %214 = arith.mulf %213, %213 : vector<8x256xf32>
    %cst_110 = arith.constant dense<0.000000e+00> : vector<8xf32>
    %215 = vector.multi_reduction <add>, %214, %cst_110 [1] : vector<8x256xf32> to vector<8xf32>
    %216 = vector.shape_cast %215 : vector<8xf32> to vector<8x1xf32>
    %cst_111 = arith.constant 2.560000e+02 : f32
    %217 = vector.broadcast %cst_111 : f32 to vector<8x1xf32>
    %218 = arith.divf %216, %217 : vector<8x1xf32>
    %cst_112 = arith.constant 9.99999974E-6 : f32
    %219 = vector.broadcast %cst_112 : f32 to vector<8x1xf32>
    %220 = arith.addf %218, %219 : vector<8x1xf32>
    %221 = math.rsqrt %220 : vector<8x1xf32>
    %222 = vector.broadcast %221 : vector<8x1xf32> to vector<8x256xf32>
    %223 = arith.mulf %213, %222 : vector<8x256xf32>
    %c0_113 = arith.constant 0 : index
    %c0_114 = arith.constant 0 : index
    %224 = vector.load %arg10[%c0_113, %c0_114] : memref<5x256xf32, #tpu.memory_space<vmem>>, vector<1x256xf32>
    %225 = vector.broadcast %224 : vector<1x256xf32> to vector<8x256xf32>
    %226 = arith.mulf %223, %225 : vector<8x256xf32>
    %c1_115 = arith.constant 1 : index
    %c0_116 = arith.constant 0 : index
    %227 = vector.load %arg10[%c1_115, %c0_116] : memref<5x256xf32, #tpu.memory_space<vmem>>, vector<1x256xf32>
    %228 = vector.broadcast %227 : vector<1x256xf32> to vector<8x256xf32>
    %229 = arith.addf %226, %228 : vector<8x256xf32>
    %230 = arith.truncf %229 : vector<8x256xf32> to vector<8x256xbf16>
    %c0_117 = arith.constant 0 : index
    %c0_118 = arith.constant 0 : index
    %231 = vector.load %arg7[%c0_117, %c0_118] : memref<256x512xbf16, #tpu.memory_space<vmem>>, vector<256x512xbf16>
    %cst_119 = arith.constant dense<0.000000e+00> : vector<8x512xf32>
    %232 = tpu.matmul %230, %231, %cst_119 {dimension_numbers = #tpu.dot_dimension_numbers<[1], [0], [0], [1], [0, 0, 1, 1], [], []>} : vector<8x256xbf16>, vector<256x512xbf16>, vector<8x512xf32> -> vector<8x512xf32>
    %c0_120 = arith.constant 0 : index
    %c0_121 = arith.constant 0 : index
    %233 = vector.load %arg8[%c0_120, %c0_121] : memref<1x512xf32, #tpu.memory_space<vmem>>, vector<1x512xf32>
    %234 = vector.broadcast %233 : vector<1x512xf32> to vector<8x512xf32>
    %235 = arith.addf %232, %234 : vector<8x512xf32>
    %cst_122 = arith.constant 0.000000e+00 : f32
    %236 = vector.broadcast %cst_122 : f32 to vector<8x512xf32>
    %237 = arith.maximumf %235, %236 : vector<8x512xf32>
    %238 = arith.truncf %237 : vector<8x512xf32> to vector<8x512xbf16>
    %c0_123 = arith.constant 0 : index
    %c0_124 = arith.constant 0 : index
    %239 = vector.load %arg9[%c0_123, %c0_124] : memref<512x256xbf16, #tpu.memory_space<vmem>>, vector<512x256xbf16>
    %cst_125 = arith.constant dense<0.000000e+00> : vector<8x256xf32>
    %240 = tpu.matmul %238, %239, %cst_125 {dimension_numbers = #tpu.dot_dimension_numbers<[1], [0], [0], [1], [0, 0, 1, 1], [], []>} : vector<8x512xbf16>, vector<512x256xbf16>, vector<8x256xf32> -> vector<8x256xf32>
    %c2_126 = arith.constant 2 : index
    %c0_127 = arith.constant 0 : index
    %241 = vector.load %arg10[%c2_126, %c0_127] : memref<5x256xf32, #tpu.memory_space<vmem>>, vector<1x256xf32>
    %242 = vector.broadcast %241 : vector<1x256xf32> to vector<8x256xf32>
    %243 = arith.addf %240, %242 : vector<8x256xf32>
    %244 = arith.addf %229, %243 : vector<8x256xf32>
    %cst_128 = arith.constant dense<0.000000e+00> : vector<8xf32>
    %245 = vector.multi_reduction <add>, %244, %cst_128 [1] : vector<8x256xf32> to vector<8xf32>
    %246 = vector.shape_cast %245 : vector<8xf32> to vector<8x1xf32>
    %cst_129 = arith.constant 2.560000e+02 : f32
    %247 = vector.broadcast %cst_129 : f32 to vector<8x1xf32>
    %248 = arith.divf %246, %247 : vector<8x1xf32>
    %249 = vector.broadcast %248 : vector<8x1xf32> to vector<8x256xf32>
    %250 = arith.subf %244, %249 : vector<8x256xf32>
    %251 = arith.mulf %250, %250 : vector<8x256xf32>
    %cst_130 = arith.constant dense<0.000000e+00> : vector<8xf32>
    %252 = vector.multi_reduction <add>, %251, %cst_130 [1] : vector<8x256xf32> to vector<8xf32>
    %253 = vector.shape_cast %252 : vector<8xf32> to vector<8x1xf32>
    %cst_131 = arith.constant 2.560000e+02 : f32
    %254 = vector.broadcast %cst_131 : f32 to vector<8x1xf32>
    %255 = arith.divf %253, %254 : vector<8x1xf32>
    %cst_132 = arith.constant 9.99999974E-6 : f32
    %256 = vector.broadcast %cst_132 : f32 to vector<8x1xf32>
    %257 = arith.addf %255, %256 : vector<8x1xf32>
    %258 = math.rsqrt %257 : vector<8x1xf32>
    %259 = vector.broadcast %258 : vector<8x1xf32> to vector<8x256xf32>
    %260 = arith.mulf %250, %259 : vector<8x256xf32>
    %c3_133 = arith.constant 3 : index
    %c0_134 = arith.constant 0 : index
    %261 = vector.load %arg10[%c3_133, %c0_134] : memref<5x256xf32, #tpu.memory_space<vmem>>, vector<1x256xf32>
    %262 = vector.broadcast %261 : vector<1x256xf32> to vector<8x256xf32>
    %263 = arith.mulf %260, %262 : vector<8x256xf32>
    %c4_135 = arith.constant 4 : index
    %c0_136 = arith.constant 0 : index
    %264 = vector.load %arg10[%c4_135, %c0_136] : memref<5x256xf32, #tpu.memory_space<vmem>>, vector<1x256xf32>
    %265 = vector.broadcast %264 : vector<1x256xf32> to vector<8x256xf32>
    %266 = arith.addf %263, %265 : vector<8x256xf32>
    %c0_137 = arith.constant 0 : index
    %c0_138 = arith.constant 0 : index
    %c0_139 = arith.constant 0 : index
    %267 = vector.load %arg11[%c0_137, %c0_138, %c0_139] : memref<1x8x256xf32, #tpu.memory_space<vmem>>, vector<1x8x256xf32>
    %268 = vector.shape_cast %267 : vector<1x8x256xf32> to vector<8x256xf32>
    %269 = vector.shape_cast %266 : vector<8x256xf32> to vector<1x8x256xf32>
    tpu.vector_store %arg11[%c0_137, %c0_138, %c0_139], %269 {strides = array<i32>} : memref<1x8x256xf32, #tpu.memory_space<vmem>>, vector<1x8x256xf32>,
    return
  }
  func.func @transform_0(%arg0: i32) -> (i32, i32, i32) {
    %c0_i32 = arith.constant 0 : i32
    %c0_i32_0 = arith.constant 0 : i32
    %c0_i32_1 = arith.constant 0 : i32
    return %arg0, %c0_i32, %c0_i32_0 : i32, i32, i32
  }
  func.func @transform_1(%arg0: i32) -> (i32, i32, i32) {
    %c0_i32 = arith.constant 0 : i32
    %c0_i32_0 = arith.constant 0 : i32
    %c0_i32_1 = arith.constant 0 : i32
    return %arg0, %c0_i32, %c0_i32_0 : i32, i32, i32
  }
  func.func @transform_2(%arg0: i32) -> (i32, i32) {
    %c0_i32 = arith.constant 0 : i32
    %c0_i32_0 = arith.constant 0 : i32
    %c0_i32_1 = arith.constant 0 : i32
    return %c0_i32, %c0_i32_0 : i32, i32
  }
  func.func @transform_3(%arg0: i32) -> (i32, i32) {
    %c0_i32 = arith.constant 0 : i32
    %c0_i32_0 = arith.constant 0 : i32
    %c0_i32_1 = arith.constant 0 : i32
    return %c0_i32, %c0_i32_0 : i32, i32
  }
  func.func @transform_4(%arg0: i32) -> (i32, i32) {
    %c0_i32 = arith.constant 0 : i32
    %c0_i32_0 = arith.constant 0 : i32
    %c0_i32_1 = arith.constant 0 : i32
    return %c0_i32, %c0_i32_0 : i32, i32
  }
  func.func @transform_5(%arg0: i32) -> (i32, i32) {
    %c0_i32 = arith.constant 0 : i32
    %c0_i32_0 = arith.constant 0 : i32
    %c0_i32_1 = arith.constant 0 : i32
    return %c0_i32, %c0_i32_0 : i32, i32
  }
  func.func @transform_6(%arg0: i32) -> (i32, i32) {
    %c0_i32 = arith.constant 0 : i32
    %c0_i32_0 = arith.constant 0 : i32
    %c0_i32_1 = arith.constant 0 : i32
    return %c0_i32, %c0_i32_0 : i32, i32
  }
  func.func @transform_7(%arg0: i32) -> (i32, i32) {
    %c0_i32 = arith.constant 0 : i32
    %c0_i32_0 = arith.constant 0 : i32
    %c0_i32_1 = arith.constant 0 : i32
    return %c0_i32, %c0_i32_0 : i32, i32
  }
  func.func @transform_8(%arg0: i32) -> (i32, i32) {
    %c0_i32 = arith.constant 0 : i32
    %c0_i32_0 = arith.constant 0 : i32
    %c0_i32_1 = arith.constant 0 : i32
    return %c0_i32, %c0_i32_0 : i32, i32
  }
  func.func @transform_9(%arg0: i32) -> (i32, i32) {
    %c0_i32 = arith.constant 0 : i32
    %c0_i32_0 = arith.constant 0 : i32
    %c0_i32_1 = arith.constant 0 : i32
    return %c0_i32, %c0_i32_0 : i32, i32
  }
  func.func @transform_10(%arg0: i32) -> (i32, i32, i32) {
    %c0_i32 = arith.constant 0 : i32
    %c0_i32_0 = arith.constant 0 : i32
    %c0_i32_1 = arith.constant 0 : i32
    return %arg0, %c0_i32, %c0_i32_0 : i32, i32, i32
  }
  func.func @transform_11(%arg0: i32) -> (i32, i32, i32, i32) {
    %c0_i32 = arith.constant 0 : i32
    %c0_i32_0 = arith.constant 0 : i32
    %c0_i32_1 = arith.constant 0 : i32
    %c0_i32_2 = arith.constant 0 : i32
    return %arg0, %c0_i32, %c0_i32_0, %c0_i32_1 : i32, i32, i32, i32
  }
}

</mosaic_0001>

<llo_original>
// kernel: tpu_custom_call.1
$region0: #{tpu_custom_call.1}
  #allocation0 [shape = 'u32[]', space=smem, size = 0x4, offset = 0x4, fixed_abs, tag = 'smem constant byte address 0x4 - core index']
  #allocation1 [shape = 'u32[144,128]{1,0:T(1,128)}', space=vmem, size = 0x12000, scoped, tag = 'internal scratch']
  #allocation2 [shape = 'f32[8,512]{1,0:T(8,128)}', space=vmem, size = 0x4000, scoped, tag = 'scratch operand']
  %s0 = inlined_call_operand.hbm [shape: f32[2,8,256], index: 0, kind: input, shape index: {}]
  %s1 = inlined_call_operand.hbm [shape: f32[2,8,8], index: 1, kind: input, shape index: {}]
  %s2 = inlined_call_operand.hbm [shape: bf16[256,512], index: 2, kind: input, shape index: {}]
  %s3 = inlined_call_operand.hbm [shape: bf16[256,512], index: 3, kind: input, shape index: {}]
  %s4 = inlined_call_operand.hbm [shape: bf16[256,512], index: 4, kind: input, shape index: {}]
  %s5 = inlined_call_operand.hbm [shape: bf16[512,256], index: 5, kind: input, shape index: {}]
  %s6 = inlined_call_operand.hbm [shape: bf16[256,512], index: 6, kind: input, shape index: {}]
  %s7 = inlined_call_operand.vmem [shape: f32[1,512], index: 7, kind: input, shape index: {}]
  %s8 = inlined_call_operand.hbm [shape: bf16[512,256], index: 8, kind: input, shape index: {}]
  %s9 = inlined_call_operand.vmem [shape: f32[5,256], index: 9, kind: input, shape index: {}]
  %s10 = inlined_call_operand.hbm [shape: f32[2,8,256], index: 10, kind: output, shape index: {0}]
  %s11 = inlined_call_operand.hbm [shape: f32[2,8,8,8], index: 11, kind: output, shape index: {1}]
  %12 = xla_tuple %s10, %s11
  %s13 = sld [smem:[#allocation0]]
  $region113: #{tpu_custom_call.1} parent=0
    _
  %s15 = ssub.s32 1, %s13
  %s16 = scalar_select 0, %s15, %s13
  $region1: #{tpu_custom_call.1} parent=0
    #allocation3 [shape = 'u8[16384]{0}', space=vmem, size = 0x4000, scoped, tag = 'input window, operand 0']
    #allocation4 [shape = 's32[2]{0}', space=sflag, size = 0x8, scoped, tag = 'scoped memory for tpu_custom_call.1']
    #allocation5 [shape = 's32[2]{0}', space=sflag, size = 0x8, scoped, tag = 'scoped memory for tpu_custom_call.1']
    #allocation6 [shape = 'u8[8192]{0}', space=vmem, size = 0x2000, scoped, tag = 'input window, operand 1']
    #allocation7 [shape = 's32[2]{0}', space=sflag, size = 0x8, scoped, tag = 'scoped memory for tpu_custom_call.1']
    #allocation8 [shape = 'u8[262144]{0}', space=vmem, size = 0x40000, scoped, tag = 'input window, operand 2, single buffered']
    #allocation9 [shape = 'u8[262144]{0}', space=vmem, size = 0x40000, scoped, tag = 'input window, operand 3, single buffered']
    #allocation10 [shape = 's32[1]{0}', space=sflag, size = 0x4, scoped, tag = 'scoped memory for tpu_custom_call.1']
    #allocation11 [shape = 'u8[262144]{0}', space=vmem, size = 0x40000, scoped, tag = 'input window, operand 4, single buffered']
    #allocation12 [shape = 'u8[262144]{0}', space=vmem, size = 0x40000, scoped, tag = 'input window, operand 5, single buffered']
    #allocation13 [shape = 's32[1]{0}', space=sflag, size = 0x4, scoped, tag = 'scoped memory for tpu_custom_call.1']
    #allocation14 [shape = 'u8[262144]{0}', space=vmem, size = 0x40000, scoped, tag = 'input window, operand 6, single buffered']
    #allocation15 [shape = 'u8[262144]{0}', space=vmem, size = 0x40000, scoped, tag = 'input window, operand 8, single buffered']
    #allocation16 [shape = 's32[1]{0}', space=sflag, size = 0x4, scoped, tag = 'scoped memory for tpu_custom_call.1']
    #allocation17 [shape = 'u8[16384]{0}', space=vmem, size = 0x4000, scoped, tag = 'output window, operand 0']
    #allocation18 [shape = 'u8[65536]{0}', space=vmem, size = 0x10000, scoped, tag = 'output window, operand 1']
    #allocation19 [shape = 's32[2]{0}', space=sflag, size = 0x8, scoped, tag = 'scoped memory for tpu_custom_call.1']
    %17 = vsyncpa [#allocation4], 0
    %s18 = scalar_lea.sflag [#allocation4], 1
    %19 = vsyncpa %s18, 0
    %20 = vsyncpa [#allocation7], 0
    %s21 = scalar_lea.sflag [#allocation7], 1
    %22 = vsyncpa %s21, 0
    %23 = vsyncpa [#allocation10], 0
    %24 = vsyncpa [#allocation13], 0
    %25 = vsyncpa [#allocation16], 0
    %26 = vsyncpa [#allocation5], 0
    %s27 = scalar_lea.sflag [#allocation5], 1
    %28 = vsyncpa %s27, 0
    %29 = vsyncpa [#allocation19], 0
    %s30 = scalar_lea.sflag [#allocation19], 1
    %31 = vsyncpa %s30, 0
    loop: start=0, step=1, limit=4
    $region2: #{tpu_custom_call.1} parent=1 // loop_pre_header
      _
    $region3: #{tpu_custom_call.1} parent=1 // loop_header
      %s33 = sphi 0, %s37
      %p34 = scmp.ge.s32.totalorder %s33, 4
      %s43 = sphi 0, %s45
      %s46 = sphi 0, %s43
      %s47 = sphi 0, %s46
      %s63 = sphi 0, %s47
      %s69 = sphi 0, %s71
      %s72 = sphi 0, %s69
      %s73 = sphi 0, %s72
      %s89 = sphi 0, %s73
      %s93 = sphi 0, %s93
      %s95 = sphi 0, %s93
      %s96 = sphi 0, %s95
      %s110 = sphi 0, %s96
      %s114 = sphi 0, %s114
      %s116 = sphi 0, %s114
      %s117 = sphi 0, %s116
      %s131 = sphi 0, %s117
      %s135 = sphi 0, %s135
      %s137 = sphi 0, %s135
      %s138 = sphi 0, %s137
      %s152 = sphi 0, %s138
      %s156 = sphi 0, %s156
      %s158 = sphi 0, %s156
      %s159 = sphi 0, %s158
      %s173 = sphi 0, %s159
      %s177 = sphi 0, %s177
      %s179 = sphi 0, %s177
      %s180 = sphi 0, %s179
      %s194 = sphi 0, %s180
      %s198 = sphi 0, %s198
      %s200 = sphi 0, %s198
      %s201 = sphi 0, %s200
      %s215 = sphi 0, %s201
      %s219 = sphi 0, %s219
      %s221 = sphi 0, %s219
      %s222 = sphi 0, %s221
      %s236 = sphi 0, %s222
      %s240 = sphi 0, %s240
      %s242 = sphi 0, %s240
      %s243 = sphi 0, %s242
      %s257 = sphi 0, %s243
      %s263 = sphi 0, %s265
      %s266 = sphi 0, %s263
      %s267 = sphi 0, %s266
      %s283 = sphi 0, %s267
      %s289 = sphi 0, %s291
      %s292 = sphi 0, %s289
      %s293 = sphi 0, %s292
      %s309 = sphi 0, %s293
    $region4: #{tpu_custom_call.1} parent=1 // loop_header_branch
      %36 = sbr.rel (%p34) target = $region8
    $region5: #{tpu_custom_call.1} parent=1 // loop_body
      %s38 = ssub.s32 %s33, 1
      %s39 = ssub.s32 %s33, 2
      %s40 = sadd.s32 %s33, 1
      %s41 = ssub.s32 %s33, %s40
      %p42 = scmp.eq.s32.totalorder %s41, 0
      %s44 = sadd.s32 %s43, 1
      %s45 = scalar_select %p42, %s43, %s44
      %p48 = pneg %p42
      %p49 = scmp.eq.s32.totalorder %s33, 1
      %p50 = por %p48, %p49
      %p51 = scmp.ne.s32.totalorder %s43, %s46
      %p52 = scmp.eq.s32.totalorder %s33, 0
      %p53 = por %p51, %p52
      %p54 = scmp.ne.s32.totalorder %s43, %s46
      %p55 = scmp.eq.s32.totalorder %s38, 1
      %p56 = por %p54, %p55
      %p57 = scmp.ne.s32.totalorder %s46, %s47
      %p58 = scmp.eq.s32.totalorder %s38, 0
      %p59 = por %p57, %p58
      %p60 = scmp.ne.s32.totalorder %s46, %s47
      %p61 = scmp.eq.s32.totalorder %s39, 1
      %p62 = por %p60, %p61
      %p64 = scmp.ne.s32.totalorder %s47, %s63
      %p65 = scmp.eq.s32.totalorder %s39, 0
      %p66 = por %p64, %p65
      %s67 = ssub.s32 %s33, %s40
      %p68 = scmp.eq.s32.totalorder %s67, 0
      %s70 = sadd.s32 %s69, 1
      %s71 = scalar_select %p68, %s69, %s70
      %p74 = pneg %p68
      %p75 = scmp.eq.s32.totalorder %s33, 1
      %p76 = por %p74, %p75
      %p77 = scmp.ne.s32.totalorder %s69, %s72
      %p78 = scmp.eq.s32.totalorder %s33, 0
      %p79 = por %p77, %p78
      %p80 = scmp.ne.s32.totalorder %s69, %s72
      %p81 = scmp.eq.s32.totalorder %s38, 1
      %p82 = por %p80, %p81
      %p83 = scmp.ne.s32.totalorder %s72, %s73
      %p84 = scmp.eq.s32.totalorder %s38, 0
      %p85 = por %p83, %p84
      %p86 = scmp.ne.s32.totalorder %s72, %s73
      %p87 = scmp.eq.s32.totalorder %s39, 1
      %p88 = por %p86, %p87
      %p90 = scmp.ne.s32.totalorder %s73, %s89
      %p91 = scmp.eq.s32.totalorder %s39, 0
      %p92 = por %p90, %p91
      %s94 = sadd.s32 %s93, 1
      %p97 = scmp.eq.s32.totalorder %s33, 1
      %p98 = scmp.ne.s32.totalorder %s93, %s95
      %p99 = scmp.eq.s32.totalorder %s33, 0
      %p100 = por %p98, %p99
      %p101 = scmp.ne.s32.totalorder %s93, %s95
      %p102 = scmp.eq.s32.totalorder %s38, 1
      %p103 = por %p101, %p102
      %p104 = scmp.ne.s32.totalorder %s95, %s96
      %p105 = scmp.eq.s32.totalorder %s38, 0
      %p106 = por %p104, %p105
      %p107 = scmp.ne.s32.totalorder %s95, %s96
      %p108 = scmp.eq.s32.totalorder %s39, 1
      %p109 = por %p107, %p108
      %p111 = scmp.ne.s32.totalorder %s96, %s110
      %p112 = scmp.eq.s32.totalorder %s39, 0
      %p113 = por %p111, %p112
      %s115 = sadd.s32 %s114, 1
      %p118 = scmp.eq.s32.totalorder %s33, 1
      %p119 = scmp.ne.s32.totalorder %s114, %s116
      %p120 = scmp.eq.s32.totalorder %s33, 0
      %p121 = por %p119, %p120
      %p122 = scmp.ne.s32.totalorder %s114, %s116
      %p123 = scmp.eq.s32.totalorder %s38, 1
      %p124 = por %p122, %p123
      %p125 = scmp.ne.s32.totalorder %s116, %s117
      %p126 = scmp.eq.s32.totalorder %s38, 0
      %p127 = por %p125, %p126
      %p128 = scmp.ne.s32.totalorder %s116, %s117
      %p129 = scmp.eq.s32.totalorder %s39, 1
      %p130 = por %p128, %p129
      %p132 = scmp.ne.s32.totalorder %s117, %s131
      %p133 = scmp.eq.s32.totalorder %s39, 0
      %p134 = por %p132, %p133
      %s136 = sadd.s32 %s135, 1
      %p139 = scmp.eq.s32.totalorder %s33, 1
      %p140 = scmp.ne.s32.totalorder %s135, %s137
      %p141 = scmp.eq.s32.totalorder %s33, 0
      %p142 = por %p140, %p141
      %p143 = scmp.ne.s32.totalorder %s135, %s137
      %p144 = scmp.eq.s32.totalorder %s38, 1
      %p145 = por %p143, %p144
      %p146 = scmp.ne.s32.totalorder %s137, %s138
      %p147 = scmp.eq.s32.totalorder %s38, 0
      %p148 = por %p146, %p147
      %p149 = scmp.ne.s32.totalorder %s137, %s138
      %p150 = scmp.eq.s32.totalorder %s39, 1
      %p151 = por %p149, %p150
      %p153 = scmp.ne.s32.totalorder %s138, %s152
      %p154 = scmp.eq.s32.totalorder %s39, 0
      %p155 = por %p153, %p154
      %s157 = sadd.s32 %s156, 1
      %p160 = scmp.eq.s32.totalorder %s33, 1
      %p161 = scmp.ne.s32.totalorder %s156, %s158
      %p162 = scmp.eq.s32.totalorder %s33, 0
      %p163 = por %p161, %p162
      %p164 = scmp.ne.s32.totalorder %s156, %s158
      %p165 = scmp.eq.s32.totalorder %s38, 1
      %p166 = por %p164, %p165
      %p167 = scmp.ne.s32.totalorder %s158, %s159
      %p168 = scmp.eq.s32.totalorder %s38, 0
      %p169 = por %p167, %p168
      %p170 = scmp.ne.s32.totalorder %s158, %s159
      %p171 = scmp.eq.s32.totalorder %s39, 1
      %p172 = por %p170, %p171
      %p174 = scmp.ne.s32.totalorder %s159, %s173
      %p175 = scmp.eq.s32.totalorder %s39, 0
      %p176 = por %p174, %p175
      %s178 = sadd.s32 %s177, 1
      %p181 = scmp.eq.s32.totalorder %s33, 1
      %p182 = scmp.ne.s32.totalorder %s177, %s179
      %p183 = scmp.eq.s32.totalorder %s33, 0
      %p184 = por %p182, %p183
      %p185 = scmp.ne.s32.totalorder %s177, %s179
      %p186 = scmp.eq.s32.totalorder %s38, 1
      %p187 = por %p185, %p186
      %p188 = scmp.ne.s32.totalorder %s179, %s180
      %p189 = scmp.eq.s32.totalorder %s38, 0
      %p190 = por %p188, %p189
      %p191 = scmp.ne.s32.totalorder %s179, %s180
      %p192 = scmp.eq.s32.totalorder %s39, 1
      %p193 = por %p191, %p192
      %p195 = scmp.ne.s32.totalorder %s180, %s194
      %p196 = scmp.eq.s32.totalorder %s39, 0
      %p197 = por %p195, %p196
      %s199 = sadd.s32 %s198, 1
      %p202 = scmp.eq.s32.totalorder %s33, 1
      %p203 = scmp.ne.s32.totalorder %s198, %s200
      %p204 = scmp.eq.s32.totalorder %s33, 0
      %p205 = por %p203, %p204
      %p206 = scmp.ne.s32.totalorder %s198, %s200
      %p207 = scmp.eq.s32.totalorder %s38, 1
      %p208 = por %p206, %p207
      %p209 = scmp.ne.s32.totalorder %s200, %s201
      %p210 = scmp.eq.s32.totalorder %s38, 0
      %p211 = por %p209, %p210
      %p212 = scmp.ne.s32.totalorder %s200, %s201
      %p213 = scmp.eq.s32.totalorder %s39, 1
      %p214 = por %p212, %p213
      %p216 = scmp.ne.s32.totalorder %s201, %s215
      %p217 = scmp.eq.s32.totalorder %s39, 0
      %p218 = por %p216, %p217
      %s220 = sadd.s32 %s219, 1
      %p223 = scmp.eq.s32.totalorder %s33, 1
      %p224 = scmp.ne.s32.totalorder %s219, %s221
      %p225 = scmp.eq.s32.totalorder %s33, 0
      %p226 = por %p224, %p225
      %p227 = scmp.ne.s32.totalorder %s219, %s221
      %p228 = scmp.eq.s32.totalorder %s38, 1
      %p229 = por %p227, %p228
      %p230 = scmp.ne.s32.totalorder %s221, %s222
      %p231 = scmp.eq.s32.totalorder %s38, 0
      %p232 = por %p230, %p231
      %p233 = scmp.ne.s32.totalorder %s221, %s222
      %p234 = scmp.eq.s32.totalorder %s39, 1
      %p235 = por %p233, %p234
      %p237 = scmp.ne.s32.totalorder %s222, %s236
      %p238 = scmp.eq.s32.totalorder %s39, 0
      %p239 = por %p237, %p238
      %s241 = sadd.s32 %s240, 1
      %p244 = scmp.eq.s32.totalorder %s33, 1
      %p245 = scmp.ne.s32.totalorder %s240, %s242
      %p246 = scmp.eq.s32.totalorder %s33, 0
      %p247 = por %p245, %p246
      %p248 = scmp.ne.s32.totalorder %s240, %s242
      %p249 = scmp.eq.s32.totalorder %s38, 1
      %p250 = por %p248, %p249
      %p251 = scmp.ne.s32.totalorder %s242, %s243
      %p252 = scmp.eq.s32.totalorder %s38, 0
      %p253 = por %p251, %p252
      %p254 = scmp.ne.s32.totalorder %s242, %s243
      %p255 = scmp.eq.s32.totalorder %s39, 1
      %p256 = por %p254, %p255
      %p258 = scmp.ne.s32.totalorder %s243, %s257
      %p259 = scmp.eq.s32.totalorder %s39, 0
      %p260 = por %p258, %p259
      %s261 = ssub.s32 %s33, %s40
      %p262 = scmp.eq.s32.totalorder %s261, 0
      %s264 = sadd.s32 %s263, 1
      %s265 = scalar_select %p262, %s263, %s264
      %p268 = pneg %p262
      %p269 = scmp.eq.s32.totalorder %s33, 1
      %p270 = por %p268, %p269
      %p271 = scmp.ne.s32.totalorder %s263, %s266
      %p272 = scmp.eq.s32.totalorder %s33, 0
      %p273 = por %p271, %p272
      %p274 = scmp.ne.s32.totalorder %s263, %s266
      %p275 = scmp.eq.s32.totalorder %s38, 1
      %p276 = por %p274, %p275
      %p277 = scmp.ne.s32.totalorder %s266, %s267
      %p278 = scmp.eq.s32.totalorder %s38, 0
      %p279 = por %p277, %p278
      %p280 = scmp.ne.s32.totalorder %s266, %s267
      %p281 = scmp.eq.s32.totalorder %s39, 1
      %p282 = por %p280, %p281
      %p284 = scmp.ne.s32.totalorder %s267, %s283
      %p285 = scmp.eq.s32.totalorder %s39, 0
      %p286 = por %p284, %p285
      %s287 = ssub.s32 %s33, %s40
      %p288 = scmp.eq.s32.totalorder %s287, 0
      %s290 = sadd.s32 %s289, 1
      %s291 = scalar_select %p288, %s289, %s290
      %p294 = pneg %p288
      %p295 = scmp.eq.s32.totalorder %s33, 1
      %p296 = por %p294, %p295
      %p297 = scmp.ne.s32.totalorder %s289, %s292
      %p298 = scmp.eq.s32.totalorder %s33, 0
      %p299 = por %p297, %p298
      %p300 = scmp.ne.s32.totalorder %s289, %s292
      %p301 = scmp.eq.s32.totalorder %s38, 1
      %p302 = por %p300, %p301
      %p303 = scmp.ne.s32.totalorder %s292, %s293
      %p304 = scmp.eq.s32.totalorder %s38, 0
      %p305 = por %p303, %p304
      %p306 = scmp.ne.s32.totalorder %s292, %s293
      %p307 = scmp.eq.s32.totalorder %s39, 1
      %p308 = por %p306, %p307
      %p310 = scmp.ne.s32.totalorder %s293, %s309
      %p311 = scmp.eq.s32.totalorder %s39, 0
      %p312 = por %p310, %p311
      %p313 = scmp.le.s32.totalorder 1, %s33
      %p314 = scmp.lt.s32.totalorder %s33, 3
      %p315 = pnand %p313, %p314
      %p316 = pneg %p315
      // Predicated region
      $region9: #{tpu_custom_call.1} parent=5 // pred_check
        _
      $region10: #{tpu_custom_call.1} parent=5 // pred_check_branch
        %318 = sbr.rel (%p315) target = $region12
      $region11: #{tpu_custom_call.1} parent=5 // pred_region
        %s319 = ssub.s32 %s33, 1
        // Predicated region
        $region13: #{tpu_custom_call.1} parent=11 // pred_check
          %p320 = pneg %p106
        $region14: #{tpu_custom_call.1} parent=11 // pred_check_branch
          %322 = sbr.rel (%p320) target = $region16
        $region15: #{tpu_custom_call.1} parent=11 // pred_region
          %s324 = ssub.s32 8192, 8192
          %325 = vsyncadd [#allocation7], %s324
          %s326 = sshll.u32 [#allocation8], 4
          %s327 = int_to_ptr.vmem [resolvable:$true] %s326
          %332 = dma.hbm_to_vmem [thread:$0]  %s2, 8192, %s327, [#allocation7], 256, 256, 16
        $region16: #{tpu_custom_call.1} parent=11 // pred_fallthru
          _
        // Predicated region
        $region17: #{tpu_custom_call.1} parent=11 // pred_check
          %p333 = pneg %p127
        $region18: #{tpu_custom_call.1} parent=11 // pred_check_branch
          %335 = sbr.rel (%p333) target = $region20
        $region19: #{tpu_custom_call.1} parent=11 // pred_region
          %s337 = ssub.s32 8192, 8192
          %338 = vsyncadd [#allocation10], %s337
          %s339 = sshll.u32 [#allocation9], 4
          %s340 = int_to_ptr.vmem [resolvable:$true] %s339
          %345 = dma.hbm_to_vmem [thread:$0]  %s3, 8192, %s340, [#allocation10], 256, 256, 16
        $region20: #{tpu_custom_call.1} parent=11 // pred_fallthru
          _
        // Predicated region
        $region21: #{tpu_custom_call.1} parent=11 // pred_check
          %p346 = pneg %p148
        $region22: #{tpu_custom_call.1} parent=11 // pred_check_branch
          %348 = sbr.rel (%p346) target = $region24
        $region23: #{tpu_custom_call.1} parent=11 // pred_region
          %s350 = ssub.s32 8192, 8192
          %351 = vsyncadd [#allocation10], %s350
          %s352 = sshll.u32 [#allocation11], 4
          %s353 = int_to_ptr.vmem [resolvable:$true] %s352
          %358 = dma.hbm_to_vmem [thread:$0]  %s4, 8192, %s353, [#allocation10], 256, 256, 16
        $region24: #{tpu_custom_call.1} parent=11 // pred_fallthru
          _
        // Predicated region
        $region25: #{tpu_custom_call.1} parent=11 // pred_check
          %p359 = pneg %p169
        $region26: #{tpu_custom_call.1} parent=11 // pred_check_branch
          %361 = sbr.rel (%p359) target = $region28
        $region27: #{tpu_custom_call.1} parent=11 // pred_region
          %s363 = ssub.s32 8192, 8192
          %364 = vsyncadd [#allocation13], %s363
          %s365 = sshll.u32 [#allocation12], 4
          %s366 = int_to_ptr.vmem [resolvable:$true] %s365
          %371 = dma.hbm_to_vmem [thread:$0]  %s5, 8192, %s366, [#allocation13], 128, 128, 8
        $region28: #{tpu_custom_call.1} parent=11 // pred_fallthru
          _
        // Predicated region
        $region29: #{tpu_custom_call.1} parent=11 // pred_check
          %p372 = pneg %p190
        $region30: #{tpu_custom_call.1} parent=11 // pred_check_branch
          %374 = sbr.rel (%p372) target = $region32
        $region31: #{tpu_custom_call.1} parent=11 // pred_region
          %s376 = ssub.s32 8192, 8192
          %377 = vsyncadd [#allocation13], %s376
          %s378 = sshll.u32 [#allocation14], 4
          %s379 = int_to_ptr.vmem [resolvable:$true] %s378
          %384 = dma.hbm_to_vmem [thread:$0]  %s6, 8192, %s379, [#allocation13], 256, 256, 16
        $region32: #{tpu_custom_call.1} parent=11 // pred_fallthru
          _
        // Predicated region
        $region33: #{tpu_custom_call.1} parent=11 // pred_check
          %p385 = pneg %p211
        $region34: #{tpu_custom_call.1} parent=11 // pred_check_branch
          %387 = sbr.rel (%p385) target = $region36
        $region35: #{tpu_custom_call.1} parent=11 // pred_region
          _
        $region36: #{tpu_custom_call.1} parent=11 // pred_fallthru
          _
        // Predicated region
        $region37: #{tpu_custom_call.1} parent=11 // pred_check
          %p388 = pneg %p232
        $region38: #{tpu_custom_call.1} parent=11 // pred_check_branch
          %390 = sbr.rel (%p388) target = $region40
        $region39: #{tpu_custom_call.1} parent=11 // pred_region
          %s392 = ssub.s32 8192, 8192
          %393 = vsyncadd [#allocation16], %s392
          %s394 = sshll.u32 [#allocation15], 4
          %s395 = int_to_ptr.vmem [resolvable:$true] %s394
          %400 = dma.hbm_to_vmem [thread:$0]  %s8, 8192, %s395, [#allocation16], 128, 128, 8
        $region40: #{tpu_custom_call.1} parent=11 // pred_fallthru
          _
        // Predicated region
        $region41: #{tpu_custom_call.1} parent=11 // pred_check
          %p401 = pneg %p253
        $region42: #{tpu_custom_call.1} parent=11 // pred_check_branch
          %403 = sbr.rel (%p401) target = $region44
        $region43: #{tpu_custom_call.1} parent=11 // pred_region
          _
        $region44: #{tpu_custom_call.1} parent=11 // pred_fallthru
          _
      $region12: #{tpu_custom_call.1} parent=5 // pred_fallthru
        _
      %p404 = scmp.lt.s32.totalorder %s33, 2
      // Predicated region
      $region45: #{tpu_custom_call.1} parent=5 // pred_check
        %p405 = pneg %p404
      $region46: #{tpu_custom_call.1} parent=5 // pred_check_branch
        %407 = sbr.rel (%p405) target = $region48
      $region47: #{tpu_custom_call.1} parent=5 // pred_region
        // Predicated region
        $region49: #{tpu_custom_call.1} parent=47 // pred_check
          %p408 = pneg %p53
        $region50: #{tpu_custom_call.1} parent=47 // pred_check_branch
          %410 = sbr.rel (%p408) target = $region52
        $region51: #{tpu_custom_call.1} parent=47 // pred_region
          %s411 = sand.u32 %s43, 1
          %s412 = scalar_lea.sflag [#allocation4], %s411
          %s413 = sand.u32 %s43, 1
          %s414 = smul.addr %s413, 16
          %s415 = scalar_lea.vmem [#allocation3], %s414
          %s417 = ssub.s32 256, 256
          %418 = vsyncadd %s412, %s417
          %s419 = smul.addr %s33, 2
          %s420 = smul.addr %s419, 128
          %s421 = scalar_lea.hbm %s0, %s420
          %s423 = sshll.u32 %s415, 4
          %s424 = int_to_ptr.vmem [resolvable:$true] %s423
          %426 = dma.hbm_to_vmem [thread:$0]  %s421, 256, %s424, %s412
        $region52: #{tpu_custom_call.1} parent=47 // pred_fallthru
          _
        // Predicated region
        $region53: #{tpu_custom_call.1} parent=47 // pred_check
          %p427 = pneg %p79
        $region54: #{tpu_custom_call.1} parent=47 // pred_check_branch
          %429 = sbr.rel (%p427) target = $region56
        $region55: #{tpu_custom_call.1} parent=47 // pred_region
          %s430 = sand.u32 %s33, 1
          %s431 = scalar_lea.sflag [#allocation7], %s430
          %s432 = sand.u32 %s69, 1
          %s433 = smul.addr %s432, 8
          %s434 = scalar_lea.vmem [#allocation6], %s433
          %s436 = ssub.s32 128, 128
          %437 = vsyncadd %s431, %s436
          %s438 = smul.addr %s33, 128
          %s439 = scalar_lea.hbm %s1, %s438
          %s441 = sshll.u32 %s434, 4
          %s442 = int_to_ptr.vmem [resolvable:$true] %s441
          %444 = dma.hbm_to_vmem [thread:$0]  %s439, 128, %s442, %s431
        $region56: #{tpu_custom_call.1} parent=47 // pred_fallthru
          _
      $region48: #{tpu_custom_call.1} parent=5 // pred_fallthru
        _
      %p445 = scmp.le.s32.totalorder 1, %s33
      %p446 = scmp.lt.s32.totalorder %s33, 3
      %p447 = pnand %p445, %p446
      %p448 = pneg %p447
      // Predicated region
      $region57: #{tpu_custom_call.1} parent=5 // pred_check
        _
      $region58: #{tpu_custom_call.1} parent=5 // pred_check_branch
        %450 = sbr.rel (%p447) target = $region60
      $region59: #{tpu_custom_call.1} parent=5 // pred_region
        %s451 = ssub.s32 %s33, 1
        %s452 = sand.u32 %s46, 1
        %s453 = scalar_lea.sflag [#allocation4], %s452
        %s454 = sand.u32 %s46, 1
        %s455 = smul.addr %s454, 16
        %s456 = scalar_lea.vmem [#allocation3], %s455
        // Predicated region
        $region61: #{tpu_custom_call.1} parent=59 // pred_check
          %p457 = pneg %p59
        $region62: #{tpu_custom_call.1} parent=59 // pred_check_branch
          %459 = sbr.rel (%p457) target = $region64
        $region63: #{tpu_custom_call.1} parent=59 // pred_region
          %460 = dma.done %s453, 256
        $region64: #{tpu_custom_call.1} parent=59 // pred_fallthru
          _
        %s461 = sand.u32 %s38, 1
        %s462 = scalar_lea.sflag [#allocation7], %s461
        %s463 = sand.u32 %s72, 1
        %s464 = smul.addr %s463, 8
        %s465 = scalar_lea.vmem [#allocation6], %s464
        // Predicated region
        $region65: #{tpu_custom_call.1} parent=59 // pred_check
          %p466 = pneg %p85
        $region66: #{tpu_custom_call.1} parent=59 // pred_check_branch
          %468 = sbr.rel (%p466) target = $region68
        $region67: #{tpu_custom_call.1} parent=59 // pred_region
          %469 = dma.done %s462, 128
        $region68: #{tpu_custom_call.1} parent=59 // pred_fallthru
          _
        // Predicated region
        $region69: #{tpu_custom_call.1} parent=59 // pred_check
          %p470 = pneg %p106
        $region70: #{tpu_custom_call.1} parent=59 // pred_check_branch
          %472 = sbr.rel (%p470) target = $region72
        $region71: #{tpu_custom_call.1} parent=59 // pred_region
          %473 = dma.done [#allocation7], 8192
        $region72: #{tpu_custom_call.1} parent=59 // pred_fallthru
          _
        // Predicated region
        $region73: #{tpu_custom_call.1} parent=59 // pred_check
          %p474 = pneg %p127
        $region74: #{tpu_custom_call.1} parent=59 // pred_check_branch
          %476 = sbr.rel (%p474) target = $region76
        $region75: #{tpu_custom_call.1} parent=59 // pred_region
          %477 = dma.done [#allocation10], 8192
        $region76: #{tpu_custom_call.1} parent=59 // pred_fallthru
          _
        // Predicated region
        $region77: #{tpu_custom_call.1} parent=59 // pred_check
          %p478 = pneg %p148
        $region78: #{tpu_custom_call.1} parent=59 // pred_check_branch
          %480 = sbr.rel (%p478) target = $region80
        $region79: #{tpu_custom_call.1} parent=59 // pred_region
          %481 = dma.done [#allocation10], 8192
        $region80: #{tpu_custom_call.1} parent=59 // pred_fallthru
          _
        // Predicated region
        $region81: #{tpu_custom_call.1} parent=59 // pred_check
          %p482 = pneg %p169
        $region82: #{tpu_custom_call.1} parent=59 // pred_check_branch
          %484 = sbr.rel (%p482) target = $region84
        $region83: #{tpu_custom_call.1} parent=59 // pred_region
          %485 = dma.done [#allocation13], 8192
        $region84: #{tpu_custom_call.1} parent=59 // pred_fallthru
          _
        // Predicated region
        $region85: #{tpu_custom_call.1} parent=59 // pred_check
          %p486 = pneg %p190
        $region86: #{tpu_custom_call.1} parent=59 // pred_check_branch
          %488 = sbr.rel (%p486) target = $region88
        $region87: #{tpu_custom_call.1} parent=59 // pred_region
          %489 = dma.done [#allocation13], 8192
        $region88: #{tpu_custom_call.1} parent=59 // pred_fallthru
          _
        // Predicated region
        $region89: #{tpu_custom_call.1} parent=59 // pred_check
          %p490 = pneg %p232
        $region90: #{tpu_custom_call.1} parent=59 // pred_check_branch
          %492 = sbr.rel (%p490) target = $region92
        $region91: #{tpu_custom_call.1} parent=59 // pred_region
          %493 = dma.done [#allocation16], 8192
        $region92: #{tpu_custom_call.1} parent=59 // pred_fallthru
          _
        %s494 = sand.u32 %s46, 1
        %s495 = scalar_lea.sflag [#allocation4], %s494
        %s496 = sand.u32 %s46, 1
        %s497 = smul.addr %s496, 16
        %s498 = scalar_lea.vmem [#allocation3], %s497
        %p499 = pneg %p59
        %p500 = pneg %p56
        %s501 = sand.u32 %s38, 1
        %s502 = scalar_lea.sflag [#allocation7], %s501
        %s503 = sand.u32 %s72, 1
        %s504 = smul.addr %s503, 8
        %s505 = scalar_lea.vmem [#allocation6], %s504
        %p506 = pneg %p85
        %p507 = pneg %p82
        %p508 = pneg %p106
        %p509 = pneg %p103
        %p510 = pneg %p127
        %p511 = pneg %p124
        %p512 = pneg %p148
        %p513 = pneg %p145
        %p514 = pneg %p169
        %p515 = pneg %p166
        %p516 = pneg %p190
        %p517 = pneg %p187
        %p518 = pneg %p211
        %p519 = pneg %p208
        %p520 = pneg %p232
        %p521 = pneg %p229
        %p522 = pneg %p253
        %p523 = pneg %p250
        %p524 = pneg %p279
        %p525 = pneg %p276
        %s526 = sand.u32 %s266, 1
        %s527 = scalar_lea.sflag [#allocation5], %s526
        %s528 = sand.u32 %s266, 1
        %s529 = smul.addr %s528, 16
        %s530 = scalar_lea.vmem [#allocation17], %s529
        %p531 = pneg %p305
        %p532 = pneg %p302
        %s533 = sand.u32 %s292, 1
        %s534 = scalar_lea.sflag [#allocation19], %s533
        %s535 = sand.u32 %s292, 1
        %s536 = smul.addr %s535, 64
        %s537 = scalar_lea.vmem [#allocation18], %s536
        %v538 = vld [vmem:[%s456] sm:$0xff]
        %v539 = vld [vmem:[%s456 + $0x8] sm:$0xff]
        %v540 = vpack.c.bf16 %v538, %v538
        %v541 = vpack.c.bf16 %v539, %v539
        %v542 = vld [vmem:[#allocation8] sm:$0xff]
        %v543 = vld [vmem:[#allocation8 + $0x8] sm:$0xff]
        %v544 = vld [vmem:[#allocation8 + $0x10] sm:$0xff]
        %v545 = vld [vmem:[#allocation8 + $0x18] sm:$0xff]
        %v546 = vld [vmem:[#allocation8 + $0x20] sm:$0xff]
        %v547 = vld [vmem:[#allocation8 + $0x28] sm:$0xff]
        %v548 = vld [vmem:[#allocation8 + $0x30] sm:$0xff]
        %v549 = vld [vmem:[#allocation8 + $0x38] sm:$0xff]
        %v550 = vld [vmem:[#allocation8 + $0x40] sm:$0xff]
        %v551 = vld [vmem:[#allocation8 + $0x48] sm:$0xff]
        %v552 = vld [vmem:[#allocation8 + $0x50] sm:$0xff]
        %v553 = vld [vmem:[#allocation8 + $0x58] sm:$0xff]
        %v554 = vld [vmem:[#allocation8 + $0x60] sm:$0xff]
        %v555 = vld [vmem:[#allocation8 + $0x68] sm:$0xff]
        %v556 = vld [vmem:[#allocation8 + $0x70] sm:$0xff]
        %v557 = vld [vmem:[#allocation8 + $0x78] sm:$0xff]
        %v558 = vld [vmem:[#allocation8 + $0x80] sm:$0xff]
        %v559 = vld [vmem:[#allocation8 + $0x88] sm:$0xff]
        %v560 = vld [vmem:[#allocation8 + $0x90] sm:$0xff]
        %v561 = vld [vmem:[#allocation8 + $0x98] sm:$0xff]
        %v562 = vld [vmem:[#allocation8 + $0xa0] sm:$0xff]
        %v563 = vld [vmem:[#allocation8 + $0xa8] sm:$0xff]
        %v564 = vld [vmem:[#allocation8 + $0xb0] sm:$0xff]
        %v565 = vld [vmem:[#allocation8 + $0xb8] sm:$0xff]
        %v566 = vld [vmem:[#allocation8 + $0xc0] sm:$0xff]
        %v567 = vld [vmem:[#allocation8 + $0xc8] sm:$0xff]
        %v568 = vld [vmem:[#allocation8 + $0xd0] sm:$0xff]
        %v569 = vld [vmem:[#allocation8 + $0xd8] sm:$0xff]
        %v570 = vld [vmem:[#allocation8 + $0xe0] sm:$0xff]
        %v571 = vld [vmem:[#allocation8 + $0xe8] sm:$0xff]
        %v572 = vld [vmem:[#allocation8 + $0xf0] sm:$0xff]
        %v573 = vld [vmem:[#allocation8 + $0xf8] sm:$0xff]
        %v574 = vld [vmem:[#allocation8 + $0x100] sm:$0xff]
        %v575 = vld [vmem:[#allocation8 + $0x108] sm:$0xff]
        %v576 = vld [vmem:[#allocation8 + $0x110] sm:$0xff]
        %v577 = vld [vmem:[#allocation8 + $0x118] sm:$0xff]
        %v578 = vld [vmem:[#allocation8 + $0x120] sm:$0xff]
        %v579 = vld [vmem:[#allocation8 + $0x128] sm:$0xff]
        %v580 = vld [vmem:[#allocation8 + $0x130] sm:$0xff]
        %v581 = vld [vmem:[#allocation8 + $0x138] sm:$0xff]
        %v582 = vld [vmem:[#allocation8 + $0x140] sm:$0xff]
        %v583 = vld [vmem:[#allocation8 + $0x148] sm:$0xff]
        %v584 = vld [vmem:[#allocation8 + $0x150] sm:$0xff]
        %v585 = vld [vmem:[#allocation8 + $0x158] sm:$0xff]
        %v586 = vld [vmem:[#allocation8 + $0x160] sm:$0xff]
        %v587 = vld [vmem:[#allocation8 + $0x168] sm:$0xff]
        %v588 = vld [vmem:[#allocation8 + $0x170] sm:$0xff]
        %v589 = vld [vmem:[#allocation8 + $0x178] sm:$0xff]
        %v590 = vld [vmem:[#allocation8 + $0x180] sm:$0xff]
        %v591 = vld [vmem:[#allocation8 + $0x188] sm:$0xff]
        %v592 = vld [vmem:[#allocation8 + $0x190] sm:$0xff]
        %v593 = vld [vmem:[#allocation8 + $0x198] sm:$0xff]
        %v594 = vld [vmem:[#allocation8 + $0x1a0] sm:$0xff]
        %v595 = vld [vmem:[#allocation8 + $0x1a8] sm:$0xff]
        %v596 = vld [vmem:[#allocation8 + $0x1b0] sm:$0xff]
        %v597 = vld [vmem:[#allocation8 + $0x1b8] sm:$0xff]
        %v598 = vld [vmem:[#allocation8 + $0x1c0] sm:$0xff]
        %v599 = vld [vmem:[#allocation8 + $0x1c8] sm:$0xff]
        %v600 = vld [vmem:[#allocation8 + $0x1d0] sm:$0xff]
        %v601 = vld [vmem:[#allocation8 + $0x1d8] sm:$0xff]
        %v602 = vld [vmem:[#allocation8 + $0x1e0] sm:$0xff]
        %v603 = vld [vmem:[#allocation8 + $0x1e8] sm:$0xff]
        %v604 = vld [vmem:[#allocation8 + $0x1f0] sm:$0xff]
        %v605 = vld [vmem:[#allocation8 + $0x1f8] sm:$0xff]
        %v670 = vunpack.c.l.b16 %v542
        %v671 = vunpack.c.h.b16 %v542
        %v672 = vunpack.c.l.b16 %v543
        %v673 = vunpack.c.h.b16 %v543
        %v674 = vunpack.c.l.b16 %v544
        %v675 = vunpack.c.h.b16 %v544
        %v676 = vunpack.c.l.b16 %v545
        %v677 = vunpack.c.h.b16 %v545
        %v678 = vunpack.c.l.b16 %v546
        %v679 = vunpack.c.h.b16 %v546
        %v680 = vunpack.c.l.b16 %v547
        %v681 = vunpack.c.h.b16 %v547
        %v682 = vunpack.c.l.b16 %v548
        %v683 = vunpack.c.h.b16 %v548
        %v684 = vunpack.c.l.b16 %v549
        %v685 = vunpack.c.h.b16 %v549
        %v686 = vunpack.c.l.b16 %v550
        %v687 = vunpack.c.h.b16 %v550
        %v688 = vunpack.c.l.b16 %v551
        %v689 = vunpack.c.h.b16 %v551
        %v690 = vunpack.c.l.b16 %v552
        %v691 = vunpack.c.h.b16 %v552
        %v692 = vunpack.c.l.b16 %v553
        %v693 = vunpack.c.h.b16 %v553
        %v694 = vunpack.c.l.b16 %v554
        %v695 = vunpack.c.h.b16 %v554
        %v696 = vunpack.c.l.b16 %v555
        %v697 = vunpack.c.h.b16 %v555
        %v698 = vunpack.c.l.b16 %v556
        %v699 = vunpack.c.h.b16 %v556
        %v700 = vunpack.c.l.b16 %v557
        %v701 = vunpack.c.h.b16 %v557
        %v702 = vunpack.c.l.b16 %v558
        %v703 = vunpack.c.h.b16 %v558
        %v704 = vunpack.c.l.b16 %v559
        %v705 = vunpack.c.h.b16 %v559
        %v706 = vunpack.c.l.b16 %v560
        %v707 = vunpack.c.h.b16 %v560
        %v708 = vunpack.c.l.b16 %v561
        %v709 = vunpack.c.h.b16 %v561
        %v710 = vunpack.c.l.b16 %v562
        %v711 = vunpack.c.h.b16 %v562
        %v712 = vunpack.c.l.b16 %v563
        %v713 = vunpack.c.h.b16 %v563
        %v714 = vunpack.c.l.b16 %v564
        %v715 = vunpack.c.h.b16 %v564
        %v716 = vunpack.c.l.b16 %v565
        %v717 = vunpack.c.h.b16 %v565
        %v718 = vunpack.c.l.b16 %v566
        %v719 = vunpack.c.h.b16 %v566
        %v720 = vunpack.c.l.b16 %v567
        %v721 = vunpack.c.h.b16 %v567
        %v722 = vunpack.c.l.b16 %v568
        %v723 = vunpack.c.h.b16 %v568
        %v724 = vunpack.c.l.b16 %v569
        %v725 = vunpack.c.h.b16 %v569
        %v726 = vunpack.c.l.b16 %v570
        %v727 = vunpack.c.h.b16 %v570
        %v728 = vunpack.c.l.b16 %v571
        %v729 = vunpack.c.h.b16 %v571
        %v730 = vunpack.c.l.b16 %v572
        %v731 = vunpack.c.h.b16 %v572
        %v732 = vunpack.c.l.b16 %v573
        %v733 = vunpack.c.h.b16 %v573
        %v734 = vunpack.c.l.b16 %v574
        %v735 = vunpack.c.h.b16 %v574
        %v736 = vunpack.c.l.b16 %v575
        %v737 = vunpack.c.h.b16 %v575
        %v738 = vunpack.c.l.b16 %v576
        %v739 = vunpack.c.h.b16 %v576
        %v740 = vunpack.c.l.b16 %v577
        %v741 = vunpack.c.h.b16 %v577
        %v742 = vunpack.c.l.b16 %v578
        %v743 = vunpack.c.h.b16 %v578
        %v744 = vunpack.c.l.b16 %v579
        %v745 = vunpack.c.h.b16 %v579
        %v746 = vunpack.c.l.b16 %v580
        %v747 = vunpack.c.h.b16 %v580
        %v748 = vunpack.c.l.b16 %v581
        %v749 = vunpack.c.h.b16 %v581
        %v750 = vunpack.c.l.b16 %v582
        %v751 = vunpack.c.h.b16 %v582
        %v752 = vunpack.c.l.b16 %v583
        %v753 = vunpack.c.h.b16 %v583
        %v754 = vunpack.c.l.b16 %v584
        %v755 = vunpack.c.h.b16 %v584
        %v756 = vunpack.c.l.b16 %v585
        %v757 = vunpack.c.h.b16 %v585
        %v758 = vunpack.c.l.b16 %v586
        %v759 = vunpack.c.h.b16 %v586
        %v760 = vunpack.c.l.b16 %v587
        %v761 = vunpack.c.h.b16 %v587
        %v762 = vunpack.c.l.b16 %v588
        %v763 = vunpack.c.h.b16 %v588
        %v764 = vunpack.c.l.b16 %v589
        %v765 = vunpack.c.h.b16 %v589
        %v766 = vunpack.c.l.b16 %v590
        %v767 = vunpack.c.h.b16 %v590
        %v768 = vunpack.c.l.b16 %v591
        %v769 = vunpack.c.h.b16 %v591
        %v770 = vunpack.c.l.b16 %v592
        %v771 = vunpack.c.h.b16 %v592
        %v772 = vunpack.c.l.b16 %v593
        %v773 = vunpack.c.h.b16 %v593
        %v774 = vunpack.c.l.b16 %v594
        %v775 = vunpack.c.h.b16 %v594
        %v776 = vunpack.c.l.b16 %v595
        %v777 = vunpack.c.h.b16 %v595
        %v778 = vunpack.c.l.b16 %v596
        %v779 = vunpack.c.h.b16 %v596
        %v780 = vunpack.c.l.b16 %v597
        %v781 = vunpack.c.h.b16 %v597
        %v782 = vunpack.c.l.b16 %v598
        %v783 = vunpack.c.h.b16 %v598
        %v784 = vunpack.c.l.b16 %v599
        %v785 = vunpack.c.h.b16 %v599
        %v786 = vunpack.c.l.b16 %v600
        %v787 = vunpack.c.h.b16 %v600
        %v788 = vunpack.c.l.b16 %v601
        %v789 = vunpack.c.h.b16 %v601
        %v790 = vunpack.c.l.b16 %v602
        %v791 = vunpack.c.h.b16 %v602
        %v792 = vunpack.c.l.b16 %v603
        %v793 = vunpack.c.h.b16 %v603
        %v794 = vunpack.c.l.b16 %v604
        %v795 = vunpack.c.h.b16 %v604
        %v796 = vunpack.c.l.b16 %v605
        %v797 = vunpack.c.h.b16 %v605
        %v798 = vpack.c.b16 %v674, %v670
        %v799 = vpack.c.b16 %v675, %v671
        %v800 = vpack.c.b16 %v676, %v672
        %v801 = vpack.c.b16 %v677, %v673
        %v802 = vpack.c.b16 %v682, %v678
        %v803 = vpack.c.b16 %v683, %v679
        %v804 = vpack.c.b16 %v684, %v680
        %v805 = vpack.c.b16 %v685, %v681
        %v806 = vpack.c.b16 %v690, %v686
        %v807 = vpack.c.b16 %v691, %v687
        %v808 = vpack.c.b16 %v692, %v688
        %v809 = vpack.c.b16 %v693, %v689
        %v810 = vpack.c.b16 %v698, %v694
        %v811 = vpack.c.b16 %v699, %v695
        %v812 = vpack.c.b16 %v700, %v696
        %v813 = vpack.c.b16 %v701, %v697
        %v814 = vpack.c.b16 %v706, %v702
        %v815 = vpack.c.b16 %v707, %v703
        %v816 = vpack.c.b16 %v708, %v704
        %v817 = vpack.c.b16 %v709, %v705
        %v818 = vpack.c.b16 %v714, %v710
        %v819 = vpack.c.b16 %v715, %v711
        %v820 = vpack.c.b16 %v716, %v712
        %v821 = vpack.c.b16 %v717, %v713
        %v822 = vpack.c.b16 %v722, %v718
        %v823 = vpack.c.b16 %v723, %v719
        %v824 = vpack.c.b16 %v724, %v720
        %v825 = vpack.c.b16 %v725, %v721
        %v826 = vpack.c.b16 %v730, %v726
        %v827 = vpack.c.b16 %v731, %v727
        %v828 = vpack.c.b16 %v732, %v728
        %v829 = vpack.c.b16 %v733, %v729
        %v830 = vpack.c.b16 %v738, %v734
        %v831 = vpack.c.b16 %v739, %v735
        %v832 = vpack.c.b16 %v740, %v736
        %v833 = vpack.c.b16 %v741, %v737
        %v834 = vpack.c.b16 %v746, %v742
        %v835 = vpack.c.b16 %v747, %v743
        %v836 = vpack.c.b16 %v748, %v744
        %v837 = vpack.c.b16 %v749, %v745
        %v838 = vpack.c.b16 %v754, %v750
        %v839 = vpack.c.b16 %v755, %v751
        %v840 = vpack.c.b16 %v756, %v752
        %v841 = vpack.c.b16 %v757, %v753
        %v842 = vpack.c.b16 %v762, %v758
        %v843 = vpack.c.b16 %v763, %v759
        %v844 = vpack.c.b16 %v764, %v760
        %v845 = vpack.c.b16 %v765, %v761
        %v846 = vpack.c.b16 %v770, %v766
        %v847 = vpack.c.b16 %v771, %v767
        %v848 = vpack.c.b16 %v772, %v768
        %v849 = vpack.c.b16 %v773, %v769
        %v850 = vpack.c.b16 %v778, %v774
        %v851 = vpack.c.b16 %v779, %v775
        %v852 = vpack.c.b16 %v780, %v776
        %v853 = vpack.c.b16 %v781, %v777
        %v854 = vpack.c.b16 %v786, %v782
        %v855 = vpack.c.b16 %v787, %v783
        %v856 = vpack.c.b16 %v788, %v784
        %v857 = vpack.c.b16 %v789, %v785
        %v858 = vpack.c.b16 %v794, %v790
        %v859 = vpack.c.b16 %v795, %v791
        %v860 = vpack.c.b16 %v796, %v792
        %v861 = vpack.c.b16 %v797, %v793
        %926 = vmatprep.subr.bf16.mxu0 %v799
        %927 = vmatpush1.bf16.msra.mxu0 %v798
        %928 = vmatprep.subr.bf16.mxu0 %v803
        %929 = vmatpush1.bf16.msra.mxu0 %v802
        %930 = vmatprep.subr.bf16.mxu0 %v807
        %931 = vmatpush1.bf16.msra.mxu0 %v806
        %932 = vmatprep.subr.bf16.mxu0 %v811
        %933 = vmatpush1.bf16.msra.mxu0 %v810
        %934 = vmatprep.subr.bf16.mxu0 %v815
        %935 = vmatpush1.bf16.msra.mxu0 %v814
        %936 = vmatprep.subr.bf16.mxu0 %v819
        %937 = vmatpush1.bf16.msra.mxu0 %v818
        %938 = vmatprep.subr.bf16.mxu0 %v823
        %939 = vmatpush1.bf16.msra.mxu0 %v822
        %940 = vmatprep.subr.bf16.mxu0 %v827
        %941 = vmatpush1.bf16.msra.mxu0 %v826
        %942 = vmatprep.subr.bf16.mxu0 %v831
        %943 = vmatpush1.bf16.msra.mxu0 %v830
        %944 = vmatprep.subr.bf16.mxu0 %v835
        %945 = vmatpush1.bf16.msra.mxu0 %v834
        %946 = vmatprep.subr.bf16.mxu0 %v839
        %947 = vmatpush1.bf16.msra.mxu0 %v838
        %948 = vmatprep.subr.bf16.mxu0 %v843
        %949 = vmatpush1.bf16.msra.mxu0 %v842
        %950 = vmatprep.subr.bf16.mxu0 %v847
        %951 = vmatpush1.bf16.msra.mxu0 %v846
        %952 = vmatprep.subr.bf16.mxu0 %v851
        %953 = vmatpush1.bf16.msra.mxu0 %v850
        %954 = vmatprep.subr.bf16.mxu0 %v855
        %955 = vmatpush1.bf16.msra.mxu0 %v854
        %956 = vmatprep.subr.bf16.mxu0 %v859
        %957 = vmatpush1.bf16.msra.mxu0 %v858
        %958 = vmatprep.mubr.bf16.mxu0 %v541
        %959 = vmatmul.mubr.bf16.gmra.mrb[0].mxu0 %v540
        %v960 = vpop.f32.mrb[0].mxu0
        %v961 = vadd.f32 0.0, %v960
        %v962 = vpop.f32.mrb[0].mxu0
        %v963 = vadd.f32 0.0, %v962
        %v964 = vpop.f32.mrb[0].mxu0
        %v965 = vpop.f32.mrb[0].mxu0
        %966 = vdwg.mxu0
        %967 = vmatprep.subr.bf16.mxu0 %v801
        %968 = vmatpush1.bf16.msra.mxu0 %v800
        %969 = vmatprep.subr.bf16.mxu0 %v805
        %970 = vmatpush1.bf16.msra.mxu0 %v804
        %971 = vmatprep.subr.bf16.mxu0 %v809
        %972 = vmatpush1.bf16.msra.mxu0 %v808
        %973 = vmatprep.subr.bf16.mxu0 %v813
        %974 = vmatpush1.bf16.msra.mxu0 %v812
        %975 = vmatprep.subr.bf16.mxu0 %v817
        %976 = vmatpush1.bf16.msra.mxu0 %v816
        %977 = vmatprep.subr.bf16.mxu0 %v821
        %978 = vmatpush1.bf16.msra.mxu0 %v820
        %979 = vmatprep.subr.bf16.mxu0 %v825
        %980 = vmatpush1.bf16.msra.mxu0 %v824
        %981 = vmatprep.subr.bf16.mxu0 %v829
        %982 = vmatpush1.bf16.msra.mxu0 %v828
        %983 = vmatprep.subr.bf16.mxu0 %v833
        %984 = vmatpush1.bf16.msra.mxu0 %v832
        %985 = vmatprep.subr.bf16.mxu0 %v837
        %986 = vmatpush1.bf16.msra.mxu0 %v836
        %987 = vmatprep.subr.bf16.mxu0 %v841
        %988 = vmatpush1.bf16.msra.mxu0 %v840
        %989 = vmatprep.subr.bf16.mxu0 %v845
        %990 = vmatpush1.bf16.msra.mxu0 %v844
        %991 = vmatprep.subr.bf16.mxu0 %v849
        %992 = vmatpush1.bf16.msra.mxu0 %v848
        %993 = vmatprep.subr.bf16.mxu0 %v853
        %994 = vmatpush1.bf16.msra.mxu0 %v852
        %995 = vmatprep.subr.bf16.mxu0 %v857
        %996 = vmatpush1.bf16.msra.mxu0 %v856
        %997 = vmatprep.subr.bf16.mxu0 %v861
        %998 = vmatpush1.bf16.msra.mxu0 %v860
        %999 = vmatprep.mubr.bf16.mxu0 %v541
        %1000 = vmatmul.mubr.bf16.gmra.mrb[0].mxu0 %v540
        %v1001 = vpop.f32.mrb[0].mxu0
        %v1002 = vadd.f32 0.0, %v1001
        %v1003 = vpop.f32.mrb[0].mxu0
        %v1004 = vadd.f32 0.0, %v1003
        %v1005 = vpop.f32.mrb[0].mxu0
        %v1006 = vpop.f32.mrb[0].mxu0
        %1007 = vdwg.mxu0
        %v1008 = vld [vmem:[#allocation9] sm:$0xff]
        %v1009 = vld [vmem:[#allocation9 + $0x8] sm:$0xff]
        %v1010 = vld [vmem:[#allocation9 + $0x10] sm:$0xff]
        %v1011 = vld [vmem:[#allocation9 + $0x18] sm:$0xff]
        %v1012 = vld [vmem:[#allocation9 + $0x20] sm:$0xff]
        %v1013 = vld [vmem:[#allocation9 + $0x28] sm:$0xff]
        %v1014 = vld [vmem:[#allocation9 + $0x30] sm:$0xff]
        %v1015 = vld [vmem:[#allocation9 + $0x38] sm:$0xff]
        %v1016 = vld [vmem:[#allocation9 + $0x40] sm:$0xff]
        %v1017 = vld [vmem:[#allocation9 + $0x48] sm:$0xff]
        %v1018 = vld [vmem:[#allocation9 + $0x50] sm:$0xff]
        %v1019 = vld [vmem:[#allocation9 + $0x58] sm:$0xff]
        %v1020 = vld [vmem:[#allocation9 + $0x60] sm:$0xff]
        %v1021 = vld [vmem:[#allocation9 + $0x68] sm:$0xff]
        %v1022 = vld [vmem:[#allocation9 + $0x70] sm:$0xff]
        %v1023 = vld [vmem:[#allocation9 + $0x78] sm:$0xff]
        %v1024 = vld [vmem:[#allocation9 + $0x80] sm:$0xff]
        %v1025 = vld [vmem:[#allocation9 + $0x88] sm:$0xff]
        %v1026 = vld [vmem:[#allocation9 + $0x90] sm:$0xff]
        %v1027 = vld [vmem:[#allocation9 + $0x98] sm:$0xff]
        %v1028 = vld [vmem:[#allocation9 + $0xa0] sm:$0xff]
        %v1029 = vld [vmem:[#allocation9 + $0xa8] sm:$0xff]
        %v1030 = vld [vmem:[#allocation9 + $0xb0] sm:$0xff]
        %v1031 = vld [vmem:[#allocation9 + $0xb8] sm:$0xff]
        %v1032 = vld [vmem:[#allocation9 + $0xc0] sm:$0xff]
        %v1033 = vld [vmem:[#allocation9 + $0xc8] sm:$0xff]
        %v1034 = vld [vmem:[#allocation9 + $0xd0] sm:$0xff]
        %v1035 = vld [vmem:[#allocation9 + $0xd8] sm:$0xff]
        %v1036 = vld [vmem:[#allocation9 + $0xe0] sm:$0xff]
        %v1037 = vld [vmem:[#allocation9 + $0xe8] sm:$0xff]
        %v1038 = vld [vmem:[#allocation9 + $0xf0] sm:$0xff]
        %v1039 = vld [vmem:[#allocation9 + $0xf8] sm:$0xff]
        %v1040 = vld [vmem:[#allocation9 + $0x100] sm:$0xff]
        %v1041 = vld [vmem:[#allocation9 + $0x108] sm:$0xff]
        %v1042 = vld [vmem:[#allocation9 + $0x110] sm:$0xff]
        %v1043 = vld [vmem:[#allocation9 + $0x118] sm:$0xff]
        %v1044 = vld [vmem:[#allocation9 + $0x120] sm:$0xff]
        %v1045 = vld [vmem:[#allocation9 + $0x128] sm:$0xff]
        %v1046 = vld [vmem:[#allocation9 + $0x130] sm:$0xff]
        %v1047 = vld [vmem:[#allocation9 + $0x138] sm:$0xff]
        %v1048 = vld [vmem:[#allocation9 + $0x140] sm:$0xff]
        %v1049 = vld [vmem:[#allocation9 + $0x148] sm:$0xff]
        %v1050 = vld [vmem:[#allocation9 + $0x150] sm:$0xff]
        %v1051 = vld [vmem:[#allocation9 + $0x158] sm:$0xff]
        %v1052 = vld [vmem:[#allocation9 + $0x160] sm:$0xff]
        %v1053 = vld [vmem:[#allocation9 + $0x168] sm:$0xff]
        %v1054 = vld [vmem:[#allocation9 + $0x170] sm:$0xff]
        %v1055 = vld [vmem:[#allocation9 + $0x178] sm:$0xff]
        %v1056 = vld [vmem:[#allocation9 + $0x180] sm:$0xff]
        %v1057 = vld [vmem:[#allocation9 + $0x188] sm:$0xff]
        %v1058 = vld [vmem:[#allocation9 + $0x190] sm:$0xff]
        %v1059 = vld [vmem:[#allocation9 + $0x198] sm:$0xff]
        %v1060 = vld [vmem:[#allocation9 + $0x1a0] sm:$0xff]
        %v1061 = vld [vmem:[#allocation9 + $0x1a8] sm:$0xff]
        %v1062 = vld [vmem:[#allocation9 + $0x1b0] sm:$0xff]
        %v1063 = vld [vmem:[#allocation9 + $0x1b8] sm:$0xff]
        %v1064 = vld [vmem:[#allocation9 + $0x1c0] sm:$0xff]
        %v1065 = vld [vmem:[#allocation9 + $0x1c8] sm:$0xff]
        %v1066 = vld [vmem:[#allocation9 + $0x1d0] sm:$0xff]
        %v1067 = vld [vmem:[#allocation9 + $0x1d8] sm:$0xff]
        %v1068 = vld [vmem:[#allocation9 + $0x1e0] sm:$0xff]
        %v1069 = vld [vmem:[#allocation9 + $0x1e8] sm:$0xff]
        %v1070 = vld [vmem:[#allocation9 + $0x1f0] sm:$0xff]
        %v1071 = vld [vmem:[#allocation9 + $0x1f8] sm:$0xff]
        %v1136 = vunpack.c.l.b16 %v1008
        %v1137 = vunpack.c.h.b16 %v1008
        %v1138 = vunpack.c.l.b16 %v1009
        %v1139 = vunpack.c.h.b16 %v1009
        %v1140 = vunpack.c.l.b16 %v1010
        %v1141 = vunpack.c.h.b16 %v1010
        %v1142 = vunpack.c.l.b16 %v1011
        %v1143 = vunpack.c.h.b16 %v1011
        %v1144 = vunpack.c.l.b16 %v1012
        %v1145 = vunpack.c.h.b16 %v1012
        %v1146 = vunpack.c.l.b16 %v1013
        %v1147 = vunpack.c.h.b16 %v1013
        %v1148 = vunpack.c.l.b16 %v1014
        %v1149 = vunpack.c.h.b16 %v1014
        %v1150 = vunpack.c.l.b16 %v1015
        %v1151 = vunpack.c.h.b16 %v1015
        %v1152 = vunpack.c.l.b16 %v1016
        %v1153 = vunpack.c.h.b16 %v1016
        %v1154 = vunpack.c.l.b16 %v1017
        %v1155 = vunpack.c.h.b16 %v1017
        %v1156 = vunpack.c.l.b16 %v1018
        %v1157 = vunpack.c.h.b16 %v1018
        %v1158 = vunpack.c.l.b16 %v1019
        %v1159 = vunpack.c.h.b16 %v1019
        %v1160 = vunpack.c.l.b16 %v1020
        %v1161 = vunpack.c.h.b16 %v1020
        %v1162 = vunpack.c.l.b16 %v1021
        %v1163 = vunpack.c.h.b16 %v1021
        %v1164 = vunpack.c.l.b16 %v1022
        %v1165 = vunpack.c.h.b16 %v1022
        %v1166 = vunpack.c.l.b16 %v1023
        %v1167 = vunpack.c.h.b16 %v1023
        %v1168 = vunpack.c.l.b16 %v1024
        %v1169 = vunpack.c.h.b16 %v1024
        %v1170 = vunpack.c.l.b16 %v1025
        %v1171 = vunpack.c.h.b16 %v1025
        %v1172 = vunpack.c.l.b16 %v1026
        %v1173 = vunpack.c.h.b16 %v1026
        %v1174 = vunpack.c.l.b16 %v1027
        %v1175 = vunpack.c.h.b16 %v1027
        %v1176 = vunpack.c.l.b16 %v1028
        %v1177 = vunpack.c.h.b16 %v1028
        %v1178 = vunpack.c.l.b16 %v1029
        %v1179 = vunpack.c.h.b16 %v1029
        %v1180 = vunpack.c.l.b16 %v1030
        %v1181 = vunpack.c.h.b16 %v1030
        %v1182 = vunpack.c.l.b16 %v1031
        %v1183 = vunpack.c.h.b16 %v1031
        %v1184 = vunpack.c.l.b16 %v1032
        %v1185 = vunpack.c.h.b16 %v1032
        %v1186 = vunpack.c.l.b16 %v1033
        %v1187 = vunpack.c.h.b16 %v1033
        %v1188 = vunpack.c.l.b16 %v1034
        %v1189 = vunpack.c.h.b16 %v1034
        %v1190 = vunpack.c.l.b16 %v1035
        %v1191 = vunpack.c.h.b16 %v1035
        %v1192 = vunpack.c.l.b16 %v1036
        %v1193 = vunpack.c.h.b16 %v1036
        %v1194 = vunpack.c.l.b16 %v1037
        %v1195 = vunpack.c.h.b16 %v1037
        %v1196 = vunpack.c.l.b16 %v1038
        %v1197 = vunpack.c.h.b16 %v1038
        %v1198 = vunpack.c.l.b16 %v1039
        %v1199 = vunpack.c.h.b16 %v1039
        %v1200 = vunpack.c.l.b16 %v1040
        %v1201 = vunpack.c.h.b16 %v1040
        %v1202 = vunpack.c.l.b16 %v1041
        %v1203 = vunpack.c.h.b16 %v1041
        %v1204 = vunpack.c.l.b16 %v1042
        %v1205 = vunpack.c.h.b16 %v1042
        %v1206 = vunpack.c.l.b16 %v1043
        %v1207 = vunpack.c.h.b16 %v1043
        %v1208 = vunpack.c.l.b16 %v1044
        %v1209 = vunpack.c.h.b16 %v1044
        %v1210 = vunpack.c.l.b16 %v1045
        %v1211 = vunpack.c.h.b16 %v1045
        %v1212 = vunpack.c.l.b16 %v1046
        %v1213 = vunpack.c.h.b16 %v1046
        %v1214 = vunpack.c.l.b16 %v1047
        %v1215 = vunpack.c.h.b16 %v1047
        %v1216 = vunpack.c.l.b16 %v1048
        %v1217 = vunpack.c.h.b16 %v1048
        %v1218 = vunpack.c.l.b16 %v1049
        %v1219 = vunpack.c.h.b16 %v1049
        %v1220 = vunpack.c.l.b16 %v1050
        %v1221 = vunpack.c.h.b16 %v1050
        %v1222 = vunpack.c.l.b16 %v1051
        %v1223 = vunpack.c.h.b16 %v1051
        %v1224 = vunpack.c.l.b16 %v1052
        %v1225 = vunpack.c.h.b16 %v1052
        %v1226 = vunpack.c.l.b16 %v1053
        %v1227 = vunpack.c.h.b16 %v1053
        %v1228 = vunpack.c.l.b16 %v1054
        %v1229 = vunpack.c.h.b16 %v1054
        %v1230 = vunpack.c.l.b16 %v1055
        %v1231 = vunpack.c.h.b16 %v1055
        %v1232 = vunpack.c.l.b16 %v1056
        %v1233 = vunpack.c.h.b16 %v1056
        %v1234 = vunpack.c.l.b16 %v1057
        %v1235 = vunpack.c.h.b16 %v1057
        %v1236 = vunpack.c.l.b16 %v1058
        %v1237 = vunpack.c.h.b16 %v1058
        %v1238 = vunpack.c.l.b16 %v1059
        %v1239 = vunpack.c.h.b16 %v1059
        %v1240 = vunpack.c.l.b16 %v1060
        %v1241 = vunpack.c.h.b16 %v1060
        %v1242 = vunpack.c.l.b16 %v1061
        %v1243 = vunpack.c.h.b16 %v1061
        %v1244 = vunpack.c.l.b16 %v1062
        %v1245 = vunpack.c.h.b16 %v1062
        %v1246 = vunpack.c.l.b16 %v1063
        %v1247 = vunpack.c.h.b16 %v1063
        %v1248 = vunpack.c.l.b16 %v1064
        %v1249 = vunpack.c.h.b16 %v1064
        %v1250 = vunpack.c.l.b16 %v1065
        %v1251 = vunpack.c.h.b16 %v1065
        %v1252 = vunpack.c.l.b16 %v1066
        %v1253 = vunpack.c.h.b16 %v1066
        %v1254 = vunpack.c.l.b16 %v1067
        %v1255 = vunpack.c.h.b16 %v1067
        %v1256 = vunpack.c.l.b16 %v1068
        %v1257 = vunpack.c.h.b16 %v1068
        %v1258 = vunpack.c.l.b16 %v1069
        %v1259 = vunpack.c.h.b16 %v1069
        %v1260 = vunpack.c.l.b16 %v1070
        %v1261 = vunpack.c.h.b16 %v1070
        %v1262 = vunpack.c.l.b16 %v1071
        %v1263 = vunpack.c.h.b16 %v1071
        %v1264 = vpack.c.b16 %v1140, %v1136
        %v1265 = vpack.c.b16 %v1141, %v1137
        %v1266 = vpack.c.b16 %v1142, %v1138
        %v1267 = vpack.c.b16 %v1143, %v1139
        %v1268 = vpack.c.b16 %v1148, %v1144
        %v1269 = vpack.c.b16 %v1149, %v1145
        %v1270 = vpack.c.b16 %v1150, %v1146
        %v1271 = vpack.c.b16 %v1151, %v1147
        %v1272 = vpack.c.b16 %v1156, %v1152
        %v1273 = vpack.c.b16 %v1157, %v1153
        %v1274 = vpack.c.b16 %v1158, %v1154
        %v1275 = vpack.c.b16 %v1159, %v1155
        %v1276 = vpack.c.b16 %v1164, %v1160
        %v1277 = vpack.c.b16 %v1165, %v1161
        %v1278 = vpack.c.b16 %v1166, %v1162
        %v1279 = vpack.c.b16 %v1167, %v1163
        %v1280 = vpack.c.b16 %v1172, %v1168
        %v1281 = vpack.c.b16 %v1173, %v1169
        %v1282 = vpack.c.b16 %v1174, %v1170
        %v1283 = vpack.c.b16 %v1175, %v1171
        %v1284 = vpack.c.b16 %v1180, %v1176
        %v1285 = vpack.c.b16 %v1181, %v1177
        %v1286 = vpack.c.b16 %v1182, %v1178
        %v1287 = vpack.c.b16 %v1183, %v1179
        %v1288 = vpack.c.b16 %v1188, %v1184
        %v1289 = vpack.c.b16 %v1189, %v1185
        %v1290 = vpack.c.b16 %v1190, %v1186
        %v1291 = vpack.c.b16 %v1191, %v1187
        %v1292 = vpack.c.b16 %v1196, %v1192
        %v1293 = vpack.c.b16 %v1197, %v1193
        %v1294 = vpack.c.b16 %v1198, %v1194
        %v1295 = vpack.c.b16 %v1199, %v1195
        %v1296 = vpack.c.b16 %v1204, %v1200
        %v1297 = vpack.c.b16 %v1205, %v1201
        %v1298 = vpack.c.b16 %v1206, %v1202
        %v1299 = vpack.c.b16 %v1207, %v1203
        %v1300 = vpack.c.b16 %v1212, %v1208
        %v1301 = vpack.c.b16 %v1213, %v1209
        %v1302 = vpack.c.b16 %v1214, %v1210
        %v1303 = vpack.c.b16 %v1215, %v1211
        %v1304 = vpack.c.b16 %v1220, %v1216
        %v1305 = vpack.c.b16 %v1221, %v1217
        %v1306 = vpack.c.b16 %v1222, %v1218
        %v1307 = vpack.c.b16 %v1223, %v1219
        %v1308 = vpack.c.b16 %v1228, %v1224
        %v1309 = vpack.c.b16 %v1229, %v1225
        %v1310 = vpack.c.b16 %v1230, %v1226
        %v1311 = vpack.c.b16 %v1231, %v1227
        %v1312 = vpack.c.b16 %v1236, %v1232
        %v1313 = vpack.c.b16 %v1237, %v1233
        %v1314 = vpack.c.b16 %v1238, %v1234
        %v1315 = vpack.c.b16 %v1239, %v1235
        %v1316 = vpack.c.b16 %v1244, %v1240
        %v1317 = vpack.c.b16 %v1245, %v1241
        %v1318 = vpack.c.b16 %v1246, %v1242
        %v1319 = vpack.c.b16 %v1247, %v1243
        %v1320 = vpack.c.b16 %v1252, %v1248
        %v1321 = vpack.c.b16 %v1253, %v1249
        %v1322 = vpack.c.b16 %v1254, %v1250
        %v1323 = vpack.c.b16 %v1255, %v1251
        %v1324 = vpack.c.b16 %v1260, %v1256
        %v1325 = vpack.c.b16 %v1261, %v1257
        %v1326 = vpack.c.b16 %v1262, %v1258
        %v1327 = vpack.c.b16 %v1263, %v1259
        %1392 = vmatprep.subr.bf16.mxu0 %v1265
        %1393 = vmatpush1.bf16.msra.mxu0 %v1264
        %1394 = vmatprep.subr.bf16.mxu0 %v1269
        %1395 = vmatpush1.bf16.msra.mxu0 %v1268
        %1396 = vmatprep.subr.bf16.mxu0 %v1273
        %1397 = vmatpush1.bf16.msra.mxu0 %v1272
        %1398 = vmatprep.subr.bf16.mxu0 %v1277
        %1399 = vmatpush1.bf16.msra.mxu0 %v1276
        %1400 = vmatprep.subr.bf16.mxu0 %v1281
        %1401 = vmatpush1.bf16.msra.mxu0 %v1280
        %1402 = vmatprep.subr.bf16.mxu0 %v1285
        %1403 = vmatpush1.bf16.msra.mxu0 %v1284
        %1404 = vmatprep.subr.bf16.mxu0 %v1289
        %1405 = vmatpush1.bf16.msra.mxu0 %v1288
        %1406 = vmatprep.subr.bf16.mxu0 %v1293
        %1407 = vmatpush1.bf16.msra.mxu0 %v1292
        %1408 = vmatprep.subr.bf16.mxu0 %v1297
        %1409 = vmatpush1.bf16.msra.mxu0 %v1296
        %1410 = vmatprep.subr.bf16.mxu0 %v1301
        %1411 = vmatpush1.bf16.msra.mxu0 %v1300
        %1412 = vmatprep.subr.bf16.mxu0 %v1305
        %1413 = vmatpush1.bf16.msra.mxu0 %v1304
        %1414 = vmatprep.subr.bf16.mxu0 %v1309
        %1415 = vmatpush1.bf16.msra.mxu0 %v1308
        %1416 = vmatprep.subr.bf16.mxu0 %v1313
        %1417 = vmatpush1.bf16.msra.mxu0 %v1312
        %1418 = vmatprep.subr.bf16.mxu0 %v1317
        %1419 = vmatpush1.bf16.msra.mxu0 %v1316
        %1420 = vmatprep.subr.bf16.mxu0 %v1321
        %1421 = vmatpush1.bf16.msra.mxu0 %v1320
        %1422 = vmatprep.subr.bf16.mxu0 %v1325
        %1423 = vmatpush1.bf16.msra.mxu0 %v1324
        %1424 = vmatprep.mubr.bf16.mxu0 %v541
        %1425 = vmatmul.mubr.bf16.gmra.mrb[0].mxu0 %v540
        %v1426 = vpop.f32.mrb[0].mxu0
        %v1427 = vadd.f32 0.0, %v1426
        %v1428 = vpop.f32.mrb[0].mxu0
        %v1429 = vadd.f32 0.0, %v1428
        %v1430 = vpop.f32.mrb[0].mxu0
        %v1431 = vpop.f32.mrb[0].mxu0
        %1432 = vdwg.mxu0
        %1433 = vmatprep.subr.bf16.mxu0 %v1267
        %1434 = vmatpush1.bf16.msra.mxu0 %v1266
        %1435 = vmatprep.subr.bf16.mxu0 %v1271
        %1436 = vmatpush1.bf16.msra.mxu0 %v1270
        %1437 = vmatprep.subr.bf16.mxu0 %v1275
        %1438 = vmatpush1.bf16.msra.mxu0 %v1274
        %1439 = vmatprep.subr.bf16.mxu0 %v1279
        %1440 = vmatpush1.bf16.msra.mxu0 %v1278
        %1441 = vmatprep.subr.bf16.mxu0 %v1283
        %1442 = vmatpush1.bf16.msra.mxu0 %v1282
        %1443 = vmatprep.subr.bf16.mxu0 %v1287
        %1444 = vmatpush1.bf16.msra.mxu0 %v1286
        %1445 = vmatprep.subr.bf16.mxu0 %v1291
        %1446 = vmatpush1.bf16.msra.mxu0 %v1290
        %1447 = vmatprep.subr.bf16.mxu0 %v1295
        %1448 = vmatpush1.bf16.msra.mxu0 %v1294
        %1449 = vmatprep.subr.bf16.mxu0 %v1299
        %1450 = vmatpush1.bf16.msra.mxu0 %v1298
        %1451 = vmatprep.subr.bf16.mxu0 %v1303
        %1452 = vmatpush1.bf16.msra.mxu0 %v1302
        %1453 = vmatprep.subr.bf16.mxu0 %v1307
        %1454 = vmatpush1.bf16.msra.mxu0 %v1306
        %1455 = vmatprep.subr.bf16.mxu0 %v1311
        %1456 = vmatpush1.bf16.msra.mxu0 %v1310
        %1457 = vmatprep.subr.bf16.mxu0 %v1315
        %1458 = vmatpush1.bf16.msra.mxu0 %v1314
        %1459 = vmatprep.subr.bf16.mxu0 %v1319
        %1460 = vmatpush1.bf16.msra.mxu0 %v1318
        %1461 = vmatprep.subr.bf16.mxu0 %v1323
        %1462 = vmatpush1.bf16.msra.mxu0 %v1322
        %1463 = vmatprep.subr.bf16.mxu0 %v1327
        %1464 = vmatpush1.bf16.msra.mxu0 %v1326
        %1465 = vmatprep.mubr.bf16.mxu0 %v541
        %1466 = vmatmul.mubr.bf16.gmra.mrb[0].mxu0 %v540
        %v1467 = vpop.f32.mrb[0].mxu0
        %v1468 = vadd.f32 0.0, %v1467
        %v1469 = vpop.f32.mrb[0].mxu0
        %v1470 = vadd.f32 0.0, %v1469
        %v1471 = vpop.f32.mrb[0].mxu0
        %v1472 = vpop.f32.mrb[0].mxu0
        %1473 = vdwg.mxu0
        %v1474 = vld [vmem:[#allocation11] sm:$0xff]
        %v1475 = vld [vmem:[#allocation11 + $0x8] sm:$0xff]
        %v1476 = vld [vmem:[#allocation11 + $0x10] sm:$0xff]
        %v1477 = vld [vmem:[#allocation11 + $0x18] sm:$0xff]
        %v1478 = vld [vmem:[#allocation11 + $0x20] sm:$0xff]
        %v1479 = vld [vmem:[#allocation11 + $0x28] sm:$0xff]
        %v1480 = vld [vmem:[#allocation11 + $0x30] sm:$0xff]
        %v1481 = vld [vmem:[#allocation11 + $0x38] sm:$0xff]
        %v1482 = vld [vmem:[#allocation11 + $0x40] sm:$0xff]
        %v1483 = vld [vmem:[#allocation11 + $0x48] sm:$0xff]
        %v1484 = vld [vmem:[#allocation11 + $0x50] sm:$0xff]
        %v1485 = vld [vmem:[#allocation11 + $0x58] sm:$0xff]
        %v1486 = vld [vmem:[#allocation11 + $0x60] sm:$0xff]
        %v1487 = vld [vmem:[#allocation11 + $0x68] sm:$0xff]
        %v1488 = vld [vmem:[#allocation11 + $0x70] sm:$0xff]
        %v1489 = vld [vmem:[#allocation11 + $0x78] sm:$0xff]
        %v1490 = vld [vmem:[#allocation11 + $0x80] sm:$0xff]
        %v1491 = vld [vmem:[#allocation11 + $0x88] sm:$0xff]
        %v1492 = vld [vmem:[#allocation11 + $0x90] sm:$0xff]
        %v1493 = vld [vmem:[#allocation11 + $0x98] sm:$0xff]
        %v1494 = vld [vmem:[#allocation11 + $0xa0] sm:$0xff]
        %v1495 = vld [vmem:[#allocation11 + $0xa8] sm:$0xff]
        %v1496 = vld [vmem:[#allocation11 + $0xb0] sm:$0xff]
        %v1497 = vld [vmem:[#allocation11 + $0xb8] sm:$0xff]
        %v1498 = vld [vmem:[#allocation11 + $0xc0] sm:$0xff]
        %v1499 = vld [vmem:[#allocation11 + $0xc8] sm:$0xff]
        %v1500 = vld [vmem:[#allocation11 + $0xd0] sm:$0xff]
        %v1501 = vld [vmem:[#allocation11 + $0xd8] sm:$0xff]
        %v1502 = vld [vmem:[#allocation11 + $0xe0] sm:$0xff]
        %v1503 = vld [vmem:[#allocation11 + $0xe8] sm:$0xff]
        %v1504 = vld [vmem:[#allocation11 + $0xf0] sm:$0xff]
        %v1505 = vld [vmem:[#allocation11 + $0xf8] sm:$0xff]
        %v1506 = vld [vmem:[#allocation11 + $0x100] sm:$0xff]
        %v1507 = vld [vmem:[#allocation11 + $0x108] sm:$0xff]
        %v1508 = vld [vmem:[#allocation11 + $0x110] sm:$0xff]
        %v1509 = vld [vmem:[#allocation11 + $0x118] sm:$0xff]
        %v1510 = vld [vmem:[#allocation11 + $0x120] sm:$0xff]
        %v1511 = vld [vmem:[#allocation11 + $0x128] sm:$0xff]
        %v1512 = vld [vmem:[#allocation11 + $0x130] sm:$0xff]
        %v1513 = vld [vmem:[#allocation11 + $0x138] sm:$0xff]
        %v1514 = vld [vmem:[#allocation11 + $0x140] sm:$0xff]
        %v1515 = vld [vmem:[#allocation11 + $0x148] sm:$0xff]
        %v1516 = vld [vmem:[#allocation11 + $0x150] sm:$0xff]
        %v1517 = vld [vmem:[#allocation11 + $0x158] sm:$0xff]
        %v1518 = vld [vmem:[#allocation11 + $0x160] sm:$0xff]
        %v1519 = vld [vmem:[#allocation11 + $0x168] sm:$0xff]
        %v1520 = vld [vmem:[#allocation11 + $0x170] sm:$0xff]
        %v1521 = vld [vmem:[#allocation11 + $0x178] sm:$0xff]
        %v1522 = vld [vmem:[#allocation11 + $0x180] sm:$0xff]
        %v1523 = vld [vmem:[#allocation11 + $0x188] sm:$0xff]
        %v1524 = vld [vmem:[#allocation11 + $0x190] sm:$0xff]
        %v1525 = vld [vmem:[#allocation11 + $0x198] sm:$0xff]
        %v1526 = vld [vmem:[#allocation11 + $0x1a0] sm:$0xff]
        %v1527 = vld [vmem:[#allocation11 + $0x1a8] sm:$0xff]
        %v1528 = vld [vmem:[#allocation11 + $0x1b0] sm:$0xff]
        %v1529 = vld [vmem:[#allocation11 + $0x1b8] sm:$0xff]
        %v1530 = vld [vmem:[#allocation11 + $0x1c0] sm:$0xff]
        %v1531 = vld [vmem:[#allocation11 + $0x1c8] sm:$0xff]
        %v1532 = vld [vmem:[#allocation11 + $0x1d0] sm:$0xff]
        %v1533 = vld [vmem:[#allocation11 + $0x1d8] sm:$0xff]
        %v1534 = vld [vmem:[#allocation11 + $0x1e0] sm:$0xff]
        %v1535 = vld [vmem:[#allocation11 + $0x1e8] sm:$0xff]
        %v1536 = vld [vmem:[#allocation11 + $0x1f0] sm:$0xff]
        %v1537 = vld [vmem:[#allocation11 + $0x1f8] sm:$0xff]
        %v1602 = vunpack.c.l.b16 %v1474
        %v1603 = vunpack.c.h.b16 %v1474
        %v1604 = vunpack.c.l.b16 %v1475
        %v1605 = vunpack.c.h.b16 %v1475
        %v1606 = vunpack.c.l.b16 %v1476
        %v1607 = vunpack.c.h.b16 %v1476
        %v1608 = vunpack.c.l.b16 %v1477
        %v1609 = vunpack.c.h.b16 %v1477
        %v1610 = vunpack.c.l.b16 %v1478
        %v1611 = vunpack.c.h.b16 %v1478
        %v1612 = vunpack.c.l.b16 %v1479
        %v1613 = vunpack.c.h.b16 %v1479
        %v1614 = vunpack.c.l.b16 %v1480
        %v1615 = vunpack.c.h.b16 %v1480
        %v1616 = vunpack.c.l.b16 %v1481
        %v1617 = vunpack.c.h.b16 %v1481
        %v1618 = vunpack.c.l.b16 %v1482
        %v1619 = vunpack.c.h.b16 %v1482
        %v1620 = vunpack.c.l.b16 %v1483
        %v1621 = vunpack.c.h.b16 %v1483
        %v1622 = vunpack.c.l.b16 %v1484
        %v1623 = vunpack.c.h.b16 %v1484
        %v1624 = vunpack.c.l.b16 %v1485
        %v1625 = vunpack.c.h.b16 %v1485
        %v1626 = vunpack.c.l.b16 %v1486
        %v1627 = vunpack.c.h.b16 %v1486
        %v1628 = vunpack.c.l.b16 %v1487
        %v1629 = vunpack.c.h.b16 %v1487
        %v1630 = vunpack.c.l.b16 %v1488
        %v1631 = vunpack.c.h.b16 %v1488
        %v1632 = vunpack.c.l.b16 %v1489
        %v1633 = vunpack.c.h.b16 %v1489
        %v1634 = vunpack.c.l.b16 %v1490
        %v1635 = vunpack.c.h.b16 %v1490
        %v1636 = vunpack.c.l.b16 %v1491
        %v1637 = vunpack.c.h.b16 %v1491
        %v1638 = vunpack.c.l.b16 %v1492
        %v1639 = vunpack.c.h.b16 %v1492
        %v1640 = vunpack.c.l.b16 %v1493
        %v1641 = vunpack.c.h.b16 %v1493
        %v1642 = vunpack.c.l.b16 %v1494
        %v1643 = vunpack.c.h.b16 %v1494
        %v1644 = vunpack.c.l.b16 %v1495
        %v1645 = vunpack.c.h.b16 %v1495
        %v1646 = vunpack.c.l.b16 %v1496
        %v1647 = vunpack.c.h.b16 %v1496
        %v1648 = vunpack.c.l.b16 %v1497
        %v1649 = vunpack.c.h.b16 %v1497
        %v1650 = vunpack.c.l.b16 %v1498
        %v1651 = vunpack.c.h.b16 %v1498
        %v1652 = vunpack.c.l.b16 %v1499
        %v1653 = vunpack.c.h.b16 %v1499
        %v1654 = vunpack.c.l.b16 %v1500
        %v1655 = vunpack.c.h.b16 %v1500
        %v1656 = vunpack.c.l.b16 %v1501
        %v1657 = vunpack.c.h.b16 %v1501
        %v1658 = vunpack.c.l.b16 %v1502
        %v1659 = vunpack.c.h.b16 %v1502
        %v1660 = vunpack.c.l.b16 %v1503
        %v1661 = vunpack.c.h.b16 %v1503
        %v1662 = vunpack.c.l.b16 %v1504
        %v1663 = vunpack.c.h.b16 %v1504
        %v1664 = vunpack.c.l.b16 %v1505
        %v1665 = vunpack.c.h.b16 %v1505
        %v1666 = vunpack.c.l.b16 %v1506
        %v1667 = vunpack.c.h.b16 %v1506
        %v1668 = vunpack.c.l.b16 %v1507
        %v1669 = vunpack.c.h.b16 %v1507
        %v1670 = vunpack.c.l.b16 %v1508
        %v1671 = vunpack.c.h.b16 %v1508
        %v1672 = vunpack.c.l.b16 %v1509
        %v1673 = vunpack.c.h.b16 %v1509
        %v1674 = vunpack.c.l.b16 %v1510
        %v1675 = vunpack.c.h.b16 %v1510
        %v1676 = vunpack.c.l.b16 %v1511
        %v1677 = vunpack.c.h.b16 %v1511
        %v1678 = vunpack.c.l.b16 %v1512
        %v1679 = vunpack.c.h.b16 %v1512
        %v1680 = vunpack.c.l.b16 %v1513
        %v1681 = vunpack.c.h.b16 %v1513
        %v1682 = vunpack.c.l.b16 %v1514
        %v1683 = vunpack.c.h.b16 %v1514
        %v1684 = vunpack.c.l.b16 %v1515
        %v1685 = vunpack.c.h.b16 %v1515
        %v1686 = vunpack.c.l.b16 %v1516
        %v1687 = vunpack.c.h.b16 %v1516
        %v1688 = vunpack.c.l.b16 %v1517
        %v1689 = vunpack.c.h.b16 %v1517
        %v1690 = vunpack.c.l.b16 %v1518
        %v1691 = vunpack.c.h.b16 %v1518
        %v1692 = vunpack.c.l.b16 %v1519
        %v1693 = vunpack.c.h.b16 %v1519
        %v1694 = vunpack.c.l.b16 %v1520
        %v1695 = vunpack.c.h.b16 %v1520
        %v1696 = vunpack.c.l.b16 %v1521
        %v1697 = vunpack.c.h.b16 %v1521
        %v1698 = vunpack.c.l.b16 %v1522
        %v1699 = vunpack.c.h.b16 %v1522
        %v1700 = vunpack.c.l.b16 %v1523
        %v1701 = vunpack.c.h.b16 %v1523
        %v1702 = vunpack.c.l.b16 %v1524
        %v1703 = vunpack.c.h.b16 %v1524
        %v1704 = vunpack.c.l.b16 %v1525
        %v1705 = vunpack.c.h.b16 %v1525
        %v1706 = vunpack.c.l.b16 %v1526
        %v1707 = vunpack.c.h.b16 %v1526
        %v1708 = vunpack.c.l.b16 %v1527
        %v1709 = vunpack.c.h.b16 %v1527
        %v1710 = vunpack.c.l.b16 %v1528
        %v1711 = vunpack.c.h.b16 %v1528
        %v1712 = vunpack.c.l.b16 %v1529
        %v1713 = vunpack.c.h.b16 %v1529
        %v1714 = vunpack.c.l.b16 %v1530
        %v1715 = vunpack.c.h.b16 %v1530
        %v1716 = vunpack.c.l.b16 %v1531
        %v1717 = vunpack.c.h.b16 %v1531
        %v1718 = vunpack.c.l.b16 %v1532
        %v1719 = vunpack.c.h.b16 %v1532
        %v1720 = vunpack.c.l.b16 %v1533
        %v1721 = vunpack.c.h.b16 %v1533
        %v1722 = vunpack.c.l.b16 %v1534
        %v1723 = vunpack.c.h.b16 %v1534
        %v1724 = vunpack.c.l.b16 %v1535
        %v1725 = vunpack.c.h.b16 %v1535
        %v1726 = vunpack.c.l.b16 %v1536
        %v1727 = vunpack.c.h.b16 %v1536
        %v1728 = vunpack.c.l.b16 %v1537
        %v1729 = vunpack.c.h.b16 %v1537
        %v1730 = vpack.c.b16 %v1606, %v1602
        %v1731 = vpack.c.b16 %v1607, %v1603
        %v1732 = vpack.c.b16 %v1608, %v1604
        %v1733 = vpack.c.b16 %v1609, %v1605
        %v1734 = vpack.c.b16 %v1614, %v1610
        %v1735 = vpack.c.b16 %v1615, %v1611
        %v1736 = vpack.c.b16 %v1616, %v1612
        %v1737 = vpack.c.b16 %v1617, %v1613
        %v1738 = vpack.c.b16 %v1622, %v1618
        %v1739 = vpack.c.b16 %v1623, %v1619
        %v1740 = vpack.c.b16 %v1624, %v1620
        %v1741 = vpack.c.b16 %v1625, %v1621
        %v1742 = vpack.c.b16 %v1630, %v1626
        %v1743 = vpack.c.b16 %v1631, %v1627
        %v1744 = vpack.c.b16 %v1632, %v1628
        %v1745 = vpack.c.b16 %v1633, %v1629
        %v1746 = vpack.c.b16 %v1638, %v1634
        %v1747 = vpack.c.b16 %v1639, %v1635
        %v1748 = vpack.c.b16 %v1640, %v1636
        %v1749 = vpack.c.b16 %v1641, %v1637
        %v1750 = vpack.c.b16 %v1646, %v1642
        %v1751 = vpack.c.b16 %v1647, %v1643
        %v1752 = vpack.c.b16 %v1648, %v1644
        %v1753 = vpack.c.b16 %v1649, %v1645
        %v1754 = vpack.c.b16 %v1654, %v1650
        %v1755 = vpack.c.b16 %v1655, %v1651
        %v1756 = vpack.c.b16 %v1656, %v1652
        %v1757 = vpack.c.b16 %v1657, %v1653
        %v1758 = vpack.c.b16 %v1662, %v1658
        %v1759 = vpack.c.b16 %v1663, %v1659
        %v1760 = vpack.c.b16 %v1664, %v1660
        %v1761 = vpack.c.b16 %v1665, %v1661
        %v1762 = vpack.c.b16 %v1670, %v1666
        %v1763 = vpack.c.b16 %v1671, %v1667
        %v1764 = vpack.c.b16 %v1672, %v1668
        %v1765 = vpack.c.b16 %v1673, %v1669
        %v1766 = vpack.c.b16 %v1678, %v1674
        %v1767 = vpack.c.b16 %v1679, %v1675
        %v1768 = vpack.c.b16 %v1680, %v1676
        %v1769 = vpack.c.b16 %v1681, %v1677
        %v1770 = vpack.c.b16 %v1686, %v1682
        %v1771 = vpack.c.b16 %v1687, %v1683
        %v1772 = vpack.c.b16 %v1688, %v1684
        %v1773 = vpack.c.b16 %v1689, %v1685
        %v1774 = vpack.c.b16 %v1694, %v1690
        %v1775 = vpack.c.b16 %v1695, %v1691
        %v1776 = vpack.c.b16 %v1696, %v1692
        %v1777 = vpack.c.b16 %v1697, %v1693
        %v1778 = vpack.c.b16 %v1702, %v1698
        %v1779 = vpack.c.b16 %v1703, %v1699
        %v1780 = vpack.c.b16 %v1704, %v1700
        %v1781 = vpack.c.b16 %v1705, %v1701
        %v1782 = vpack.c.b16 %v1710, %v1706
        %v1783 = vpack.c.b16 %v1711, %v1707
        %v1784 = vpack.c.b16 %v1712, %v1708
        %v1785 = vpack.c.b16 %v1713, %v1709
        %v1786 = vpack.c.b16 %v1718, %v1714
        %v1787 = vpack.c.b16 %v1719, %v1715
        %v1788 = vpack.c.b16 %v1720, %v1716
        %v1789 = vpack.c.b16 %v1721, %v1717
        %v1790 = vpack.c.b16 %v1726, %v1722
        %v1791 = vpack.c.b16 %v1727, %v1723
        %v1792 = vpack.c.b16 %v1728, %v1724
        %v1793 = vpack.c.b16 %v1729, %v1725
        %1858 = vmatprep.subr.bf16.mxu0 %v1731
        %1859 = vmatpush1.bf16.msra.mxu0 %v1730
        %1860 = vmatprep.subr.bf16.mxu0 %v1735
        %1861 = vmatpush1.bf16.msra.mxu0 %v1734
        %1862 = vmatprep.subr.bf16.mxu0 %v1739
        %1863 = vmatpush1.bf16.msra.mxu0 %v1738
        %1864 = vmatprep.subr.bf16.mxu0 %v1743
        %1865 = vmatpush1.bf16.msra.mxu0 %v1742
        %1866 = vmatprep.subr.bf16.mxu0 %v1747
        %1867 = vmatpush1.bf16.msra.mxu0 %v1746
        %1868 = vmatprep.subr.bf16.mxu0 %v1751
        %1869 = vmatpush1.bf16.msra.mxu0 %v1750
        %1870 = vmatprep.subr.bf16.mxu0 %v1755
        %1871 = vmatpush1.bf16.msra.mxu0 %v1754
        %1872 = vmatprep.subr.bf16.mxu0 %v1759
        %1873 = vmatpush1.bf16.msra.mxu0 %v1758
        %1874 = vmatprep.subr.bf16.mxu0 %v1763
        %1875 = vmatpush1.bf16.msra.mxu0 %v1762
        %1876 = vmatprep.subr.bf16.mxu0 %v1767
        %1877 = vmatpush1.bf16.msra.mxu0 %v1766
        %1878 = vmatprep.subr.bf16.mxu0 %v1771
        %1879 = vmatpush1.bf16.msra.mxu0 %v1770
        %1880 = vmatprep.subr.bf16.mxu0 %v1775
        %1881 = vmatpush1.bf16.msra.mxu0 %v1774
        %1882 = vmatprep.subr.bf16.mxu0 %v1779
        %1883 = vmatpush1.bf16.msra.mxu0 %v1778
        %1884 = vmatprep.subr.bf16.mxu0 %v1783
        %1885 = vmatpush1.bf16.msra.mxu0 %v1782
        %1886 = vmatprep.subr.bf16.mxu0 %v1787
        %1887 = vmatpush1.bf16.msra.mxu0 %v1786
        %1888 = vmatprep.subr.bf16.mxu0 %v1791
        %1889 = vmatpush1.bf16.msra.mxu0 %v1790
        %1890 = vmatprep.mubr.bf16.mxu0 %v541
        %1891 = vmatmul.mubr.bf16.gmra.mrb[0].mxu0 %v540
        %v1892 = vpop.f32.mrb[0].mxu0
        %v1893 = vadd.f32 0.0, %v1892
        %v1894 = vpop.f32.mrb[0].mxu0
        %v1895 = vadd.f32 0.0, %v1894
        %v1896 = vpop.f32.mrb[0].mxu0
        %v1897 = vpop.f32.mrb[0].mxu0
        %1898 = vdwg.mxu0
        %1899 = vmatprep.subr.bf16.mxu0 %v1733
        %1900 = vmatpush1.bf16.msra.mxu0 %v1732
        %1901 = vmatprep.subr.bf16.mxu0 %v1737
        %1902 = vmatpush1.bf16.msra.mxu0 %v1736
        %1903 = vmatprep.subr.bf16.mxu0 %v1741
        %1904 = vmatpush1.bf16.msra.mxu0 %v1740
        %1905 = vmatprep.subr.bf16.mxu0 %v1745
        %1906 = vmatpush1.bf16.msra.mxu0 %v1744
        %1907 = vmatprep.subr.bf16.mxu0 %v1749
        %1908 = vmatpush1.bf16.msra.mxu0 %v1748
        %1909 = vmatprep.subr.bf16.mxu0 %v1753
        %1910 = vmatpush1.bf16.msra.mxu0 %v1752
        %1911 = vmatprep.subr.bf16.mxu0 %v1757
        %1912 = vmatpush1.bf16.msra.mxu0 %v1756
        %1913 = vmatprep.subr.bf16.mxu0 %v1761
        %1914 = vmatpush1.bf16.msra.mxu0 %v1760
        %1915 = vmatprep.subr.bf16.mxu0 %v1765
        %1916 = vmatpush1.bf16.msra.mxu0 %v1764
        %1917 = vmatprep.subr.bf16.mxu0 %v1769
        %1918 = vmatpush1.bf16.msra.mxu0 %v1768
        %1919 = vmatprep.subr.bf16.mxu0 %v1773
        %1920 = vmatpush1.bf16.msra.mxu0 %v1772
        %1921 = vmatprep.subr.bf16.mxu0 %v1777
        %1922 = vmatpush1.bf16.msra.mxu0 %v1776
        %1923 = vmatprep.subr.bf16.mxu0 %v1781
        %1924 = vmatpush1.bf16.msra.mxu0 %v1780
        %1925 = vmatprep.subr.bf16.mxu0 %v1785
        %1926 = vmatpush1.bf16.msra.mxu0 %v1784
        %1927 = vmatprep.subr.bf16.mxu0 %v1789
        %1928 = vmatpush1.bf16.msra.mxu0 %v1788
        %1929 = vmatprep.subr.bf16.mxu0 %v1793
        %1930 = vmatpush1.bf16.msra.mxu0 %v1792
        %1931 = vmatprep.mubr.bf16.mxu0 %v541
        %1932 = vmatmul.mubr.bf16.gmra.mrb[0].mxu0 %v540
        %v1933 = vpop.f32.mrb[0].mxu0
        %v1934 = vadd.f32 0.0, %v1933
        %v1935 = vpop.f32.mrb[0].mxu0
        %v1936 = vadd.f32 0.0, %v1935
        %v1937 = vpop.f32.mrb[0].mxu0
        %v1938 = vpop.f32.mrb[0].mxu0
        %1939 = vdwg.mxu0
        %v1940 = vld [vmem:[%s465] sm:$0xff]
        %vm1941 = vcmask 523264
        %v1943 = vsel %vm1941, %v961, 0
        %v1946 = vsel %vm1941, %v1427, 0
        %1948 = vmatprep.subr.mxu0 0.0
        %1949 = vmatpush1.xpose.msra.mxu0 %v1946
        %1950 = vmatprep.subr.mxu0 0.0
        %1951 = vmatpush1.xpose.msra.mxu0 0.0
        %1952 = vmatprep.subr.mxu0 0.0
        %1953 = vmatpush1.xpose.msra.mxu0 0.0
        %1954 = vmatprep.subr.mxu0 0.0
        %1955 = vmatpush1.xpose.msra.mxu0 0.0
        %1956 = vmatprep.subr.mxu0 0.0
        %1957 = vmatpush1.xpose.msra.mxu0 0.0
        %1958 = vmatprep.subr.mxu0 0.0
        %1959 = vmatpush1.xpose.msra.mxu0 0.0
        %1960 = vmatprep.subr.mxu0 0.0
        %1961 = vmatpush1.xpose.msra.mxu0 0.0
        %1962 = vmatprep.subr.mxu0 0.0
        %1963 = vmatpush1.xpose.msra.mxu0 0.0
        %1964 = vmatprep.subr.mxu0 0.0
        %1965 = vmatpush1.xpose.msra.mxu0 0.0
        %1966 = vmatprep.subr.mxu0 0.0
        %1967 = vmatpush1.xpose.msra.mxu0 0.0
        %1968 = vmatprep.subr.mxu0 0.0
        %1969 = vmatpush1.xpose.msra.mxu0 0.0
        %1970 = vmatprep.subr.mxu0 0.0
        %1971 = vmatpush1.xpose.msra.mxu0 0.0
        %1972 = vmatprep.subr.mxu0 0.0
        %1973 = vmatpush1.xpose.msra.mxu0 0.0
        %1974 = vmatprep.subr.mxu0 0.0
        %1975 = vmatpush1.xpose.msra.mxu0 0.0
        %1976 = vmatprep.subr.mxu0 0.0
        %1977 = vmatpush1.xpose.msra.mxu0 0.0
        %1978 = vmatprep.subr.mxu0 0.0
        %1979 = vmatpush1.xpose.msra.mxu0 0.0
        %1980 = vmatprep.subr.mxu0 0.0
        %1981 = vmatpush1.xpose.msra.mxu0 0.0
        %1982 = vmatprep.subr.mxu0 0.0
        %1983 = vmatpush1.xpose.msra.mxu0 0.0
        %1984 = vmatprep.subr.mxu0 0.0
        %1985 = vmatpush1.xpose.msra.mxu0 0.0
        %1986 = vmatprep.subr.mxu0 0.0
        %1987 = vmatpush1.xpose.msra.mxu0 0.0
        %1988 = vmatprep.subr.mxu0 0.0
        %1989 = vmatpush1.xpose.msra.mxu0 0.0
        %1990 = vmatprep.subr.mxu0 0.0
        %1991 = vmatpush1.xpose.msra.mxu0 0.0
        %1992 = vmatprep.subr.mxu0 0.0
        %1993 = vmatpush1.xpose.msra.mxu0 0.0
        %1994 = vmatprep.subr.mxu0 0.0
        %1995 = vmatpush1.xpose.msra.mxu0 0.0
        %1996 = vmatprep.subr.mxu0 0.0
        %1997 = vmatpush1.xpose.msra.mxu0 0.0
        %1998 = vmatprep.subr.mxu0 0.0
        %1999 = vmatpush1.xpose.msra.mxu0 0.0
        %2000 = vmatprep.subr.mxu0 0.0
        %2001 = vmatpush1.xpose.msra.mxu0 0.0
        %2002 = vmatprep.subr.mxu0 0.0
        %2003 = vmatpush1.xpose.msra.mxu0 0.0
        %2004 = vmatprep.subr.mxu0 0.0
        %2005 = vmatpush1.xpose.msra.mxu0 0.0
        %2006 = vmatprep.subr.mxu0 0.0
        %2007 = vmatpush1.xpose.msra.mxu0 0.0
        %2008 = vmatprep.subr.mxu0 0.0
        %2009 = vmatpush1.xpose.msra.mxu0 0.0
        %2010 = vmatprep.subr.mxu0 0.0
        %2011 = vmatpush1.xpose.msra.mxu0 0.0
        %2012 = vmatprep.mubr.f32.mxu0 0.0
        %2013 = vmatmul.mubr.f32.gmra.mrb[0].mxu0 %v1943
        %v2014 = vpop.f32.mrb[0].mxu0
        %v2015 = vadd.f32 0.0, %v2014
        %v2016 = vpop.f32.mrb[0].mxu0
        %2017 = vdwg.mxu0
        %v2018 = vmul.f32 %v2015, 0.125
        %vm2019 = vcmp.gt.f32.partialorder %v1940, 0.0
        %v2020 = vsel %vm2019, -1e+09, %v2018
        %vm2021 = vcmask 64512
        %v2022 = vsel %vm2021, %v2020, -inf
        %2023 = vmax.xlane.f32.xlu0 %v2022
        %v2024 = vpop.xlane.xlu0 %2023
        %v2025 = vsub.f32 %v2020, %v2024
        %v2026 = vmul.f32 %v2025, 1.442695
        %v2027 = vpow.pop %v2026
        %v2028 = vsel %vm2021, %v2027, 0.0
        %2029 = vadd.xlane.f32.xlu0 %v2028
        %v2030 = vpop.xlane.xlu0 %2029
        %v2031 = vrcp.pop %v2030
        %v2032 = vmul.f32 %v2027, %v2031
        %2033 = vst.msk [vmem:[%s537] sm:$0xff] %vm2021, %v2032
        %v2035 = vsel %vm2021, %v2032, 0
        %2037 = vmatprep.subr.mxu0 0.0
        %2038 = vmatpush1.msra.mxu0 %v1893
        %2039 = vmatprep.subr.mxu0 0.0
        %2040 = vmatpush1.msra.mxu0 0.0
        %2041 = vmatprep.subr.mxu0 0.0
        %2042 = vmatpush1.msra.mxu0 0.0
        %2043 = vmatprep.subr.mxu0 0.0
        %2044 = vmatpush1.msra.mxu0 0.0
        %2045 = vmatprep.subr.mxu0 0.0
        %2046 = vmatpush1.msra.mxu0 0.0
        %2047 = vmatprep.subr.mxu0 0.0
        %2048 = vmatpush1.msra.mxu0 0.0
        %2049 = vmatprep.subr.mxu0 0.0
        %2050 = vmatpush1.msra.mxu0 0.0
        %2051 = vmatprep.subr.mxu0 0.0
        %2052 = vmatpush1.msra.mxu0 0.0
        %2053 = vmatprep.subr.mxu0 0.0
        %2054 = vmatpush1.msra.mxu0 0.0
        %2055 = vmatprep.subr.mxu0 0.0
        %2056 = vmatpush1.msra.mxu0 0.0
        %2057 = vmatprep.subr.mxu0 0.0
        %2058 = vmatpush1.msra.mxu0 0.0
        %2059 = vmatprep.subr.mxu0 0.0
        %2060 = vmatpush1.msra.mxu0 0.0
        %2061 = vmatprep.subr.mxu0 0.0
        %2062 = vmatpush1.msra.mxu0 0.0
        %2063 = vmatprep.subr.mxu0 0.0
        %2064 = vmatpush1.msra.mxu0 0.0
        %2065 = vmatprep.subr.mxu0 0.0
        %2066 = vmatpush1.msra.mxu0 0.0
        %2067 = vmatprep.subr.mxu0 0.0
        %2068 = vmatpush1.msra.mxu0 0.0
        %2069 = vmatprep.subr.mxu0 0.0
        %2070 = vmatpush1.msra.mxu0 0.0
        %2071 = vmatprep.subr.mxu0 0.0
        %2072 = vmatpush1.msra.mxu0 0.0
        %2073 = vmatprep.subr.mxu0 0.0
        %2074 = vmatpush1.msra.mxu0 0.0
        %2075 = vmatprep.subr.mxu0 0.0
        %2076 = vmatpush1.msra.mxu0 0.0
        %2077 = vmatprep.subr.mxu0 0.0
        %2078 = vmatpush1.msra.mxu0 0.0
        %2079 = vmatprep.subr.mxu0 0.0
        %2080 = vmatpush1.msra.mxu0 0.0
        %2081 = vmatprep.subr.mxu0 0.0
        %2082 = vmatpush1.msra.mxu0 0.0
        %2083 = vmatprep.subr.mxu0 0.0
        %2084 = vmatpush1.msra.mxu0 0.0
        %2085 = vmatprep.subr.mxu0 0.0
        %2086 = vmatpush1.msra.mxu0 0.0
        %2087 = vmatprep.subr.mxu0 0.0
        %2088 = vmatpush1.msra.mxu0 0.0
        %2089 = vmatprep.subr.mxu0 0.0
        %2090 = vmatpush1.msra.mxu0 0.0
        %2091 = vmatprep.subr.mxu0 0.0
        %2092 = vmatpush1.msra.mxu0 0.0
        %2093 = vmatprep.subr.mxu0 0.0
        %2094 = vmatpush1.msra.mxu0 0.0
        %2095 = vmatprep.subr.mxu0 0.0
        %2096 = vmatpush1.msra.mxu0 0.0
        %2097 = vmatprep.subr.mxu0 0.0
        %2098 = vmatpush1.msra.mxu0 0.0
        %2099 = vmatprep.subr.mxu0 0.0
        %2100 = vmatpush1.msra.mxu0 0.0
        %2101 = vmatprep.mubr.f32.mxu0 0.0
        %2102 = vmatmul.mubr.f32.gmra.mrb[0].mxu0 %v2035
        %v2103 = vpop.f32.mrb[0].mxu0
        %v2104 = vadd.f32 0.0, %v2103
        %v2105 = vpop.f32.mrb[0].mxu0
        %2106 = vdwg.mxu0
        %2107 = vst.msk [vmem:[#allocation2] sm:$0xff] %vm1941, %v2104
        %2108 = vrot.lane.b32.xlu0 %v961, 64
        %v2109 = vpop.permute.xlu0 %2108
        %2110 = vrot.lane.b32.xlu0 %v1427, 64
        %v2111 = vpop.permute.xlu0 %2110
        %v2112 = vsel %vm1941, %v2109, 0
        %v2114 = vsel %vm1941, %v2111, 0
        %2116 = vmatprep.subr.mxu0 0.0
        %2117 = vmatpush1.xpose.msra.mxu0 %v2114
        %2118 = vmatprep.subr.mxu0 0.0
        %2119 = vmatpush1.xpose.msra.mxu0 0.0
        %2120 = vmatprep.subr.mxu0 0.0
        %2121 = vmatpush1.xpose.msra.mxu0 0.0
        %2122 = vmatprep.subr.mxu0 0.0
        %2123 = vmatpush1.xpose.msra.mxu0 0.0
        %2124 = vmatprep.subr.mxu0 0.0
        %2125 = vmatpush1.xpose.msra.mxu0 0.0
        %2126 = vmatprep.subr.mxu0 0.0
        %2127 = vmatpush1.xpose.msra.mxu0 0.0
        %2128 = vmatprep.subr.mxu0 0.0
        %2129 = vmatpush1.xpose.msra.mxu0 0.0
        %2130 = vmatprep.subr.mxu0 0.0
        %2131 = vmatpush1.xpose.msra.mxu0 0.0
        %2132 = vmatprep.subr.mxu0 0.0
        %2133 = vmatpush1.xpose.msra.mxu0 0.0
        %2134 = vmatprep.subr.mxu0 0.0
        %2135 = vmatpush1.xpose.msra.mxu0 0.0
        %2136 = vmatprep.subr.mxu0 0.0
        %2137 = vmatpush1.xpose.msra.mxu0 0.0
        %2138 = vmatprep.subr.mxu0 0.0
        %2139 = vmatpush1.xpose.msra.mxu0 0.0
        %2140 = vmatprep.subr.mxu0 0.0
        %2141 = vmatpush1.xpose.msra.mxu0 0.0
        %2142 = vmatprep.subr.mxu0 0.0
        %2143 = vmatpush1.xpose.msra.mxu0 0.0
        %2144 = vmatprep.subr.mxu0 0.0
        %2145 = vmatpush1.xpose.msra.mxu0 0.0
        %2146 = vmatprep.subr.mxu0 0.0
        %2147 = vmatpush1.xpose.msra.mxu0 0.0
        %2148 = vmatprep.subr.mxu0 0.0
        %2149 = vmatpush1.xpose.msra.mxu0 0.0
        %2150 = vmatprep.subr.mxu0 0.0
        %2151 = vmatpush1.xpose.msra.mxu0 0.0
        %2152 = vmatprep.subr.mxu0 0.0
        %2153 = vmatpush1.xpose.msra.mxu0 0.0
        %2154 = vmatprep.subr.mxu0 0.0
        %2155 = vmatpush1.xpose.msra.mxu0 0.0
        %2156 = vmatprep.subr.mxu0 0.0
        %2157 = vmatpush1.xpose.msra.mxu0 0.0
        %2158 = vmatprep.subr.mxu0 0.0
        %2159 = vmatpush1.xpose.msra.mxu0 0.0
        %2160 = vmatprep.subr.mxu0 0.0
        %2161 = vmatpush1.xpose.msra.mxu0 0.0
        %2162 = vmatprep.subr.mxu0 0.0
        %2163 = vmatpush1.xpose.msra.mxu0 0.0
        %2164 = vmatprep.subr.mxu0 0.0
        %2165 = vmatpush1.xpose.msra.mxu0 0.0
        %2166 = vmatprep.subr.mxu0 0.0
        %2167 = vmatpush1.xpose.msra.mxu0 0.0
        %2168 = vmatprep.subr.mxu0 0.0
        %2169 = vmatpush1.xpose.msra.mxu0 0.0
        %2170 = vmatprep.subr.mxu0 0.0
        %2171 = vmatpush1.xpose.msra.mxu0 0.0
        %2172 = vmatprep.subr.mxu0 0.0
        %2173 = vmatpush1.xpose.msra.mxu0 0.0
        %2174 = vmatprep.subr.mxu0 0.0
        %2175 = vmatpush1.xpose.msra.mxu0 0.0
        %2176 = vmatprep.subr.mxu0 0.0
        %2177 = vmatpush1.xpose.msra.mxu0 0.0
        %2178 = vmatprep.subr.mxu0 0.0
        %2179 = vmatpush1.xpose.msra.mxu0 0.0
        %2180 = vmatprep.mubr.f32.mxu0 0.0
        %2181 = vmatmul.mubr.f32.gmra.mrb[0].mxu0 %v2112
        %v2182 = vpop.f32.mrb[0].mxu0
        %v2183 = vadd.f32 0.0, %v2182
        %v2184 = vpop.f32.mrb[0].mxu0
        %2185 = vdwg.mxu0
        %v2186 = vmul.f32 %v2183, 0.125
        %v2187 = vsel %vm2019, -1e+09, %v2186
        %v2188 = vsel %vm2021, %v2187, -inf
        %2189 = vmax.xlane.f32.xlu0 %v2188
        %v2190 = vpop.xlane.xlu0 %2189
        %v2191 = vsub.f32 %v2187, %v2190
        %v2192 = vmul.f32 %v2191, 1.442695
        %v2193 = vpow.pop %v2192
        %v2194 = vsel %vm2021, %v2193, 0.0
        %2195 = vadd.xlane.f32.xlu0 %v2194
        %v2196 = vpop.xlane.xlu0 %2195
        %v2197 = vrcp.pop %v2196
        %v2198 = vmul.f32 %v2193, %v2197
        %s2199 = scalar_lea.vmem %s537, 8 [#allocation18]
        %2200 = vst.msk [vmem:[%s2199] sm:$0xff] %vm2021, %v2198
        %2202 = vrot.lane.b32.xlu0 %v1893, 64
        %v2203 = vpop.permute.xlu0 %2202
        %v2206 = vsel %vm2021, %v2198, 0
        %2208 = vmatprep.subr.mxu0 0.0
        %2209 = vmatpush1.msra.mxu0 %v2203
        %2210 = vmatprep.subr.mxu0 0.0
        %2211 = vmatpush1.msra.mxu0 0.0
        %2212 = vmatprep.subr.mxu0 0.0
        %2213 = vmatpush1.msra.mxu0 0.0
        %2214 = vmatprep.subr.mxu0 0.0
        %2215 = vmatpush1.msra.mxu0 0.0
        %2216 = vmatprep.subr.mxu0 0.0
        %2217 = vmatpush1.msra.mxu0 0.0
        %2218 = vmatprep.subr.mxu0 0.0
        %2219 = vmatpush1.msra.mxu0 0.0
        %2220 = vmatprep.subr.mxu0 0.0
        %2221 = vmatpush1.msra.mxu0 0.0
        %2222 = vmatprep.subr.mxu0 0.0
        %2223 = vmatpush1.msra.mxu0 0.0
        %2224 = vmatprep.subr.mxu0 0.0
        %2225 = vmatpush1.msra.mxu0 0.0
        %2226 = vmatprep.subr.mxu0 0.0
        %2227 = vmatpush1.msra.mxu0 0.0
        %2228 = vmatprep.subr.mxu0 0.0
        %2229 = vmatpush1.msra.mxu0 0.0
        %2230 = vmatprep.subr.mxu0 0.0
        %2231 = vmatpush1.msra.mxu0 0.0
        %2232 = vmatprep.subr.mxu0 0.0
        %2233 = vmatpush1.msra.mxu0 0.0
        %2234 = vmatprep.subr.mxu0 0.0
        %2235 = vmatpush1.msra.mxu0 0.0
        %2236 = vmatprep.subr.mxu0 0.0
        %2237 = vmatpush1.msra.mxu0 0.0
        %2238 = vmatprep.subr.mxu0 0.0
        %2239 = vmatpush1.msra.mxu0 0.0
        %2240 = vmatprep.subr.mxu0 0.0
        %2241 = vmatpush1.msra.mxu0 0.0
        %2242 = vmatprep.subr.mxu0 0.0
        %2243 = vmatpush1.msra.mxu0 0.0
        %2244 = vmatprep.subr.mxu0 0.0
        %2245 = vmatpush1.msra.mxu0 0.0
        %2246 = vmatprep.subr.mxu0 0.0
        %2247 = vmatpush1.msra.mxu0 0.0
        %2248 = vmatprep.subr.mxu0 0.0
        %2249 = vmatpush1.msra.mxu0 0.0
        %2250 = vmatprep.subr.mxu0 0.0
        %2251 = vmatpush1.msra.mxu0 0.0
        %2252 = vmatprep.subr.mxu0 0.0
        %2253 = vmatpush1.msra.mxu0 0.0
        %2254 = vmatprep.subr.mxu0 0.0
        %2255 = vmatpush1.msra.mxu0 0.0
        %2256 = vmatprep.subr.mxu0 0.0
        %2257 = vmatpush1.msra.mxu0 0.0
        %2258 = vmatprep.subr.mxu0 0.0
        %2259 = vmatpush1.msra.mxu0 0.0
        %2260 = vmatprep.subr.mxu0 0.0
        %2261 = vmatpush1.msra.mxu0 0.0
        %2262 = vmatprep.subr.mxu0 0.0
        %2263 = vmatpush1.msra.mxu0 0.0
        %2264 = vmatprep.subr.mxu0 0.0
        %2265 = vmatpush1.msra.mxu0 0.0
        %2266 = vmatprep.subr.mxu0 0.0
        %2267 = vmatpush1.msra.mxu0 0.0
        %2268 = vmatprep.subr.mxu0 0.0
        %2269 = vmatpush1.msra.mxu0 0.0
        %2270 = vmatprep.subr.mxu0 0.0
        %2271 = vmatpush1.msra.mxu0 0.0
        %2272 = vmatprep.mubr.f32.mxu0 0.0
        %2273 = vmatmul.mubr.f32.gmra.mrb[0].mxu0 %v2206
        %v2274 = vpop.f32.mrb[0].mxu0
        %v2275 = vadd.f32 0.0, %v2274
        %v2276 = vpop.f32.mrb[0].mxu0
        %2277 = vdwg.mxu0
        %2279 = vrot.lane.b32.xlu0 %v2275, 64
        %v2280 = vpop.permute.xlu0 %2279
        %vm2282 = vcmask 1048064
        %2283 = vst.msk [vmem:[#allocation2] sm:$0xff] %vm2282, %v2280
        %v2285 = vsel %vm1941, %v963, 0
        %v2288 = vsel %vm1941, %v1429, 0
        %2290 = vmatprep.subr.mxu0 0.0
        %2291 = vmatpush1.xpose.msra.mxu0 %v2288
        %2292 = vmatprep.subr.mxu0 0.0
        %2293 = vmatpush1.xpose.msra.mxu0 0.0
        %2294 = vmatprep.subr.mxu0 0.0
        %2295 = vmatpush1.xpose.msra.mxu0 0.0
        %2296 = vmatprep.subr.mxu0 0.0
        %2297 = vmatpush1.xpose.msra.mxu0 0.0
        %2298 = vmatprep.subr.mxu0 0.0
        %2299 = vmatpush1.xpose.msra.mxu0 0.0
        %2300 = vmatprep.subr.mxu0 0.0
        %2301 = vmatpush1.xpose.msra.mxu0 0.0
        %2302 = vmatprep.subr.mxu0 0.0
        %2303 = vmatpush1.xpose.msra.mxu0 0.0
        %2304 = vmatprep.subr.mxu0 0.0
        %2305 = vmatpush1.xpose.msra.mxu0 0.0
        %2306 = vmatprep.subr.mxu0 0.0
        %2307 = vmatpush1.xpose.msra.mxu0 0.0
        %2308 = vmatprep.subr.mxu0 0.0
        %2309 = vmatpush1.xpose.msra.mxu0 0.0
        %2310 = vmatprep.subr.mxu0 0.0
        %2311 = vmatpush1.xpose.msra.mxu0 0.0
        %2312 = vmatprep.subr.mxu0 0.0
        %2313 = vmatpush1.xpose.msra.mxu0 0.0
        %2314 = vmatprep.subr.mxu0 0.0
        %2315 = vmatpush1.xpose.msra.mxu0 0.0
        %2316 = vmatprep.subr.mxu0 0.0
        %2317 = vmatpush1.xpose.msra.mxu0 0.0
        %2318 = vmatprep.subr.mxu0 0.0
        %2319 = vmatpush1.xpose.msra.mxu0 0.0
        %2320 = vmatprep.subr.mxu0 0.0
        %2321 = vmatpush1.xpose.msra.mxu0 0.0
        %2322 = vmatprep.subr.mxu0 0.0
        %2323 = vmatpush1.xpose.msra.mxu0 0.0
        %2324 = vmatprep.subr.mxu0 0.0
        %2325 = vmatpush1.xpose.msra.mxu0 0.0
        %2326 = vmatprep.subr.mxu0 0.0
        %2327 = vmatpush1.xpose.msra.mxu0 0.0
        %2328 = vmatprep.subr.mxu0 0.0
        %2329 = vmatpush1.xpose.msra.mxu0 0.0
        %2330 = vmatprep.subr.mxu0 0.0
        %2331 = vmatpush1.xpose.msra.mxu0 0.0
        %2332 = vmatprep.subr.mxu0 0.0
        %2333 = vmatpush1.xpose.msra.mxu0 0.0
        %2334 = vmatprep.subr.mxu0 0.0
        %2335 = vmatpush1.xpose.msra.mxu0 0.0
        %2336 = vmatprep.subr.mxu0 0.0
        %2337 = vmatpush1.xpose.msra.mxu0 0.0
        %2338 = vmatprep.subr.mxu0 0.0
        %2339 = vmatpush1.xpose.msra.mxu0 0.0
        %2340 = vmatprep.subr.mxu0 0.0
        %2341 = vmatpush1.xpose.msra.mxu0 0.0
        %2342 = vmatprep.subr.mxu0 0.0
        %2343 = vmatpush1.xpose.msra.mxu0 0.0
        %2344 = vmatprep.subr.mxu0 0.0
        %2345 = vmatpush1.xpose.msra.mxu0 0.0
        %2346 = vmatprep.subr.mxu0 0.0
        %2347 = vmatpush1.xpose.msra.mxu0 0.0
        %2348 = vmatprep.subr.mxu0 0.0
        %2349 = vmatpush1.xpose.msra.mxu0 0.0
        %2350 = vmatprep.subr.mxu0 0.0
        %2351 = vmatpush1.xpose.msra.mxu0 0.0
        %2352 = vmatprep.subr.mxu0 0.0
        %2353 = vmatpush1.xpose.msra.mxu0 0.0
        %2354 = vmatprep.mubr.f32.mxu0 0.0
        %2355 = vmatmul.mubr.f32.gmra.mrb[0].mxu0 %v2285
        %v2356 = vpop.f32.mrb[0].mxu0
        %v2357 = vadd.f32 0.0, %v2356
        %v2358 = vpop.f32.mrb[0].mxu0
        %2359 = vdwg.mxu0
        %v2360 = vmul.f32 %v2357, 0.125
        %v2361 = vsel %vm2019, -1e+09, %v2360
        %v2362 = vsel %vm2021, %v2361, -inf
        %2363 = vmax.xlane.f32.xlu0 %v2362
        %v2364 = vpop.xlane.xlu0 %2363
        %v2365 = vsub.f32 %v2361, %v2364
        %v2366 = vmul.f32 %v2365, 1.442695
        %v2367 = vpow.pop %v2366
        %v2368 = vsel %vm2021, %v2367, 0.0
        %2369 = vadd.xlane.f32.xlu0 %v2368
        %v2370 = vpop.xlane.xlu0 %2369
        %v2371 = vrcp.pop %v2370
        %v2372 = vmul.f32 %v2367, %v2371
        %s2373 = scalar_lea.vmem %s537, 16 [#allocation18]
        %2374 = vst.msk [vmem:[%s2373] sm:$0xff] %vm2021, %v2372
        %v2376 = vsel %vm2021, %v2372, 0
        %2378 = vmatprep.subr.mxu0 0.0
        %2379 = vmatpush1.msra.mxu0 %v1895
        %2380 = vmatprep.subr.mxu0 0.0
        %2381 = vmatpush1.msra.mxu0 0.0
        %2382 = vmatprep.subr.mxu0 0.0
        %2383 = vmatpush1.msra.mxu0 0.0
        %2384 = vmatprep.subr.mxu0 0.0
        %2385 = vmatpush1.msra.mxu0 0.0
        %2386 = vmatprep.subr.mxu0 0.0
        %2387 = vmatpush1.msra.mxu0 0.0
        %2388 = vmatprep.subr.mxu0 0.0
        %2389 = vmatpush1.msra.mxu0 0.0
        %2390 = vmatprep.subr.mxu0 0.0
        %2391 = vmatpush1.msra.mxu0 0.0
        %2392 = vmatprep.subr.mxu0 0.0
        %2393 = vmatpush1.msra.mxu0 0.0
        %2394 = vmatprep.subr.mxu0 0.0
        %2395 = vmatpush1.msra.mxu0 0.0
        %2396 = vmatprep.subr.mxu0 0.0
        %2397 = vmatpush1.msra.mxu0 0.0
        %2398 = vmatprep.subr.mxu0 0.0
        %2399 = vmatpush1.msra.mxu0 0.0
        %2400 = vmatprep.subr.mxu0 0.0
        %2401 = vmatpush1.msra.mxu0 0.0
        %2402 = vmatprep.subr.mxu0 0.0
        %2403 = vmatpush1.msra.mxu0 0.0
        %2404 = vmatprep.subr.mxu0 0.0
        %2405 = vmatpush1.msra.mxu0 0.0
        %2406 = vmatprep.subr.mxu0 0.0
        %2407 = vmatpush1.msra.mxu0 0.0
        %2408 = vmatprep.subr.mxu0 0.0
        %2409 = vmatpush1.msra.mxu0 0.0
        %2410 = vmatprep.subr.mxu0 0.0
        %2411 = vmatpush1.msra.mxu0 0.0
        %2412 = vmatprep.subr.mxu0 0.0
        %2413 = vmatpush1.msra.mxu0 0.0
        %2414 = vmatprep.subr.mxu0 0.0
        %2415 = vmatpush1.msra.mxu0 0.0
        %2416 = vmatprep.subr.mxu0 0.0
        %2417 = vmatpush1.msra.mxu0 0.0
        %2418 = vmatprep.subr.mxu0 0.0
        %2419 = vmatpush1.msra.mxu0 0.0
        %2420 = vmatprep.subr.mxu0 0.0
        %2421 = vmatpush1.msra.mxu0 0.0
        %2422 = vmatprep.subr.mxu0 0.0
        %2423 = vmatpush1.msra.mxu0 0.0
        %2424 = vmatprep.subr.mxu0 0.0
        %2425 = vmatpush1.msra.mxu0 0.0
        %2426 = vmatprep.subr.mxu0 0.0
        %2427 = vmatpush1.msra.mxu0 0.0
        %2428 = vmatprep.subr.mxu0 0.0
        %2429 = vmatpush1.msra.mxu0 0.0
        %2430 = vmatprep.subr.mxu0 0.0
        %2431 = vmatpush1.msra.mxu0 0.0
        %2432 = vmatprep.subr.mxu0 0.0
        %2433 = vmatpush1.msra.mxu0 0.0
        %2434 = vmatprep.subr.mxu0 0.0
        %2435 = vmatpush1.msra.mxu0 0.0
        %2436 = vmatprep.subr.mxu0 0.0
        %2437 = vmatpush1.msra.mxu0 0.0
        %2438 = vmatprep.subr.mxu0 0.0
        %2439 = vmatpush1.msra.mxu0 0.0
        %2440 = vmatprep.subr.mxu0 0.0
        %2441 = vmatpush1.msra.mxu0 0.0
        %2442 = vmatprep.mubr.f32.mxu0 0.0
        %2443 = vmatmul.mubr.f32.gmra.mrb[0].mxu0 %v2376
        %v2444 = vpop.f32.mrb[0].mxu0
        %v2445 = vadd.f32 0.0, %v2444
        %v2446 = vpop.f32.mrb[0].mxu0
        %2447 = vdwg.mxu0
        %2448 = vst.msk [vmem:[#allocation2 + $0x8] sm:$0xff] %vm1941, %v2445
        %2449 = vrot.lane.b32.xlu0 %v963, 64
        %v2450 = vpop.permute.xlu0 %2449
        %2451 = vrot.lane.b32.xlu0 %v1429, 64
        %v2452 = vpop.permute.xlu0 %2451
        %v2453 = vsel %vm1941, %v2450, 0
        %v2455 = vsel %vm1941, %v2452, 0
        %2457 = vmatprep.subr.mxu0 0.0
        %2458 = vmatpush1.xpose.msra.mxu0 %v2455
        %2459 = vmatprep.subr.mxu0 0.0
        %2460 = vmatpush1.xpose.msra.mxu0 0.0
        %2461 = vmatprep.subr.mxu0 0.0
        %2462 = vmatpush1.xpose.msra.mxu0 0.0
        %2463 = vmatprep.subr.mxu0 0.0
        %2464 = vmatpush1.xpose.msra.mxu0 0.0
        %2465 = vmatprep.subr.mxu0 0.0
        %2466 = vmatpush1.xpose.msra.mxu0 0.0
        %2467 = vmatprep.subr.mxu0 0.0
        %2468 = vmatpush1.xpose.msra.mxu0 0.0
        %2469 = vmatprep.subr.mxu0 0.0
        %2470 = vmatpush1.xpose.msra.mxu0 0.0
        %2471 = vmatprep.subr.mxu0 0.0
        %2472 = vmatpush1.xpose.msra.mxu0 0.0
        %2473 = vmatprep.subr.mxu0 0.0
        %2474 = vmatpush1.xpose.msra.mxu0 0.0
        %2475 = vmatprep.subr.mxu0 0.0
        %2476 = vmatpush1.xpose.msra.mxu0 0.0
        %2477 = vmatprep.subr.mxu0 0.0
        %2478 = vmatpush1.xpose.msra.mxu0 0.0
        %2479 = vmatprep.subr.mxu0 0.0
        %2480 = vmatpush1.xpose.msra.mxu0 0.0
        %2481 = vmatprep.subr.mxu0 0.0
        %2482 = vmatpush1.xpose.msra.mxu0 0.0
        %2483 = vmatprep.subr.mxu0 0.0
        %2484 = vmatpush1.xpose.msra.mxu0 0.0
        %2485 = vmatprep.subr.mxu0 0.0
        %2486 = vmatpush1.xpose.msra.mxu0 0.0
        %2487 = vmatprep.subr.mxu0 0.0
        %2488 = vmatpush1.xpose.msra.mxu0 0.0
        %2489 = vmatprep.subr.mxu0 0.0
        %2490 = vmatpush1.xpose.msra.mxu0 0.0
        %2491 = vmatprep.subr.mxu0 0.0
        %2492 = vmatpush1.xpose.msra.mxu0 0.0
        %2493 = vmatprep.subr.mxu0 0.0
        %2494 = vmatpush1.xpose.msra.mxu0 0.0
        %2495 = vmatprep.subr.mxu0 0.0
        %2496 = vmatpush1.xpose.msra.mxu0 0.0
        %2497 = vmatprep.subr.mxu0 0.0
        %2498 = vmatpush1.xpose.msra.mxu0 0.0
        %2499 = vmatprep.subr.mxu0 0.0
        %2500 = vmatpush1.xpose.msra.mxu0 0.0
        %2501 = vmatprep.subr.mxu0 0.0
        %2502 = vmatpush1.xpose.msra.mxu0 0.0
        %2503 = vmatprep.subr.mxu0 0.0
        %2504 = vmatpush1.xpose.msra.mxu0 0.0
        %2505 = vmatprep.subr.mxu0 0.0
        %2506 = vmatpush1.xpose.msra.mxu0 0.0
        %2507 = vmatprep.subr.mxu0 0.0
        %2508 = vmatpush1.xpose.msra.mxu0 0.0
        %2509 = vmatprep.subr.mxu0 0.0
        %2510 = vmatpush1.xpose.msra.mxu0 0.0
        %2511 = vmatprep.subr.mxu0 0.0
        %2512 = vmatpush1.xpose.msra.mxu0 0.0
        %2513 = vmatprep.subr.mxu0 0.0
        %2514 = vmatpush1.xpose.msra.mxu0 0.0
        %2515 = vmatprep.subr.mxu0 0.0
        %2516 = vmatpush1.xpose.msra.mxu0 0.0
        %2517 = vmatprep.subr.mxu0 0.0
        %2518 = vmatpush1.xpose.msra.mxu0 0.0
        %2519 = vmatprep.subr.mxu0 0.0
        %2520 = vmatpush1.xpose.msra.mxu0 0.0
        %2521 = vmatprep.mubr.f32.mxu0 0.0
        %2522 = vmatmul.mubr.f32.gmra.mrb[0].mxu0 %v2453
        %v2523 = vpop.f32.mrb[0].mxu0
        %v2524 = vadd.f32 0.0, %v2523
        %v2525 = vpop.f32.mrb[0].mxu0
        %2526 = vdwg.mxu0
        %v2527 = vmul.f32 %v2524, 0.125
        %v2528 = vsel %vm2019, -1e+09, %v2527
        %v2529 = vsel %vm2021, %v2528, -inf
        %2530 = vmax.xlane.f32.xlu0 %v2529
        %v2531 = vpop.xlane.xlu0 %2530
        %v2532 = vsub.f32 %v2528, %v2531
        %v2533 = vmul.f32 %v2532, 1.442695
        %v2534 = vpow.pop %v2533
        %v2535 = vsel %vm2021, %v2534, 0.0
        %2536 = vadd.xlane.f32.xlu0 %v2535
        %v2537 = vpop.xlane.xlu0 %2536
        %v2538 = vrcp.pop %v2537
        %v2539 = vmul.f32 %v2534, %v2538
        %s2540 = scalar_lea.vmem %s537, 24 [#allocation18]
        %2541 = vst.msk [vmem:[%s2540] sm:$0xff] %vm2021, %v2539
        %2543 = vrot.lane.b32.xlu0 %v1895, 64
        %v2544 = vpop.permute.xlu0 %2543
        %v2547 = vsel %vm2021, %v2539, 0
        %2549 = vmatprep.subr.mxu0 0.0
        %2550 = vmatpush1.msra.mxu0 %v2544
        %2551 = vmatprep.subr.mxu0 0.0
        %2552 = vmatpush1.msra.mxu0 0.0
        %2553 = vmatprep.subr.mxu0 0.0
        %2554 = vmatpush1.msra.mxu0 0.0
        %2555 = vmatprep.subr.mxu0 0.0
        %2556 = vmatpush1.msra.mxu0 0.0
        %2557 = vmatprep.subr.mxu0 0.0
        %2558 = vmatpush1.msra.mxu0 0.0
        %2559 = vmatprep.subr.mxu0 0.0
        %2560 = vmatpush1.msra.mxu0 0.0
        %2561 = vmatprep.subr.mxu0 0.0
        %2562 = vmatpush1.msra.mxu0 0.0
        %2563 = vmatprep.subr.mxu0 0.0
        %2564 = vmatpush1.msra.mxu0 0.0
        %2565 = vmatprep.subr.mxu0 0.0
        %2566 = vmatpush1.msra.mxu0 0.0
        %2567 = vmatprep.subr.mxu0 0.0
        %2568 = vmatpush1.msra.mxu0 0.0
        %2569 = vmatprep.subr.mxu0 0.0
        %2570 = vmatpush1.msra.mxu0 0.0
        %2571 = vmatprep.subr.mxu0 0.0
        %2572 = vmatpush1.msra.mxu0 0.0
        %2573 = vmatprep.subr.mxu0 0.0
        %2574 = vmatpush1.msra.mxu0 0.0
        %2575 = vmatprep.subr.mxu0 0.0
        %2576 = vmatpush1.msra.mxu0 0.0
        %2577 = vmatprep.subr.mxu0 0.0
        %2578 = vmatpush1.msra.mxu0 0.0
        %2579 = vmatprep.subr.mxu0 0.0
        %2580 = vmatpush1.msra.mxu0 0.0
        %2581 = vmatprep.subr.mxu0 0.0
        %2582 = vmatpush1.msra.mxu0 0.0
        %2583 = vmatprep.subr.mxu0 0.0
        %2584 = vmatpush1.msra.mxu0 0.0
        %2585 = vmatprep.subr.mxu0 0.0
        %2586 = vmatpush1.msra.mxu0 0.0
        %2587 = vmatprep.subr.mxu0 0.0
        %2588 = vmatpush1.msra.mxu0 0.0
        %2589 = vmatprep.subr.mxu0 0.0
        %2590 = vmatpush1.msra.mxu0 0.0
        %2591 = vmatprep.subr.mxu0 0.0
        %2592 = vmatpush1.msra.mxu0 0.0
        %2593 = vmatprep.subr.mxu0 0.0
        %2594 = vmatpush1.msra.mxu0 0.0
        %2595 = vmatprep.subr.mxu0 0.0
        %2596 = vmatpush1.msra.mxu0 0.0
        %2597 = vmatprep.subr.mxu0 0.0
        %2598 = vmatpush1.msra.mxu0 0.0
        %2599 = vmatprep.subr.mxu0 0.0
        %2600 = vmatpush1.msra.mxu0 0.0
        %2601 = vmatprep.subr.mxu0 0.0
        %2602 = vmatpush1.msra.mxu0 0.0
        %2603 = vmatprep.subr.mxu0 0.0
        %2604 = vmatpush1.msra.mxu0 0.0
        %2605 = vmatprep.subr.mxu0 0.0
        %2606 = vmatpush1.msra.mxu0 0.0
        %2607 = vmatprep.subr.mxu0 0.0
        %2608 = vmatpush1.msra.mxu0 0.0
        %2609 = vmatprep.subr.mxu0 0.0
        %2610 = vmatpush1.msra.mxu0 0.0
        %2611 = vmatprep.subr.mxu0 0.0
        %2612 = vmatpush1.msra.mxu0 0.0
        %2613 = vmatprep.mubr.f32.mxu0 0.0
        %2614 = vmatmul.mubr.f32.gmra.mrb[0].mxu0 %v2547
        %v2615 = vpop.f32.mrb[0].mxu0
        %v2616 = vadd.f32 0.0, %v2615
        %v2617 = vpop.f32.mrb[0].mxu0
        %2618 = vdwg.mxu0
        %2620 = vrot.lane.b32.xlu0 %v2616, 64
        %v2621 = vpop.permute.xlu0 %2620
        %2623 = vst.msk [vmem:[#allocation2 + $0x8] sm:$0xff] %vm2282, %v2621
        %v2625 = vsel %vm1941, %v1002, 0
        %v2628 = vsel %vm1941, %v1468, 0
        %2630 = vmatprep.subr.mxu0 0.0
        %2631 = vmatpush1.xpose.msra.mxu0 %v2628
        %2632 = vmatprep.subr.mxu0 0.0
        %2633 = vmatpush1.xpose.msra.mxu0 0.0
        %2634 = vmatprep.subr.mxu0 0.0
        %2635 = vmatpush1.xpose.msra.mxu0 0.0
        %2636 = vmatprep.subr.mxu0 0.0
        %2637 = vmatpush1.xpose.msra.mxu0 0.0
        %2638 = vmatprep.subr.mxu0 0.0
        %2639 = vmatpush1.xpose.msra.mxu0 0.0
        %2640 = vmatprep.subr.mxu0 0.0
        %2641 = vmatpush1.xpose.msra.mxu0 0.0
        %2642 = vmatprep.subr.mxu0 0.0
        %2643 = vmatpush1.xpose.msra.mxu0 0.0
        %2644 = vmatprep.subr.mxu0 0.0
        %2645 = vmatpush1.xpose.msra.mxu0 0.0
        %2646 = vmatprep.subr.mxu0 0.0
        %2647 = vmatpush1.xpose.msra.mxu0 0.0
        %2648 = vmatprep.subr.mxu0 0.0
        %2649 = vmatpush1.xpose.msra.mxu0 0.0
        %2650 = vmatprep.subr.mxu0 0.0
        %2651 = vmatpush1.xpose.msra.mxu0 0.0
        %2652 = vmatprep.subr.mxu0 0.0
        %2653 = vmatpush1.xpose.msra.mxu0 0.0
        %2654 = vmatprep.subr.mxu0 0.0
        %2655 = vmatpush1.xpose.msra.mxu0 0.0
        %2656 = vmatprep.subr.mxu0 0.0
        %2657 = vmatpush1.xpose.msra.mxu0 0.0
        %2658 = vmatprep.subr.mxu0 0.0
        %2659 = vmatpush1.xpose.msra.mxu0 0.0
        %2660 = vmatprep.subr.mxu0 0.0
        %2661 = vmatpush1.xpose.msra.mxu0 0.0
        %2662 = vmatprep.subr.mxu0 0.0
        %2663 = vmatpush1.xpose.msra.mxu0 0.0
        %2664 = vmatprep.subr.mxu0 0.0
        %2665 = vmatpush1.xpose.msra.mxu0 0.0
        %2666 = vmatprep.subr.mxu0 0.0
        %2667 = vmatpush1.xpose.msra.mxu0 0.0
        %2668 = vmatprep.subr.mxu0 0.0
        %2669 = vmatpush1.xpose.msra.mxu0 0.0
        %2670 = vmatprep.subr.mxu0 0.0
        %2671 = vmatpush1.xpose.msra.mxu0 0.0
        %2672 = vmatprep.subr.mxu0 0.0
        %2673 = vmatpush1.xpose.msra.mxu0 0.0
        %2674 = vmatprep.subr.mxu0 0.0
        %2675 = vmatpush1.xpose.msra.mxu0 0.0
        %2676 = vmatprep.subr.mxu0 0.0
        %2677 = vmatpush1.xpose.msra.mxu0 0.0
        %2678 = vmatprep.subr.mxu0 0.0
        %2679 = vmatpush1.xpose.msra.mxu0 0.0
        %2680 = vmatprep.subr.mxu0 0.0
        %2681 = vmatpush1.xpose.msra.mxu0 0.0
        %2682 = vmatprep.subr.mxu0 0.0
        %2683 = vmatpush1.xpose.msra.mxu0 0.0
        %2684 = vmatprep.subr.mxu0 0.0
        %2685 = vmatpush1.xpose.msra.mxu0 0.0
        %2686 = vmatprep.subr.mxu0 0.0
        %2687 = vmatpush1.xpose.msra.mxu0 0.0
        %2688 = vmatprep.subr.mxu0 0.0
        %2689 = vmatpush1.xpose.msra.mxu0 0.0
        %2690 = vmatprep.subr.mxu0 0.0
        %2691 = vmatpush1.xpose.msra.mxu0 0.0
        %2692 = vmatprep.subr.mxu0 0.0
        %2693 = vmatpush1.xpose.msra.mxu0 0.0
        %2694 = vmatprep.mubr.f32.mxu0 0.0
        %2695 = vmatmul.mubr.f32.gmra.mrb[0].mxu0 %v2625
        %v2696 = vpop.f32.mrb[0].mxu0
        %v2697 = vadd.f32 0.0, %v2696
        %v2698 = vpop.f32.mrb[0].mxu0
        %2699 = vdwg.mxu0
        %v2700 = vmul.f32 %v2697, 0.125
        %v2701 = vsel %vm2019, -1e+09, %v2700
        %v2702 = vsel %vm2021, %v2701, -inf
        %2703 = vmax.xlane.f32.xlu0 %v2702
        %v2704 = vpop.xlane.xlu0 %2703
        %v2705 = vsub.f32 %v2701, %v2704
        %v2706 = vmul.f32 %v2705, 1.442695
        %v2707 = vpow.pop %v2706
        %v2708 = vsel %vm2021, %v2707, 0.0
        %2709 = vadd.xlane.f32.xlu0 %v2708
        %v2710 = vpop.xlane.xlu0 %2709
        %v2711 = vrcp.pop %v2710
        %v2712 = vmul.f32 %v2707, %v2711
        %s2713 = scalar_lea.vmem %s537, 32 [#allocation18]
        %2714 = vst.msk [vmem:[%s2713] sm:$0xff] %vm2021, %v2712
        %v2716 = vsel %vm2021, %v2712, 0
        %2718 = vmatprep.subr.mxu0 0.0
        %2719 = vmatpush1.msra.mxu0 %v1934
        %2720 = vmatprep.subr.mxu0 0.0
        %2721 = vmatpush1.msra.mxu0 0.0
        %2722 = vmatprep.subr.mxu0 0.0
        %2723 = vmatpush1.msra.mxu0 0.0
        %2724 = vmatprep.subr.mxu0 0.0
        %2725 = vmatpush1.msra.mxu0 0.0
        %2726 = vmatprep.subr.mxu0 0.0
        %2727 = vmatpush1.msra.mxu0 0.0
        %2728 = vmatprep.subr.mxu0 0.0
        %2729 = vmatpush1.msra.mxu0 0.0
        %2730 = vmatprep.subr.mxu0 0.0
        %2731 = vmatpush1.msra.mxu0 0.0
        %2732 = vmatprep.subr.mxu0 0.0
        %2733 = vmatpush1.msra.mxu0 0.0
        %2734 = vmatprep.subr.mxu0 0.0
        %2735 = vmatpush1.msra.mxu0 0.0
        %2736 = vmatprep.subr.mxu0 0.0
        %2737 = vmatpush1.msra.mxu0 0.0
        %2738 = vmatprep.subr.mxu0 0.0
        %2739 = vmatpush1.msra.mxu0 0.0
        %2740 = vmatprep.subr.mxu0 0.0
        %2741 = vmatpush1.msra.mxu0 0.0
        %2742 = vmatprep.subr.mxu0 0.0
        %2743 = vmatpush1.msra.mxu0 0.0
        %2744 = vmatprep.subr.mxu0 0.0
        %2745 = vmatpush1.msra.mxu0 0.0
        %2746 = vmatprep.subr.mxu0 0.0
        %2747 = vmatpush1.msra.mxu0 0.0
        %2748 = vmatprep.subr.mxu0 0.0
        %2749 = vmatpush1.msra.mxu0 0.0
        %2750 = vmatprep.subr.mxu0 0.0
        %2751 = vmatpush1.msra.mxu0 0.0
        %2752 = vmatprep.subr.mxu0 0.0
        %2753 = vmatpush1.msra.mxu0 0.0
        %2754 = vmatprep.subr.mxu0 0.0
        %2755 = vmatpush1.msra.mxu0 0.0
        %2756 = vmatprep.subr.mxu0 0.0
        %2757 = vmatpush1.msra.mxu0 0.0
        %2758 = vmatprep.subr.mxu0 0.0
        %2759 = vmatpush1.msra.mxu0 0.0
        %2760 = vmatprep.subr.mxu0 0.0
        %2761 = vmatpush1.msra.mxu0 0.0
        %2762 = vmatprep.subr.mxu0 0.0
        %2763 = vmatpush1.msra.mxu0 0.0
        %2764 = vmatprep.subr.mxu0 0.0
        %2765 = vmatpush1.msra.mxu0 0.0
        %2766 = vmatprep.subr.mxu0 0.0
        %2767 = vmatpush1.msra.mxu0 0.0
        %2768 = vmatprep.subr.mxu0 0.0
        %2769 = vmatpush1.msra.mxu0 0.0
        %2770 = vmatprep.subr.mxu0 0.0
        %2771 = vmatpush1.msra.mxu0 0.0
        %2772 = vmatprep.subr.mxu0 0.0
        %2773 = vmatpush1.msra.mxu0 0.0
        %2774 = vmatprep.subr.mxu0 0.0
        %2775 = vmatpush1.msra.mxu0 0.0
        %2776 = vmatprep.subr.mxu0 0.0
        %2777 = vmatpush1.msra.mxu0 0.0
        %2778 = vmatprep.subr.mxu0 0.0
        %2779 = vmatpush1.msra.mxu0 0.0
        %2780 = vmatprep.subr.mxu0 0.0
        %2781 = vmatpush1.msra.mxu0 0.0
        %2782 = vmatprep.mubr.f32.mxu0 0.0
        %2783 = vmatmul.mubr.f32.gmra.mrb[0].mxu0 %v2716
        %v2784 = vpop.f32.mrb[0].mxu0
        %v2785 = vadd.f32 0.0, %v2784
        %v2786 = vpop.f32.mrb[0].mxu0
        %2787 = vdwg.mxu0
        %2788 = vst.msk [vmem:[#allocation2 + $0x10] sm:$0xff] %vm1941, %v2785
        %2789 = vrot.lane.b32.xlu0 %v1002, 64
        %v2790 = vpop.permute.xlu0 %2789
        %2791 = vrot.lane.b32.xlu0 %v1468, 64
        %v2792 = vpop.permute.xlu0 %2791
        %v2793 = vsel %vm1941, %v2790, 0
        %v2795 = vsel %vm1941, %v2792, 0
        %2797 = vmatprep.subr.mxu0 0.0
        %2798 = vmatpush1.xpose.msra.mxu0 %v2795
        %2799 = vmatprep.subr.mxu0 0.0
        %2800 = vmatpush1.xpose.msra.mxu0 0.0
        %2801 = vmatprep.subr.mxu0 0.0
        %2802 = vmatpush1.xpose.msra.mxu0 0.0
        %2803 = vmatprep.subr.mxu0 0.0
        %2804 = vmatpush1.xpose.msra.mxu0 0.0
        %2805 = vmatprep.subr.mxu0 0.0
        %2806 = vmatpush1.xpose.msra.mxu0 0.0
        %2807 = vmatprep.subr.mxu0 0.0
        %2808 = vmatpush1.xpose.msra.mxu0 0.0
        %2809 = vmatprep.subr.mxu0 0.0
        %2810 = vmatpush1.xpose.msra.mxu0 0.0
        %2811 = vmatprep.subr.mxu0 0.0
        %2812 = vmatpush1.xpose.msra.mxu0 0.0
        %2813 = vmatprep.subr.mxu0 0.0
        %2814 = vmatpush1.xpose.msra.mxu0 0.0
        %2815 = vmatprep.subr.mxu0 0.0
        %2816 = vmatpush1.xpose.msra.mxu0 0.0
        %2817 = vmatprep.subr.mxu0 0.0
        %2818 = vmatpush1.xpose.msra.mxu0 0.0
        %2819 = vmatprep.subr.mxu0 0.0
        %2820 = vmatpush1.xpose.msra.mxu0 0.0
        %2821 = vmatprep.subr.mxu0 0.0
        %2822 = vmatpush1.xpose.msra.mxu0 0.0
        %2823 = vmatprep.subr.mxu0 0.0
        %2824 = vmatpush1.xpose.msra.mxu0 0.0
        %2825 = vmatprep.subr.mxu0 0.0
        %2826 = vmatpush1.xpose.msra.mxu0 0.0
        %2827 = vmatprep.subr.mxu0 0.0
        %2828 = vmatpush1.xpose.msra.mxu0 0.0
        %2829 = vmatprep.subr.mxu0 0.0
        %2830 = vmatpush1.xpose.msra.mxu0 0.0
        %2831 = vmatprep.subr.mxu0 0.0
        %2832 = vmatpush1.xpose.msra.mxu0 0.0
        %2833 = vmatprep.subr.mxu0 0.0
        %2834 = vmatpush1.xpose.msra.mxu0 0.0
        %2835 = vmatprep.subr.mxu0 0.0
        %2836 = vmatpush1.xpose.msra.mxu0 0.0
        %2837 = vmatprep.subr.mxu0 0.0
        %2838 = vmatpush1.xpose.msra.mxu0 0.0
        %2839 = vmatprep.subr.mxu0 0.0
        %2840 = vmatpush1.xpose.msra.mxu0 0.0
        %2841 = vmatprep.subr.mxu0 0.0
        %2842 = vmatpush1.xpose.msra.mxu0 0.0
        %2843 = vmatprep.subr.mxu0 0.0
        %2844 = vmatpush1.xpose.msra.mxu0 0.0
        %2845 = vmatprep.subr.mxu0 0.0
        %2846 = vmatpush1.xpose.msra.mxu0 0.0
        %2847 = vmatprep.subr.mxu0 0.0
        %2848 = vmatpush1.xpose.msra.mxu0 0.0
        %2849 = vmatprep.subr.mxu0 0.0
        %2850 = vmatpush1.xpose.msra.mxu0 0.0
        %2851 = vmatprep.subr.mxu0 0.0
        %2852 = vmatpush1.xpose.msra.mxu0 0.0
        %2853 = vmatprep.subr.mxu0 0.0
        %2854 = vmatpush1.xpose.msra.mxu0 0.0
        %2855 = vmatprep.subr.mxu0 0.0
        %2856 = vmatpush1.xpose.msra.mxu0 0.0
        %2857 = vmatprep.subr.mxu0 0.0
        %2858 = vmatpush1.xpose.msra.mxu0 0.0
        %2859 = vmatprep.subr.mxu0 0.0
        %2860 = vmatpush1.xpose.msra.mxu0 0.0
        %2861 = vmatprep.mubr.f32.mxu0 0.0
        %2862 = vmatmul.mubr.f32.gmra.mrb[0].mxu0 %v2793
        %v2863 = vpop.f32.mrb[0].mxu0
        %v2864 = vadd.f32 0.0, %v2863
        %v2865 = vpop.f32.mrb[0].mxu0
        %2866 = vdwg.mxu0
        %v2867 = vmul.f32 %v2864, 0.125
        %v2868 = vsel %vm2019, -1e+09, %v2867
        %v2869 = vsel %vm2021, %v2868, -inf
        %2870 = vmax.xlane.f32.xlu0 %v2869
        %v2871 = vpop.xlane.xlu0 %2870
        %v2872 = vsub.f32 %v2868, %v2871
        %v2873 = vmul.f32 %v2872, 1.442695
        %v2874 = vpow.pop %v2873
        %v2875 = vsel %vm2021, %v2874, 0.0
        %2876 = vadd.xlane.f32.xlu0 %v2875
        %v2877 = vpop.xlane.xlu0 %2876
        %v2878 = vrcp.pop %v2877
        %v2879 = vmul.f32 %v2874, %v2878
        %s2880 = scalar_lea.vmem %s537, 40 [#allocation18]
        %2881 = vst.msk [vmem:[%s2880] sm:$0xff] %vm2021, %v2879
        %2883 = vrot.lane.b32.xlu0 %v1934, 64
        %v2884 = vpop.permute.xlu0 %2883
        %v2887 = vsel %vm2021, %v2879, 0
        %2889 = vmatprep.subr.mxu0 0.0
        %2890 = vmatpush1.msra.mxu0 %v2884
        %2891 = vmatprep.subr.mxu0 0.0
        %2892 = vmatpush1.msra.mxu0 0.0
        %2893 = vmatprep.subr.mxu0 0.0
        %2894 = vmatpush1.msra.mxu0 0.0
        %2895 = vmatprep.subr.mxu0 0.0
        %2896 = vmatpush1.msra.mxu0 0.0
        %2897 = vmatprep.subr.mxu0 0.0
        %2898 = vmatpush1.msra.mxu0 0.0
        %2899 = vmatprep.subr.mxu0 0.0
        %2900 = vmatpush1.msra.mxu0 0.0
        %2901 = vmatprep.subr.mxu0 0.0
        %2902 = vmatpush1.msra.mxu0 0.0
        %2903 = vmatprep.subr.mxu0 0.0
        %2904 = vmatpush1.msra.mxu0 0.0
        %2905 = vmatprep.subr.mxu0 0.0
        %2906 = vmatpush1.msra.mxu0 0.0
        %2907 = vmatprep.subr.mxu0 0.0
        %2908 = vmatpush1.msra.mxu0 0.0
        %2909 = vmatprep.subr.mxu0 0.0
        %2910 = vmatpush1.msra.mxu0 0.0
        %2911 = vmatprep.subr.mxu0 0.0
        %2912 = vmatpush1.msra.mxu0 0.0
        %2913 = vmatprep.subr.mxu0 0.0
        %2914 = vmatpush1.msra.mxu0 0.0
        %2915 = vmatprep.subr.mxu0 0.0
        %2916 = vmatpush1.msra.mxu0 0.0
        %2917 = vmatprep.subr.mxu0 0.0
        %2918 = vmatpush1.msra.mxu0 0.0
        %2919 = vmatprep.subr.mxu0 0.0
        %2920 = vmatpush1.msra.mxu0 0.0
        %2921 = vmatprep.subr.mxu0 0.0
        %2922 = vmatpush1.msra.mxu0 0.0
        %2923 = vmatprep.subr.mxu0 0.0
        %2924 = vmatpush1.msra.mxu0 0.0
        %2925 = vmatprep.subr.mxu0 0.0
        %2926 = vmatpush1.msra.mxu0 0.0
        %2927 = vmatprep.subr.mxu0 0.0
        %2928 = vmatpush1.msra.mxu0 0.0
        %2929 = vmatprep.subr.mxu0 0.0
        %2930 = vmatpush1.msra.mxu0 0.0
        %2931 = vmatprep.subr.mxu0 0.0
        %2932 = vmatpush1.msra.mxu0 0.0
        %2933 = vmatprep.subr.mxu0 0.0
        %2934 = vmatpush1.msra.mxu0 0.0
        %2935 = vmatprep.subr.mxu0 0.0
        %2936 = vmatpush1.msra.mxu0 0.0
        %2937 = vmatprep.subr.mxu0 0.0
        %2938 = vmatpush1.msra.mxu0 0.0
        %2939 = vmatprep.subr.mxu0 0.0
        %2940 = vmatpush1.msra.mxu0 0.0
        %2941 = vmatprep.subr.mxu0 0.0
        %2942 = vmatpush1.msra.mxu0 0.0
        %2943 = vmatprep.subr.mxu0 0.0
        %2944 = vmatpush1.msra.mxu0 0.0
        %2945 = vmatprep.subr.mxu0 0.0
        %2946 = vmatpush1.msra.mxu0 0.0
        %2947 = vmatprep.subr.mxu0 0.0
        %2948 = vmatpush1.msra.mxu0 0.0
        %2949 = vmatprep.subr.mxu0 0.0
        %2950 = vmatpush1.msra.mxu0 0.0
        %2951 = vmatprep.subr.mxu0 0.0
        %2952 = vmatpush1.msra.mxu0 0.0
        %2953 = vmatprep.mubr.f32.mxu0 0.0
        %2954 = vmatmul.mubr.f32.gmra.mrb[0].mxu0 %v2887
        %v2955 = vpop.f32.mrb[0].mxu0
        %v2956 = vadd.f32 0.0, %v2955
        %v2957 = vpop.f32.mrb[0].mxu0
        %2958 = vdwg.mxu0
        %2960 = vrot.lane.b32.xlu0 %v2956, 64
        %v2961 = vpop.permute.xlu0 %2960
        %2963 = vst.msk [vmem:[#allocation2 + $0x10] sm:$0xff] %vm2282, %v2961
        %v2965 = vsel %vm1941, %v1004, 0
        %v2968 = vsel %vm1941, %v1470, 0
        %2970 = vmatprep.subr.mxu0 0.0
        %2971 = vmatpush1.xpose.msra.mxu0 %v2968
        %2972 = vmatprep.subr.mxu0 0.0
        %2973 = vmatpush1.xpose.msra.mxu0 0.0
        %2974 = vmatprep.subr.mxu0 0.0
        %2975 = vmatpush1.xpose.msra.mxu0 0.0
        %2976 = vmatprep.subr.mxu0 0.0
        %2977 = vmatpush1.xpose.msra.mxu0 0.0
        %2978 = vmatprep.subr.mxu0 0.0
        %2979 = vmatpush1.xpose.msra.mxu0 0.0
        %2980 = vmatprep.subr.mxu0 0.0
        %2981 = vmatpush1.xpose.msra.mxu0 0.0
        %2982 = vmatprep.subr.mxu0 0.0
        %2983 = vmatpush1.xpose.msra.mxu0 0.0
        %2984 = vmatprep.subr.mxu0 0.0
        %2985 = vmatpush1.xpose.msra.mxu0 0.0
        %2986 = vmatprep.subr.mxu0 0.0
        %2987 = vmatpush1.xpose.msra.mxu0 0.0
        %2988 = vmatprep.subr.mxu0 0.0
        %2989 = vmatpush1.xpose.msra.mxu0 0.0
        %2990 = vmatprep.subr.mxu0 0.0
        %2991 = vmatpush1.xpose.msra.mxu0 0.0
        %2992 = vmatprep.subr.mxu0 0.0
        %2993 = vmatpush1.xpose.msra.mxu0 0.0
        %2994 = vmatprep.subr.mxu0 0.0
        %2995 = vmatpush1.xpose.msra.mxu0 0.0
        %2996 = vmatprep.subr.mxu0 0.0
        %2997 = vmatpush1.xpose.msra.mxu0 0.0
        %2998 = vmatprep.subr.mxu0 0.0
        %2999 = vmatpush1.xpose.msra.mxu0 0.0
        %3000 = vmatprep.subr.mxu0 0.0
        %3001 = vmatpush1.xpose.msra.mxu0 0.0
        %3002 = vmatprep.subr.mxu0 0.0
        %3003 = vmatpush1.xpose.msra.mxu0 0.0
        %3004 = vmatprep.subr.mxu0 0.0
        %3005 = vmatpush1.xpose.msra.mxu0 0.0
        %3006 = vmatprep.subr.mxu0 0.0
        %3007 = vmatpush1.xpose.msra.mxu0 0.0
        %3008 = vmatprep.subr.mxu0 0.0
        %3009 = vmatpush1.xpose.msra.mxu0 0.0
        %3010 = vmatprep.subr.mxu0 0.0
        %3011 = vmatpush1.xpose.msra.mxu0 0.0
        %3012 = vmatprep.subr.mxu0 0.0
        %3013 = vmatpush1.xpose.msra.mxu0 0.0
        %3014 = vmatprep.subr.mxu0 0.0
        %3015 = vmatpush1.xpose.msra.mxu0 0.0
        %3016 = vmatprep.subr.mxu0 0.0
        %3017 = vmatpush1.xpose.msra.mxu0 0.0
        %3018 = vmatprep.subr.mxu0 0.0
        %3019 = vmatpush1.xpose.msra.mxu0 0.0
        %3020 = vmatprep.subr.mxu0 0.0
        %3021 = vmatpush1.xpose.msra.mxu0 0.0
        %3022 = vmatprep.subr.mxu0 0.0
        %3023 = vmatpush1.xpose.msra.mxu0 0.0
        %3024 = vmatprep.subr.mxu0 0.0
        %3025 = vmatpush1.xpose.msra.mxu0 0.0
        %3026 = vmatprep.subr.mxu0 0.0
        %3027 = vmatpush1.xpose.msra.mxu0 0.0
        %3028 = vmatprep.subr.mxu0 0.0
        %3029 = vmatpush1.xpose.msra.mxu0 0.0
        %3030 = vmatprep.subr.mxu0 0.0
        %3031 = vmatpush1.xpose.msra.mxu0 0.0
        %3032 = vmatprep.subr.mxu0 0.0
        %3033 = vmatpush1.xpose.msra.mxu0 0.0
        %3034 = vmatprep.mubr.f32.mxu0 0.0
        %3035 = vmatmul.mubr.f32.gmra.mrb[0].mxu0 %v2965
        %v3036 = vpop.f32.mrb[0].mxu0
        %v3037 = vadd.f32 0.0, %v3036
        %v3038 = vpop.f32.mrb[0].mxu0
        %3039 = vdwg.mxu0
        %v3040 = vmul.f32 %v3037, 0.125
        %v3041 = vsel %vm2019, -1e+09, %v3040
        %v3042 = vsel %vm2021, %v3041, -inf
        %3043 = vmax.xlane.f32.xlu0 %v3042
        %v3044 = vpop.xlane.xlu0 %3043
        %v3045 = vsub.f32 %v3041, %v3044
        %v3046 = vmul.f32 %v3045, 1.442695
        %v3047 = vpow.pop %v3046
        %v3048 = vsel %vm2021, %v3047, 0.0
        %3049 = vadd.xlane.f32.xlu0 %v3048
        %v3050 = vpop.xlane.xlu0 %3049
        %v3051 = vrcp.pop %v3050
        %v3052 = vmul.f32 %v3047, %v3051
        %s3053 = scalar_lea.vmem %s537, 48 [#allocation18]
        %3054 = vst.msk [vmem:[%s3053] sm:$0xff] %vm2021, %v3052
        %v3056 = vsel %vm2021, %v3052, 0
        %3058 = vmatprep.subr.mxu0 0.0
        %3059 = vmatpush1.msra.mxu0 %v1936
        %3060 = vmatprep.subr.mxu0 0.0
        %3061 = vmatpush1.msra.mxu0 0.0
        %3062 = vmatprep.subr.mxu0 0.0
        %3063 = vmatpush1.msra.mxu0 0.0
        %3064 = vmatprep.subr.mxu0 0.0
        %3065 = vmatpush1.msra.mxu0 0.0
        %3066 = vmatprep.subr.mxu0 0.0
        %3067 = vmatpush1.msra.mxu0 0.0
        %3068 = vmatprep.subr.mxu0 0.0
        %3069 = vmatpush1.msra.mxu0 0.0
        %3070 = vmatprep.subr.mxu0 0.0
        %3071 = vmatpush1.msra.mxu0 0.0
        %3072 = vmatprep.subr.mxu0 0.0
        %3073 = vmatpush1.msra.mxu0 0.0
        %3074 = vmatprep.subr.mxu0 0.0
        %3075 = vmatpush1.msra.mxu0 0.0
        %3076 = vmatprep.subr.mxu0 0.0
        %3077 = vmatpush1.msra.mxu0 0.0
        %3078 = vmatprep.subr.mxu0 0.0
        %3079 = vmatpush1.msra.mxu0 0.0
        %3080 = vmatprep.subr.mxu0 0.0
        %3081 = vmatpush1.msra.mxu0 0.0
        %3082 = vmatprep.subr.mxu0 0.0
        %3083 = vmatpush1.msra.mxu0 0.0
        %3084 = vmatprep.subr.mxu0 0.0
        %3085 = vmatpush1.msra.mxu0 0.0
        %3086 = vmatprep.subr.mxu0 0.0
        %3087 = vmatpush1.msra.mxu0 0.0
        %3088 = vmatprep.subr.mxu0 0.0
        %3089 = vmatpush1.msra.mxu0 0.0
        %3090 = vmatprep.subr.mxu0 0.0
        %3091 = vmatpush1.msra.mxu0 0.0
        %3092 = vmatprep.subr.mxu0 0.0
        %3093 = vmatpush1.msra.mxu0 0.0
        %3094 = vmatprep.subr.mxu0 0.0
        %3095 = vmatpush1.msra.mxu0 0.0
        %3096 = vmatprep.subr.mxu0 0.0
        %3097 = vmatpush1.msra.mxu0 0.0
        %3098 = vmatprep.subr.mxu0 0.0
        %3099 = vmatpush1.msra.mxu0 0.0
        %3100 = vmatprep.subr.mxu0 0.0
        %3101 = vmatpush1.msra.mxu0 0.0
        %3102 = vmatprep.subr.mxu0 0.0
        %3103 = vmatpush1.msra.mxu0 0.0
        %3104 = vmatprep.subr.mxu0 0.0
        %3105 = vmatpush1.msra.mxu0 0.0
        %3106 = vmatprep.subr.mxu0 0.0
        %3107 = vmatpush1.msra.mxu0 0.0
        %3108 = vmatprep.subr.mxu0 0.0
        %3109 = vmatpush1.msra.mxu0 0.0
        %3110 = vmatprep.subr.mxu0 0.0
        %3111 = vmatpush1.msra.mxu0 0.0
        %3112 = vmatprep.subr.mxu0 0.0
        %3113 = vmatpush1.msra.mxu0 0.0
        %3114 = vmatprep.subr.mxu0 0.0
        %3115 = vmatpush1.msra.mxu0 0.0
        %3116 = vmatprep.subr.mxu0 0.0
        %3117 = vmatpush1.msra.mxu0 0.0
        %3118 = vmatprep.subr.mxu0 0.0
        %3119 = vmatpush1.msra.mxu0 0.0
        %3120 = vmatprep.subr.mxu0 0.0
        %3121 = vmatpush1.msra.mxu0 0.0
        %3122 = vmatprep.mubr.f32.mxu0 0.0
        %3123 = vmatmul.mubr.f32.gmra.mrb[0].mxu0 %v3056
        %v3124 = vpop.f32.mrb[0].mxu0
        %v3125 = vadd.f32 0.0, %v3124
        %v3126 = vpop.f32.mrb[0].mxu0
        %3127 = vdwg.mxu0
        %3128 = vst.msk [vmem:[#allocation2 + $0x18] sm:$0xff] %vm1941, %v3125
        %3129 = vrot.lane.b32.xlu0 %v1004, 64
        %v3130 = vpop.permute.xlu0 %3129
        %3131 = vrot.lane.b32.xlu0 %v1470, 64
        %v3132 = vpop.permute.xlu0 %3131
        %v3133 = vsel %vm1941, %v3130, 0
        %v3135 = vsel %vm1941, %v3132, 0
        %3137 = vmatprep.subr.mxu0 0.0
        %3138 = vmatpush1.xpose.msra.mxu0 %v3135
        %3139 = vmatprep.subr.mxu0 0.0
        %3140 = vmatpush1.xpose.msra.mxu0 0.0
        %3141 = vmatprep.subr.mxu0 0.0
        %3142 = vmatpush1.xpose.msra.mxu0 0.0
        %3143 = vmatprep.subr.mxu0 0.0
        %3144 = vmatpush1.xpose.msra.mxu0 0.0
        %3145 = vmatprep.subr.mxu0 0.0
        %3146 = vmatpush1.xpose.msra.mxu0 0.0
        %3147 = vmatprep.subr.mxu0 0.0
        %3148 = vmatpush1.xpose.msra.mxu0 0.0
        %3149 = vmatprep.subr.mxu0 0.0
        %3150 = vmatpush1.xpose.msra.mxu0 0.0
        %3151 = vmatprep.subr.mxu0 0.0
        %3152 = vmatpush1.xpose.msra.mxu0 0.0
        %3153 = vmatprep.subr.mxu0 0.0
        %3154 = vmatpush1.xpose.msra.mxu0 0.0
        %3155 = vmatprep.subr.mxu0 0.0
        %3156 = vmatpush1.xpose.msra.mxu0 0.0
        %3157 = vmatprep.subr.mxu0 0.0
        %3158 = vmatpush1.xpose.msra.mxu0 0.0
        %3159 = vmatprep.subr.mxu0 0.0
        %3160 = vmatpush1.xpose.msra.mxu0 0.0
        %3161 = vmatprep.subr.mxu0 0.0
        %3162 = vmatpush1.xpose.msra.mxu0 0.0
        %3163 = vmatprep.subr.mxu0 0.0
        %3164 = vmatpush1.xpose.msra.mxu0 0.0
        %3165 = vmatprep.subr.mxu0 0.0
        %3166 = vmatpush1.xpose.msra.mxu0 0.0
        %3167 = vmatprep.subr.mxu0 0.0
        %3168 = vmatpush1.xpose.msra.mxu0 0.0
        %3169 = vmatprep.subr.mxu0 0.0
        %3170 = vmatpush1.xpose.msra.mxu0 0.0
        %3171 = vmatprep.subr.mxu0 0.0
        %3172 = vmatpush1.xpose.msra.mxu0 0.0
        %3173 = vmatprep.subr.mxu0 0.0
        %3174 = vmatpush1.xpose.msra.mxu0 0.0
        %3175 = vmatprep.subr.mxu0 0.0
        %3176 = vmatpush1.xpose.msra.mxu0 0.0
        %3177 = vmatprep.subr.mxu0 0.0
        %3178 = vmatpush1.xpose.msra.mxu0 0.0
        %3179 = vmatprep.subr.mxu0 0.0
        %3180 = vmatpush1.xpose.msra.mxu0 0.0
        %3181 = vmatprep.subr.mxu0 0.0
        %3182 = vmatpush1.xpose.msra.mxu0 0.0
        %3183 = vmatprep.subr.mxu0 0.0
        %3184 = vmatpush1.xpose.msra.mxu0 0.0
        %3185 = vmatprep.subr.mxu0 0.0
        %3186 = vmatpush1.xpose.msra.mxu0 0.0
        %3187 = vmatprep.subr.mxu0 0.0
        %3188 = vmatpush1.xpose.msra.mxu0 0.0
        %3189 = vmatprep.subr.mxu0 0.0
        %3190 = vmatpush1.xpose.msra.mxu0 0.0
        %3191 = vmatprep.subr.mxu0 0.0
        %3192 = vmatpush1.xpose.msra.mxu0 0.0
        %3193 = vmatprep.subr.mxu0 0.0
        %3194 = vmatpush1.xpose.msra.mxu0 0.0
        %3195 = vmatprep.subr.mxu0 0.0
        %3196 = vmatpush1.xpose.msra.mxu0 0.0
        %3197 = vmatprep.subr.mxu0 0.0
        %3198 = vmatpush1.xpose.msra.mxu0 0.0
        %3199 = vmatprep.subr.mxu0 0.0
        %3200 = vmatpush1.xpose.msra.mxu0 0.0
        %3201 = vmatprep.mubr.f32.mxu0 0.0
        %3202 = vmatmul.mubr.f32.gmra.mrb[0].mxu0 %v3133
        %v3203 = vpop.f32.mrb[0].mxu0
        %v3204 = vadd.f32 0.0, %v3203
        %v3205 = vpop.f32.mrb[0].mxu0
        %3206 = vdwg.mxu0
        %v3207 = vmul.f32 %v3204, 0.125
        %v3208 = vsel %vm2019, -1e+09, %v3207
        %v3209 = vsel %vm2021, %v3208, -inf
        %3210 = vmax.xlane.f32.xlu0 %v3209
        %v3211 = vpop.xlane.xlu0 %3210
        %v3212 = vsub.f32 %v3208, %v3211
        %v3213 = vmul.f32 %v3212, 1.442695
        %v3214 = vpow.pop %v3213
        %v3215 = vsel %vm2021, %v3214, 0.0
        %3216 = vadd.xlane.f32.xlu0 %v3215
        %v3217 = vpop.xlane.xlu0 %3216
        %v3218 = vrcp.pop %v3217
        %v3219 = vmul.f32 %v3214, %v3218
        %s3220 = scalar_lea.vmem %s537, 56 [#allocation18]
        %3221 = vst.msk [vmem:[%s3220] sm:$0xff] %vm2021, %v3219
        %3223 = vrot.lane.b32.xlu0 %v1936, 64
        %v3224 = vpop.permute.xlu0 %3223
        %v3227 = vsel %vm2021, %v3219, 0
        %3229 = vmatprep.subr.mxu0 0.0
        %3230 = vmatpush1.msra.mxu0 %v3224
        %3231 = vmatprep.subr.mxu0 0.0
        %3232 = vmatpush1.msra.mxu0 0.0
        %3233 = vmatprep.subr.mxu0 0.0
        %3234 = vmatpush1.msra.mxu0 0.0
        %3235 = vmatprep.subr.mxu0 0.0
        %3236 = vmatpush1.msra.mxu0 0.0
        %3237 = vmatprep.subr.mxu0 0.0
        %3238 = vmatpush1.msra.mxu0 0.0
        %3239 = vmatprep.subr.mxu0 0.0
        %3240 = vmatpush1.msra.mxu0 0.0
        %3241 = vmatprep.subr.mxu0 0.0
        %3242 = vmatpush1.msra.mxu0 0.0
        %3243 = vmatprep.subr.mxu0 0.0
        %3244 = vmatpush1.msra.mxu0 0.0
        %3245 = vmatprep.subr.mxu0 0.0
        %3246 = vmatpush1.msra.mxu0 0.0
        %3247 = vmatprep.subr.mxu0 0.0
        %3248 = vmatpush1.msra.mxu0 0.0
        %3249 = vmatprep.subr.mxu0 0.0
        %3250 = vmatpush1.msra.mxu0 0.0
        %3251 = vmatprep.subr.mxu0 0.0
        %3252 = vmatpush1.msra.mxu0 0.0
        %3253 = vmatprep.subr.mxu0 0.0
        %3254 = vmatpush1.msra.mxu0 0.0
        %3255 = vmatprep.subr.mxu0 0.0
        %3256 = vmatpush1.msra.mxu0 0.0
        %3257 = vmatprep.subr.mxu0 0.0
        %3258 = vmatpush1.msra.mxu0 0.0
        %3259 = vmatprep.subr.mxu0 0.0
        %3260 = vmatpush1.msra.mxu0 0.0
        %3261 = vmatprep.subr.mxu0 0.0
        %3262 = vmatpush1.msra.mxu0 0.0
        %3263 = vmatprep.subr.mxu0 0.0
        %3264 = vmatpush1.msra.mxu0 0.0
        %3265 = vmatprep.subr.mxu0 0.0
        %3266 = vmatpush1.msra.mxu0 0.0
        %3267 = vmatprep.subr.mxu0 0.0
        %3268 = vmatpush1.msra.mxu0 0.0
        %3269 = vmatprep.subr.mxu0 0.0
        %3270 = vmatpush1.msra.mxu0 0.0
        %3271 = vmatprep.subr.mxu0 0.0
        %3272 = vmatpush1.msra.mxu0 0.0
        %3273 = vmatprep.subr.mxu0 0.0
        %3274 = vmatpush1.msra.mxu0 0.0
        %3275 = vmatprep.subr.mxu0 0.0
        %3276 = vmatpush1.msra.mxu0 0.0
        %3277 = vmatprep.subr.mxu0 0.0
        %3278 = vmatpush1.msra.mxu0 0.0
        %3279 = vmatprep.subr.mxu0 0.0
        %3280 = vmatpush1.msra.mxu0 0.0
        %3281 = vmatprep.subr.mxu0 0.0
        %3282 = vmatpush1.msra.mxu0 0.0
        %3283 = vmatprep.subr.mxu0 0.0
        %3284 = vmatpush1.msra.mxu0 0.0
        %3285 = vmatprep.subr.mxu0 0.0
        %3286 = vmatpush1.msra.mxu0 0.0
        %3287 = vmatprep.subr.mxu0 0.0
        %3288 = vmatpush1.msra.mxu0 0.0
        %3289 = vmatprep.subr.mxu0 0.0
        %3290 = vmatpush1.msra.mxu0 0.0
        %3291 = vmatprep.subr.mxu0 0.0
        %3292 = vmatpush1.msra.mxu0 0.0
        %3293 = vmatprep.mubr.f32.mxu0 0.0
        %3294 = vmatmul.mubr.f32.gmra.mrb[0].mxu0 %v3227
        %v3295 = vpop.f32.mrb[0].mxu0
        %v3296 = vadd.f32 0.0, %v3295
        %v3297 = vpop.f32.mrb[0].mxu0
        %3298 = vdwg.mxu0
        %3300 = vrot.lane.b32.xlu0 %v3296, 64
        %v3301 = vpop.permute.xlu0 %3300
        %3303 = vst.msk [vmem:[#allocation2 + $0x18] sm:$0xff] %vm2282, %v3301
        %v3304 = vld [vmem:[#allocation2] sm:$0xff]
        %v3305 = vld [vmem:[#allocation2 + $0x8] sm:$0xff]
        %v3306 = vld [vmem:[#allocation2 + $0x10] sm:$0xff]
        %v3307 = vld [vmem:[#allocation2 + $0x18] sm:$0xff]
        %v3308 = vpack.c.bf16 %v3304, %v3304
        %v3309 = vpack.c.bf16 %v3305, %v3305
        %v3310 = vpack.c.bf16 %v3306, %v3306
        %v3311 = vpack.c.bf16 %v3307, %v3307
        %v3312 = vld [vmem:[#allocation12] sm:$0xff]
        %v3313 = vld [vmem:[#allocation12 + $0x8] sm:$0xff]
        %v3314 = vld [vmem:[#allocation12 + $0x10] sm:$0xff]
        %v3315 = vld [vmem:[#allocation12 + $0x18] sm:$0xff]
        %v3316 = vld [vmem:[#allocation12 + $0x20] sm:$0xff]
        %v3317 = vld [vmem:[#allocation12 + $0x28] sm:$0xff]
        %v3318 = vld [vmem:[#allocation12 + $0x30] sm:$0xff]
        %v3319 = vld [vmem:[#allocation12 + $0x38] sm:$0xff]
        %v3320 = vld [vmem:[#allocation12 + $0x40] sm:$0xff]
        %v3321 = vld [vmem:[#allocation12 + $0x48] sm:$0xff]
        %v3322 = vld [vmem:[#allocation12 + $0x50] sm:$0xff]
        %v3323 = vld [vmem:[#allocation12 + $0x58] sm:$0xff]
        %v3324 = vld [vmem:[#allocation12 + $0x60] sm:$0xff]
        %v3325 = vld [vmem:[#allocation12 + $0x68] sm:$0xff]
        %v3326 = vld [vmem:[#allocation12 + $0x70] sm:$0xff]
        %v3327 = vld [vmem:[#allocation12 + $0x78] sm:$0xff]
        %v3328 = vld [vmem:[#allocation12 + $0x80] sm:$0xff]
        %v3329 = vld [vmem:[#allocation12 + $0x88] sm:$0xff]
        %v3330 = vld [vmem:[#allocation12 + $0x90] sm:$0xff]
        %v3331 = vld [vmem:[#allocation12 + $0x98] sm:$0xff]
        %v3332 = vld [vmem:[#allocation12 + $0xa0] sm:$0xff]
        %v3333 = vld [vmem:[#allocation12 + $0xa8] sm:$0xff]
        %v3334 = vld [vmem:[#allocation12 + $0xb0] sm:$0xff]
        %v3335 = vld [vmem:[#allocation12 + $0xb8] sm:$0xff]
        %v3336 = vld [vmem:[#allocation12 + $0xc0] sm:$0xff]
        %v3337 = vld [vmem:[#allocation12 + $0xc8] sm:$0xff]
        %v3338 = vld [vmem:[#allocation12 + $0xd0] sm:$0xff]
        %v3339 = vld [vmem:[#allocation12 + $0xd8] sm:$0xff]
        %v3340 = vld [vmem:[#allocation12 + $0xe0] sm:$0xff]
        %v3341 = vld [vmem:[#allocation12 + $0xe8] sm:$0xff]
        %v3342 = vld [vmem:[#allocation12 + $0xf0] sm:$0xff]
        %v3343 = vld [vmem:[#allocation12 + $0xf8] sm:$0xff]
        %v3344 = vld [vmem:[#allocation12 + $0x100] sm:$0xff]
        %v3345 = vld [vmem:[#allocation12 + $0x108] sm:$0xff]
        %v3346 = vld [vmem:[#allocation12 + $0x110] sm:$0xff]
        %v3347 = vld [vmem:[#allocation12 + $0x118] sm:$0xff]
        %v3348 = vld [vmem:[#allocation12 + $0x120] sm:$0xff]
        %v3349 = vld [vmem:[#allocation12 + $0x128] sm:$0xff]
        %v3350 = vld [vmem:[#allocation12 + $0x130] sm:$0xff]
        %v3351 = vld [vmem:[#allocation12 + $0x138] sm:$0xff]
        %v3352 = vld [vmem:[#allocation12 + $0x140] sm:$0xff]
        %v3353 = vld [vmem:[#allocation12 + $0x148] sm:$0xff]
        %v3354 = vld [vmem:[#allocation12 + $0x150] sm:$0xff]
        %v3355 = vld [vmem:[#allocation12 + $0x158] sm:$0xff]
        %v3356 = vld [vmem:[#allocation12 + $0x160] sm:$0xff]
        %v3357 = vld [vmem:[#allocation12 + $0x168] sm:$0xff]
        %v3358 = vld [vmem:[#allocation12 + $0x170] sm:$0xff]
        %v3359 = vld [vmem:[#allocation12 + $0x178] sm:$0xff]
        %v3360 = vld [vmem:[#allocation12 + $0x180] sm:$0xff]
        %v3361 = vld [vmem:[#allocation12 + $0x188] sm:$0xff]
        %v3362 = vld [vmem:[#allocation12 + $0x190] sm:$0xff]
        %v3363 = vld [vmem:[#allocation12 + $0x198] sm:$0xff]
        %v3364 = vld [vmem:[#allocation12 + $0x1a0] sm:$0xff]
        %v3365 = vld [vmem:[#allocation12 + $0x1a8] sm:$0xff]
        %v3366 = vld [vmem:[#allocation12 + $0x1b0] sm:$0xff]
        %v3367 = vld [vmem:[#allocation12 + $0x1b8] sm:$0xff]
        %v3368 = vld [vmem:[#allocation12 + $0x1c0] sm:$0xff]
        %v3369 = vld [vmem:[#allocation12 + $0x1c8] sm:$0xff]
        %v3370 = vld [vmem:[#allocation12 + $0x1d0] sm:$0xff]
        %v3371 = vld [vmem:[#allocation12 + $0x1d8] sm:$0xff]
        %v3372 = vld [vmem:[#allocation12 + $0x1e0] sm:$0xff]
        %v3373 = vld [vmem:[#allocation12 + $0x1e8] sm:$0xff]
        %v3374 = vld [vmem:[#allocation12 + $0x1f0] sm:$0xff]
        %v3375 = vld [vmem:[#allocation12 + $0x1f8] sm:$0xff]
        %v3440 = vunpack.c.l.b16 %v3312
        %v3441 = vunpack.c.h.b16 %v3312
        %v3442 = vunpack.c.l.b16 %v3313
        %v3443 = vunpack.c.h.b16 %v3313
        %v3444 = vunpack.c.l.b16 %v3314
        %v3445 = vunpack.c.h.b16 %v3314
        %v3446 = vunpack.c.l.b16 %v3315
        %v3447 = vunpack.c.h.b16 %v3315
        %v3448 = vunpack.c.l.b16 %v3316
        %v3449 = vunpack.c.h.b16 %v3316
        %v3450 = vunpack.c.l.b16 %v3317
        %v3451 = vunpack.c.h.b16 %v3317
        %v3452 = vunpack.c.l.b16 %v3318
        %v3453 = vunpack.c.h.b16 %v3318
        %v3454 = vunpack.c.l.b16 %v3319
        %v3455 = vunpack.c.h.b16 %v3319
        %v3456 = vunpack.c.l.b16 %v3320
        %v3457 = vunpack.c.h.b16 %v3320
        %v3458 = vunpack.c.l.b16 %v3321
        %v3459 = vunpack.c.h.b16 %v3321
        %v3460 = vunpack.c.l.b16 %v3322
        %v3461 = vunpack.c.h.b16 %v3322
        %v3462 = vunpack.c.l.b16 %v3323
        %v3463 = vunpack.c.h.b16 %v3323
        %v3464 = vunpack.c.l.b16 %v3324
        %v3465 = vunpack.c.h.b16 %v3324
        %v3466 = vunpack.c.l.b16 %v3325
        %v3467 = vunpack.c.h.b16 %v3325
        %v3468 = vunpack.c.l.b16 %v3326
        %v3469 = vunpack.c.h.b16 %v3326
        %v3470 = vunpack.c.l.b16 %v3327
        %v3471 = vunpack.c.h.b16 %v3327
        %v3472 = vunpack.c.l.b16 %v3328
        %v3473 = vunpack.c.h.b16 %v3328
        %v3474 = vunpack.c.l.b16 %v3329
        %v3475 = vunpack.c.h.b16 %v3329
        %v3476 = vunpack.c.l.b16 %v3330
        %v3477 = vunpack.c.h.b16 %v3330
        %v3478 = vunpack.c.l.b16 %v3331
        %v3479 = vunpack.c.h.b16 %v3331
        %v3480 = vunpack.c.l.b16 %v3332
        %v3481 = vunpack.c.h.b16 %v3332
        %v3482 = vunpack.c.l.b16 %v3333
        %v3483 = vunpack.c.h.b16 %v3333
        %v3484 = vunpack.c.l.b16 %v3334
        %v3485 = vunpack.c.h.b16 %v3334
        %v3486 = vunpack.c.l.b16 %v3335
        %v3487 = vunpack.c.h.b16 %v3335
        %v3488 = vunpack.c.l.b16 %v3336
        %v3489 = vunpack.c.h.b16 %v3336
        %v3490 = vunpack.c.l.b16 %v3337
        %v3491 = vunpack.c.h.b16 %v3337
        %v3492 = vunpack.c.l.b16 %v3338
        %v3493 = vunpack.c.h.b16 %v3338
        %v3494 = vunpack.c.l.b16 %v3339
        %v3495 = vunpack.c.h.b16 %v3339
        %v3496 = vunpack.c.l.b16 %v3340
        %v3497 = vunpack.c.h.b16 %v3340
        %v3498 = vunpack.c.l.b16 %v3341
        %v3499 = vunpack.c.h.b16 %v3341
        %v3500 = vunpack.c.l.b16 %v3342
        %v3501 = vunpack.c.h.b16 %v3342
        %v3502 = vunpack.c.l.b16 %v3343
        %v3503 = vunpack.c.h.b16 %v3343
        %v3504 = vunpack.c.l.b16 %v3344
        %v3505 = vunpack.c.h.b16 %v3344
        %v3506 = vunpack.c.l.b16 %v3345
        %v3507 = vunpack.c.h.b16 %v3345
        %v3508 = vunpack.c.l.b16 %v3346
        %v3509 = vunpack.c.h.b16 %v3346
        %v3510 = vunpack.c.l.b16 %v3347
        %v3511 = vunpack.c.h.b16 %v3347
        %v3512 = vunpack.c.l.b16 %v3348
        %v3513 = vunpack.c.h.b16 %v3348
        %v3514 = vunpack.c.l.b16 %v3349
        %v3515 = vunpack.c.h.b16 %v3349
        %v3516 = vunpack.c.l.b16 %v3350
        %v3517 = vunpack.c.h.b16 %v3350
        %v3518 = vunpack.c.l.b16 %v3351
        %v3519 = vunpack.c.h.b16 %v3351
        %v3520 = vunpack.c.l.b16 %v3352
        %v3521 = vunpack.c.h.b16 %v3352
        %v3522 = vunpack.c.l.b16 %v3353
        %v3523 = vunpack.c.h.b16 %v3353
        %v3524 = vunpack.c.l.b16 %v3354
        %v3525 = vunpack.c.h.b16 %v3354
        %v3526 = vunpack.c.l.b16 %v3355
        %v3527 = vunpack.c.h.b16 %v3355
        %v3528 = vunpack.c.l.b16 %v3356
        %v3529 = vunpack.c.h.b16 %v3356
        %v3530 = vunpack.c.l.b16 %v3357
        %v3531 = vunpack.c.h.b16 %v3357
        %v3532 = vunpack.c.l.b16 %v3358
        %v3533 = vunpack.c.h.b16 %v3358
        %v3534 = vunpack.c.l.b16 %v3359
        %v3535 = vunpack.c.h.b16 %v3359
        %v3536 = vunpack.c.l.b16 %v3360
        %v3537 = vunpack.c.h.b16 %v3360
        %v3538 = vunpack.c.l.b16 %v3361
        %v3539 = vunpack.c.h.b16 %v3361
        %v3540 = vunpack.c.l.b16 %v3362
        %v3541 = vunpack.c.h.b16 %v3362
        %v3542 = vunpack.c.l.b16 %v3363
        %v3543 = vunpack.c.h.b16 %v3363
        %v3544 = vunpack.c.l.b16 %v3364
        %v3545 = vunpack.c.h.b16 %v3364
        %v3546 = vunpack.c.l.b16 %v3365
        %v3547 = vunpack.c.h.b16 %v3365
        %v3548 = vunpack.c.l.b16 %v3366
        %v3549 = vunpack.c.h.b16 %v3366
        %v3550 = vunpack.c.l.b16 %v3367
        %v3551 = vunpack.c.h.b16 %v3367
        %v3552 = vunpack.c.l.b16 %v3368
        %v3553 = vunpack.c.h.b16 %v3368
        %v3554 = vunpack.c.l.b16 %v3369
        %v3555 = vunpack.c.h.b16 %v3369
        %v3556 = vunpack.c.l.b16 %v3370
        %v3557 = vunpack.c.h.b16 %v3370
        %v3558 = vunpack.c.l.b16 %v3371
        %v3559 = vunpack.c.h.b16 %v3371
        %v3560 = vunpack.c.l.b16 %v3372
        %v3561 = vunpack.c.h.b16 %v3372
        %v3562 = vunpack.c.l.b16 %v3373
        %v3563 = vunpack.c.h.b16 %v3373
        %v3564 = vunpack.c.l.b16 %v3374
        %v3565 = vunpack.c.h.b16 %v3374
        %v3566 = vunpack.c.l.b16 %v3375
        %v3567 = vunpack.c.h.b16 %v3375
        %v3568 = vpack.c.b16 %v3442, %v3440
        %v3569 = vpack.c.b16 %v3443, %v3441
        %v3570 = vpack.c.b16 %v3446, %v3444
        %v3571 = vpack.c.b16 %v3447, %v3445
        %v3572 = vpack.c.b16 %v3450, %v3448
        %v3573 = vpack.c.b16 %v3451, %v3449
        %v3574 = vpack.c.b16 %v3454, %v3452
        %v3575 = vpack.c.b16 %v3455, %v3453
        %v3576 = vpack.c.b16 %v3458, %v3456
        %v3577 = vpack.c.b16 %v3459, %v3457
        %v3578 = vpack.c.b16 %v3462, %v3460
        %v3579 = vpack.c.b16 %v3463, %v3461
        %v3580 = vpack.c.b16 %v3466, %v3464
        %v3581 = vpack.c.b16 %v3467, %v3465
        %v3582 = vpack.c.b16 %v3470, %v3468
        %v3583 = vpack.c.b16 %v3471, %v3469
        %v3584 = vpack.c.b16 %v3474, %v3472
        %v3585 = vpack.c.b16 %v3475, %v3473
        %v3586 = vpack.c.b16 %v3478, %v3476
        %v3587 = vpack.c.b16 %v3479, %v3477
        %v3588 = vpack.c.b16 %v3482, %v3480
        %v3589 = vpack.c.b16 %v3483, %v3481
        %v3590 = vpack.c.b16 %v3486, %v3484
        %v3591 = vpack.c.b16 %v3487, %v3485
        %v3592 = vpack.c.b16 %v3490, %v3488
        %v3593 = vpack.c.b16 %v3491, %v3489
        %v3594 = vpack.c.b16 %v3494, %v3492
        %v3595 = vpack.c.b16 %v3495, %v3493
        %v3596 = vpack.c.b16 %v3498, %v3496
        %v3597 = vpack.c.b16 %v3499, %v3497
        %v3598 = vpack.c.b16 %v3502, %v3500
        %v3599 = vpack.c.b16 %v3503, %v3501
        %v3600 = vpack.c.b16 %v3506, %v3504
        %v3601 = vpack.c.b16 %v3507, %v3505
        %v3602 = vpack.c.b16 %v3510, %v3508
        %v3603 = vpack.c.b16 %v3511, %v3509
        %v3604 = vpack.c.b16 %v3514, %v3512
        %v3605 = vpack.c.b16 %v3515, %v3513
        %v3606 = vpack.c.b16 %v3518, %v3516
        %v3607 = vpack.c.b16 %v3519, %v3517
        %v3608 = vpack.c.b16 %v3522, %v3520
        %v3609 = vpack.c.b16 %v3523, %v3521
        %v3610 = vpack.c.b16 %v3526, %v3524
        %v3611 = vpack.c.b16 %v3527, %v3525
        %v3612 = vpack.c.b16 %v3530, %v3528
        %v3613 = vpack.c.b16 %v3531, %v3529
        %v3614 = vpack.c.b16 %v3534, %v3532
        %v3615 = vpack.c.b16 %v3535, %v3533
        %v3616 = vpack.c.b16 %v3538, %v3536
        %v3617 = vpack.c.b16 %v3539, %v3537
        %v3618 = vpack.c.b16 %v3542, %v3540
        %v3619 = vpack.c.b16 %v3543, %v3541
        %v3620 = vpack.c.b16 %v3546, %v3544
        %v3621 = vpack.c.b16 %v3547, %v3545
        %v3622 = vpack.c.b16 %v3550, %v3548
        %v3623 = vpack.c.b16 %v3551, %v3549
        %v3624 = vpack.c.b16 %v3554, %v3552
        %v3625 = vpack.c.b16 %v3555, %v3553
        %v3626 = vpack.c.b16 %v3558, %v3556
        %v3627 = vpack.c.b16 %v3559, %v3557
        %v3628 = vpack.c.b16 %v3562, %v3560
        %v3629 = vpack.c.b16 %v3563, %v3561
        %v3630 = vpack.c.b16 %v3566, %v3564
        %v3631 = vpack.c.b16 %v3567, %v3565
        %3696 = vmatprep.subr.bf16.mxu0 %v3569
        %3697 = vmatpush1.bf16.msra.mxu0 %v3568
        %3698 = vmatprep.subr.bf16.mxu0 %v3571
        %3699 = vmatpush1.bf16.msra.mxu0 %v3570
        %3700 = vmatprep.subr.bf16.mxu0 %v3573
        %3701 = vmatpush1.bf16.msra.mxu0 %v3572
        %3702 = vmatprep.subr.bf16.mxu0 %v3575
        %3703 = vmatpush1.bf16.msra.mxu0 %v3574
        %3704 = vmatprep.subr.bf16.mxu0 %v3577
        %3705 = vmatpush1.bf16.msra.mxu0 %v3576
        %3706 = vmatprep.subr.bf16.mxu0 %v3579
        %3707 = vmatpush1.bf16.msra.mxu0 %v3578
        %3708 = vmatprep.subr.bf16.mxu0 %v3581
        %3709 = vmatpush1.bf16.msra.mxu0 %v3580
        %3710 = vmatprep.subr.bf16.mxu0 %v3583
        %3711 = vmatpush1.bf16.msra.mxu0 %v3582
        %3712 = vmatprep.subr.bf16.mxu0 %v3585
        %3713 = vmatpush1.bf16.msra.mxu0 %v3584
        %3714 = vmatprep.subr.bf16.mxu0 %v3587
        %3715 = vmatpush1.bf16.msra.mxu0 %v3586
        %3716 = vmatprep.subr.bf16.mxu0 %v3589
        %3717 = vmatpush1.bf16.msra.mxu0 %v3588
        %3718 = vmatprep.subr.bf16.mxu0 %v3591
        %3719 = vmatpush1.bf16.msra.mxu0 %v3590
        %3720 = vmatprep.subr.bf16.mxu0 %v3593
        %3721 = vmatpush1.bf16.msra.mxu0 %v3592
        %3722 = vmatprep.subr.bf16.mxu0 %v3595
        %3723 = vmatpush1.bf16.msra.mxu0 %v3594
        %3724 = vmatprep.subr.bf16.mxu0 %v3597
        %3725 = vmatpush1.bf16.msra.mxu0 %v3596
        %3726 = vmatprep.subr.bf16.mxu0 %v3599
        %3727 = vmatpush1.bf16.msra.mxu0 %v3598
        %3728 = vmatprep.mubr.bf16.mxu0 %v3309
        %3729 = vmatmul.mubr.bf16.gmra.mrb[0].mxu0 %v3308
        %v3730 = vpop.f32.mrb[0].mxu0
        %v3731 = vadd.f32 0.0, %v3730
        %v3732 = vpop.f32.mrb[0].mxu0
        %v3733 = vadd.f32 0.0, %v3732
        %v3734 = vpop.f32.mrb[0].mxu0
        %v3735 = vpop.f32.mrb[0].mxu0
        %3736 = vdwg.mxu0
        %3737 = vmatprep.subr.bf16.mxu0 %v3601
        %3738 = vmatpush1.bf16.msra.mxu0 %v3600
        %3739 = vmatprep.subr.bf16.mxu0 %v3603
        %3740 = vmatpush1.bf16.msra.mxu0 %v3602
        %3741 = vmatprep.subr.bf16.mxu0 %v3605
        %3742 = vmatpush1.bf16.msra.mxu0 %v3604
        %3743 = vmatprep.subr.bf16.mxu0 %v3607
        %3744 = vmatpush1.bf16.msra.mxu0 %v3606
        %3745 = vmatprep.subr.bf16.mxu0 %v3609
        %3746 = vmatpush1.bf16.msra.mxu0 %v3608
        %3747 = vmatprep.subr.bf16.mxu0 %v3611
        %3748 = vmatpush1.bf16.msra.mxu0 %v3610
        %3749 = vmatprep.subr.bf16.mxu0 %v3613
        %3750 = vmatpush1.bf16.msra.mxu0 %v3612
        %3751 = vmatprep.subr.bf16.mxu0 %v3615
        %3752 = vmatpush1.bf16.msra.mxu0 %v3614
        %3753 = vmatprep.subr.bf16.mxu0 %v3617
        %3754 = vmatpush1.bf16.msra.mxu0 %v3616
        %3755 = vmatprep.subr.bf16.mxu0 %v3619
        %3756 = vmatpush1.bf16.msra.mxu0 %v3618
        %3757 = vmatprep.subr.bf16.mxu0 %v3621
        %3758 = vmatpush1.bf16.msra.mxu0 %v3620
        %3759 = vmatprep.subr.bf16.mxu0 %v3623
        %3760 = vmatpush1.bf16.msra.mxu0 %v3622
        %3761 = vmatprep.subr.bf16.mxu0 %v3625
        %3762 = vmatpush1.bf16.msra.mxu0 %v3624
        %3763 = vmatprep.subr.bf16.mxu0 %v3627
        %3764 = vmatpush1.bf16.msra.mxu0 %v3626
        %3765 = vmatprep.subr.bf16.mxu0 %v3629
        %3766 = vmatpush1.bf16.msra.mxu0 %v3628
        %3767 = vmatprep.subr.bf16.mxu0 %v3631
        %3768 = vmatpush1.bf16.msra.mxu0 %v3630
        %3769 = vmatprep.mubr.bf16.mxu0 %v3311
        %3770 = vmatmul.mubr.bf16.gmra.mrb[0].mxu0 %v3310
        %v3771 = vpop.f32.mrb[0].mxu0
        %v3772 = vadd.f32 %v3731, %v3771
        %v3773 = vpop.f32.mrb[0].mxu0
        %v3774 = vadd.f32 %v3733, %v3773
        %v3775 = vpop.f32.mrb[0].mxu0
        %v3776 = vpop.f32.mrb[0].mxu0
        %3777 = vdwg.mxu0
        %v3778 = vadd.f32 %v538, %v3772
        %v3779 = vadd.f32 %v539, %v3774
        %v3780 = vadd.f32 %v3778, %v3779
        %3781 = vadd.xlane.f32.xlu0 %v3780
        %v3782 = vpop.xlane.xlu0 %3781
        %v3783 = vrcp.pop 256.0
        %v3784 = vmul.f32 %v3782, %v3783
        %v3785 = vsub.f32 %v3778, %v3784
        %v3786 = vsub.f32 %v3779, %v3784
        %v3787 = vmul.f32 %v3785, %v3785
        %v3788 = vmul.f32 %v3786, %v3786
        %v3789 = vadd.f32 %v3787, %v3788
        %3790 = vadd.xlane.f32.xlu0 %v3789
        %v3791 = vpop.xlane.xlu0 %3790
        %v3792 = vmul.f32 %v3791, %v3783
        %v3793 = vadd.f32 %v3792, 1e-05
        %v3794 = vrsqrt.pop %v3793
        %v3795 = vmul.f32 %v3785, %v3794
        %v3796 = vmul.f32 %v3786, %v3794
        %v3797 = vld [vmem:[%s9] ss:$8 sm:$0x3]
        %v3799 = vlaneseq
        %v3800 = vshrl.u32 %v3799, 7
        %v3801 = vsub.s32 0, %v3800
        %v3802 = vrot.slane %v3797, %v3801
        %v3803 = vlaneseq
        %v3804 = vshrl.u32 %v3803, 7
        %v3805 = vsub.s32 1, %v3804
        %v3806 = vrot.slane %v3797, %v3805
        %v3809 = vmul.f32 %v3795, %v3802
        %v3810 = vmul.f32 %v3796, %v3806
        %s3811 = scalar_lea.vmem %s9, 1
        %v3812 = vld [vmem:[%s3811] ss:$8 sm:$0x3]
        %v3814 = vlaneseq
        %v3815 = vshrl.u32 %v3814, 7
        %v3816 = vsub.s32 0, %v3815
        %v3817 = vrot.slane %v3812, %v3816
        %v3818 = vlaneseq
        %v3819 = vshrl.u32 %v3818, 7
        %v3820 = vsub.s32 1, %v3819
        %v3821 = vrot.slane %v3812, %v3820
        %v3824 = vadd.f32 %v3809, %v3817
        %v3825 = vadd.f32 %v3810, %v3821
        %v3826 = vpack.c.bf16 %v3824, %v3824
        %v3827 = vpack.c.bf16 %v3825, %v3825
        %v3828 = vld [vmem:[#allocation14] sm:$0xff]
        %v3829 = vld [vmem:[#allocation14 + $0x8] sm:$0xff]
        %v3830 = vld [vmem:[#allocation14 + $0x10] sm:$0xff]
        %v3831 = vld [vmem:[#allocation14 + $0x18] sm:$0xff]
        %v3832 = vld [vmem:[#allocation14 + $0x20] sm:$0xff]
        %v3833 = vld [vmem:[#allocation14 + $0x28] sm:$0xff]
        %v3834 = vld [vmem:[#allocation14 + $0x30] sm:$0xff]
        %v3835 = vld [vmem:[#allocation14 + $0x38] sm:$0xff]
        %v3836 = vld [vmem:[#allocation14 + $0x40] sm:$0xff]
        %v3837 = vld [vmem:[#allocation14 + $0x48] sm:$0xff]
        %v3838 = vld [vmem:[#allocation14 + $0x50] sm:$0xff]
        %v3839 = vld [vmem:[#allocation14 + $0x58] sm:$0xff]
        %v3840 = vld [vmem:[#allocation14 + $0x60] sm:$0xff]
        %v3841 = vld [vmem:[#allocation14 + $0x68] sm:$0xff]
        %v3842 = vld [vmem:[#allocation14 + $0x70] sm:$0xff]
        %v3843 = vld [vmem:[#allocation14 + $0x78] sm:$0xff]
        %v3844 = vld [vmem:[#allocation14 + $0x80] sm:$0xff]
        %v3845 = vld [vmem:[#allocation14 + $0x88] sm:$0xff]
        %v3846 = vld [vmem:[#allocation14 + $0x90] sm:$0xff]
        %v3847 = vld [vmem:[#allocation14 + $0x98] sm:$0xff]
        %v3848 = vld [vmem:[#allocation14 + $0xa0] sm:$0xff]
        %v3849 = vld [vmem:[#allocation14 + $0xa8] sm:$0xff]
        %v3850 = vld [vmem:[#allocation14 + $0xb0] sm:$0xff]
        %v3851 = vld [vmem:[#allocation14 + $0xb8] sm:$0xff]
        %v3852 = vld [vmem:[#allocation14 + $0xc0] sm:$0xff]
        %v3853 = vld [vmem:[#allocation14 + $0xc8] sm:$0xff]
        %v3854 = vld [vmem:[#allocation14 + $0xd0] sm:$0xff]
        %v3855 = vld [vmem:[#allocation14 + $0xd8] sm:$0xff]
        %v3856 = vld [vmem:[#allocation14 + $0xe0] sm:$0xff]
        %v3857 = vld [vmem:[#allocation14 + $0xe8] sm:$0xff]
        %v3858 = vld [vmem:[#allocation14 + $0xf0] sm:$0xff]
        %v3859 = vld [vmem:[#allocation14 + $0xf8] sm:$0xff]
        %v3860 = vld [vmem:[#allocation14 + $0x100] sm:$0xff]
        %v3861 = vld [vmem:[#allocation14 + $0x108] sm:$0xff]
        %v3862 = vld [vmem:[#allocation14 + $0x110] sm:$0xff]
        %v3863 = vld [vmem:[#allocation14 + $0x118] sm:$0xff]
        %v3864 = vld [vmem:[#allocation14 + $0x120] sm:$0xff]
        %v3865 = vld [vmem:[#allocation14 + $0x128] sm:$0xff]
        %v3866 = vld [vmem:[#allocation14 + $0x130] sm:$0xff]
        %v3867 = vld [vmem:[#allocation14 + $0x138] sm:$0xff]
        %v3868 = vld [vmem:[#allocation14 + $0x140] sm:$0xff]
        %v3869 = vld [vmem:[#allocation14 + $0x148] sm:$0xff]
        %v3870 = vld [vmem:[#allocation14 + $0x150] sm:$0xff]
        %v3871 = vld [vmem:[#allocation14 + $0x158] sm:$0xff]
        %v3872 = vld [vmem:[#allocation14 + $0x160] sm:$0xff]
        %v3873 = vld [vmem:[#allocation14 + $0x168] sm:$0xff]
        %v3874 = vld [vmem:[#allocation14 + $0x170] sm:$0xff]
        %v3875 = vld [vmem:[#allocation14 + $0x178] sm:$0xff]
        %v3876 = vld [vmem:[#allocation14 + $0x180] sm:$0xff]
        %v3877 = vld [vmem:[#allocation14 + $0x188] sm:$0xff]
        %v3878 = vld [vmem:[#allocation14 + $0x190] sm:$0xff]
        %v3879 = vld [vmem:[#allocation14 + $0x198] sm:$0xff]
        %v3880 = vld [vmem:[#allocation14 + $0x1a0] sm:$0xff]
        %v3881 = vld [vmem:[#allocation14 + $0x1a8] sm:$0xff]
        %v3882 = vld [vmem:[#allocation14 + $0x1b0] sm:$0xff]
        %v3883 = vld [vmem:[#allocation14 + $0x1b8] sm:$0xff]
        %v3884 = vld [vmem:[#allocation14 + $0x1c0] sm:$0xff]
        %v3885 = vld [vmem:[#allocation14 + $0x1c8] sm:$0xff]
        %v3886 = vld [vmem:[#allocation14 + $0x1d0] sm:$0xff]
        %v3887 = vld [vmem:[#allocation14 + $0x1d8] sm:$0xff]
        %v3888 = vld [vmem:[#allocation14 + $0x1e0] sm:$0xff]
        %v3889 = vld [vmem:[#allocation14 + $0x1e8] sm:$0xff]
        %v3890 = vld [vmem:[#allocation14 + $0x1f0] sm:$0xff]
        %v3891 = vld [vmem:[#allocation14 + $0x1f8] sm:$0xff]
        %v3892 = vld [vmem:[%s7] sm:$0xf]
        %v3894 = vlaneseq
        %v3895 = vshrl.u32 %v3894, 7
        %v3896 = vsub.s32 0, %v3895
        %v3897 = vrot.slane %v3892, %v3896
        %v3898 = vlaneseq
        %v3899 = vshrl.u32 %v3898, 7
        %v3900 = vsub.s32 1, %v3899
        %v3901 = vrot.slane %v3892, %v3900
        %v3902 = vlaneseq
        %v3903 = vshrl.u32 %v3902, 7
        %v3904 = vsub.s32 2, %v3903
        %v3905 = vrot.slane %v3892, %v3904
        %v3906 = vlaneseq
        %v3907 = vshrl.u32 %v3906, 7
        %v3908 = vsub.s32 3, %v3907
        %v3909 = vrot.slane %v3892, %v3908
        %v3978 = vunpack.c.l.b16 %v3828
        %v3979 = vunpack.c.h.b16 %v3828
        %v3980 = vunpack.c.l.b16 %v3829
        %v3981 = vunpack.c.h.b16 %v3829
        %v3982 = vunpack.c.l.b16 %v3830
        %v3983 = vunpack.c.h.b16 %v3830
        %v3984 = vunpack.c.l.b16 %v3831
        %v3985 = vunpack.c.h.b16 %v3831
        %v3986 = vunpack.c.l.b16 %v3832
        %v3987 = vunpack.c.h.b16 %v3832
        %v3988 = vunpack.c.l.b16 %v3833
        %v3989 = vunpack.c.h.b16 %v3833
        %v3990 = vunpack.c.l.b16 %v3834
        %v3991 = vunpack.c.h.b16 %v3834
        %v3992 = vunpack.c.l.b16 %v3835
        %v3993 = vunpack.c.h.b16 %v3835
        %v3994 = vunpack.c.l.b16 %v3836
        %v3995 = vunpack.c.h.b16 %v3836
        %v3996 = vunpack.c.l.b16 %v3837
        %v3997 = vunpack.c.h.b16 %v3837
        %v3998 = vunpack.c.l.b16 %v3838
        %v3999 = vunpack.c.h.b16 %v3838
        %v4000 = vunpack.c.l.b16 %v3839
        %v4001 = vunpack.c.h.b16 %v3839
        %v4002 = vunpack.c.l.b16 %v3840
        %v4003 = vunpack.c.h.b16 %v3840
        %v4004 = vunpack.c.l.b16 %v3841
        %v4005 = vunpack.c.h.b16 %v3841
        %v4006 = vunpack.c.l.b16 %v3842
        %v4007 = vunpack.c.h.b16 %v3842
        %v4008 = vunpack.c.l.b16 %v3843
        %v4009 = vunpack.c.h.b16 %v3843
        %v4010 = vunpack.c.l.b16 %v3844
        %v4011 = vunpack.c.h.b16 %v3844
        %v4012 = vunpack.c.l.b16 %v3845
        %v4013 = vunpack.c.h.b16 %v3845
        %v4014 = vunpack.c.l.b16 %v3846
        %v4015 = vunpack.c.h.b16 %v3846
        %v4016 = vunpack.c.l.b16 %v3847
        %v4017 = vunpack.c.h.b16 %v3847
        %v4018 = vunpack.c.l.b16 %v3848
        %v4019 = vunpack.c.h.b16 %v3848
        %v4020 = vunpack.c.l.b16 %v3849
        %v4021 = vunpack.c.h.b16 %v3849
        %v4022 = vunpack.c.l.b16 %v3850
        %v4023 = vunpack.c.h.b16 %v3850
        %v4024 = vunpack.c.l.b16 %v3851
        %v4025 = vunpack.c.h.b16 %v3851
        %v4026 = vunpack.c.l.b16 %v3852
        %v4027 = vunpack.c.h.b16 %v3852
        %v4028 = vunpack.c.l.b16 %v3853
        %v4029 = vunpack.c.h.b16 %v3853
        %v4030 = vunpack.c.l.b16 %v3854
        %v4031 = vunpack.c.h.b16 %v3854
        %v4032 = vunpack.c.l.b16 %v3855
        %v4033 = vunpack.c.h.b16 %v3855
        %v4034 = vunpack.c.l.b16 %v3856
        %v4035 = vunpack.c.h.b16 %v3856
        %v4036 = vunpack.c.l.b16 %v3857
        %v4037 = vunpack.c.h.b16 %v3857
        %v4038 = vunpack.c.l.b16 %v3858
        %v4039 = vunpack.c.h.b16 %v3858
        %v4040 = vunpack.c.l.b16 %v3859
        %v4041 = vunpack.c.h.b16 %v3859
        %v4042 = vunpack.c.l.b16 %v3860
        %v4043 = vunpack.c.h.b16 %v3860
        %v4044 = vunpack.c.l.b16 %v3861
        %v4045 = vunpack.c.h.b16 %v3861
        %v4046 = vunpack.c.l.b16 %v3862
        %v4047 = vunpack.c.h.b16 %v3862
        %v4048 = vunpack.c.l.b16 %v3863
        %v4049 = vunpack.c.h.b16 %v3863
        %v4050 = vunpack.c.l.b16 %v3864
        %v4051 = vunpack.c.h.b16 %v3864
        %v4052 = vunpack.c.l.b16 %v3865
        %v4053 = vunpack.c.h.b16 %v3865
        %v4054 = vunpack.c.l.b16 %v3866
        %v4055 = vunpack.c.h.b16 %v3866
        %v4056 = vunpack.c.l.b16 %v3867
        %v4057 = vunpack.c.h.b16 %v3867
        %v4058 = vunpack.c.l.b16 %v3868
        %v4059 = vunpack.c.h.b16 %v3868
        %v4060 = vunpack.c.l.b16 %v3869
        %v4061 = vunpack.c.h.b16 %v3869
        %v4062 = vunpack.c.l.b16 %v3870
        %v4063 = vunpack.c.h.b16 %v3870
        %v4064 = vunpack.c.l.b16 %v3871
        %v4065 = vunpack.c.h.b16 %v3871
        %v4066 = vunpack.c.l.b16 %v3872
        %v4067 = vunpack.c.h.b16 %v3872
        %v4068 = vunpack.c.l.b16 %v3873
        %v4069 = vunpack.c.h.b16 %v3873
        %v4070 = vunpack.c.l.b16 %v3874
        %v4071 = vunpack.c.h.b16 %v3874
        %v4072 = vunpack.c.l.b16 %v3875
        %v4073 = vunpack.c.h.b16 %v3875
        %v4074 = vunpack.c.l.b16 %v3876
        %v4075 = vunpack.c.h.b16 %v3876
        %v4076 = vunpack.c.l.b16 %v3877
        %v4077 = vunpack.c.h.b16 %v3877
        %v4078 = vunpack.c.l.b16 %v3878
        %v4079 = vunpack.c.h.b16 %v3878
        %v4080 = vunpack.c.l.b16 %v3879
        %v4081 = vunpack.c.h.b16 %v3879
        %v4082 = vunpack.c.l.b16 %v3880
        %v4083 = vunpack.c.h.b16 %v3880
        %v4084 = vunpack.c.l.b16 %v3881
        %v4085 = vunpack.c.h.b16 %v3881
        %v4086 = vunpack.c.l.b16 %v3882
        %v4087 = vunpack.c.h.b16 %v3882
        %v4088 = vunpack.c.l.b16 %v3883
        %v4089 = vunpack.c.h.b16 %v3883
        %v4090 = vunpack.c.l.b16 %v3884
        %v4091 = vunpack.c.h.b16 %v3884
        %v4092 = vunpack.c.l.b16 %v3885
        %v4093 = vunpack.c.h.b16 %v3885
        %v4094 = vunpack.c.l.b16 %v3886
        %v4095 = vunpack.c.h.b16 %v3886
        %v4096 = vunpack.c.l.b16 %v3887
        %v4097 = vunpack.c.h.b16 %v3887
        %v4098 = vunpack.c.l.b16 %v3888
        %v4099 = vunpack.c.h.b16 %v3888
        %v4100 = vunpack.c.l.b16 %v3889
        %v4101 = vunpack.c.h.b16 %v3889
        %v4102 = vunpack.c.l.b16 %v3890
        %v4103 = vunpack.c.h.b16 %v3890
        %v4104 = vunpack.c.l.b16 %v3891
        %v4105 = vunpack.c.h.b16 %v3891
        %v4106 = vpack.c.b16 %v3982, %v3978
        %v4107 = vpack.c.b16 %v3983, %v3979
        %v4108 = vpack.c.b16 %v3984, %v3980
        %v4109 = vpack.c.b16 %v3985, %v3981
        %v4110 = vpack.c.b16 %v3990, %v3986
        %v4111 = vpack.c.b16 %v3991, %v3987
        %v4112 = vpack.c.b16 %v3992, %v3988
        %v4113 = vpack.c.b16 %v3993, %v3989
        %v4114 = vpack.c.b16 %v3998, %v3994
        %v4115 = vpack.c.b16 %v3999, %v3995
        %v4116 = vpack.c.b16 %v4000, %v3996
        %v4117 = vpack.c.b16 %v4001, %v3997
        %v4118 = vpack.c.b16 %v4006, %v4002
        %v4119 = vpack.c.b16 %v4007, %v4003
        %v4120 = vpack.c.b16 %v4008, %v4004
        %v4121 = vpack.c.b16 %v4009, %v4005
        %v4122 = vpack.c.b16 %v4014, %v4010
        %v4123 = vpack.c.b16 %v4015, %v4011
        %v4124 = vpack.c.b16 %v4016, %v4012
        %v4125 = vpack.c.b16 %v4017, %v4013
        %v4126 = vpack.c.b16 %v4022, %v4018
        %v4127 = vpack.c.b16 %v4023, %v4019
        %v4128 = vpack.c.b16 %v4024, %v4020
        %v4129 = vpack.c.b16 %v4025, %v4021
        %v4130 = vpack.c.b16 %v4030, %v4026
        %v4131 = vpack.c.b16 %v4031, %v4027
        %v4132 = vpack.c.b16 %v4032, %v4028
        %v4133 = vpack.c.b16 %v4033, %v4029
        %v4134 = vpack.c.b16 %v4038, %v4034
        %v4135 = vpack.c.b16 %v4039, %v4035
        %v4136 = vpack.c.b16 %v4040, %v4036
        %v4137 = vpack.c.b16 %v4041, %v4037
        %v4138 = vpack.c.b16 %v4046, %v4042
        %v4139 = vpack.c.b16 %v4047, %v4043
        %v4140 = vpack.c.b16 %v4048, %v4044
        %v4141 = vpack.c.b16 %v4049, %v4045
        %v4142 = vpack.c.b16 %v4054, %v4050
        %v4143 = vpack.c.b16 %v4055, %v4051
        %v4144 = vpack.c.b16 %v4056, %v4052
        %v4145 = vpack.c.b16 %v4057, %v4053
        %v4146 = vpack.c.b16 %v4062, %v4058
        %v4147 = vpack.c.b16 %v4063, %v4059
        %v4148 = vpack.c.b16 %v4064, %v4060
        %v4149 = vpack.c.b16 %v4065, %v4061
        %v4150 = vpack.c.b16 %v4070, %v4066
        %v4151 = vpack.c.b16 %v4071, %v4067
        %v4152 = vpack.c.b16 %v4072, %v4068
        %v4153 = vpack.c.b16 %v4073, %v4069
        %v4154 = vpack.c.b16 %v4078, %v4074
        %v4155 = vpack.c.b16 %v4079, %v4075
        %v4156 = vpack.c.b16 %v4080, %v4076
        %v4157 = vpack.c.b16 %v4081, %v4077
        %v4158 = vpack.c.b16 %v4086, %v4082
        %v4159 = vpack.c.b16 %v4087, %v4083
        %v4160 = vpack.c.b16 %v4088, %v4084
        %v4161 = vpack.c.b16 %v4089, %v4085
        %v4162 = vpack.c.b16 %v4094, %v4090
        %v4163 = vpack.c.b16 %v4095, %v4091
        %v4164 = vpack.c.b16 %v4096, %v4092
        %v4165 = vpack.c.b16 %v4097, %v4093
        %v4166 = vpack.c.b16 %v4102, %v4098
        %v4167 = vpack.c.b16 %v4103, %v4099
        %v4168 = vpack.c.b16 %v4104, %v4100
        %v4169 = vpack.c.b16 %v4105, %v4101
        %4234 = vmatprep.subr.bf16.mxu0 %v4107
        %4235 = vmatpush1.bf16.msra.mxu0 %v4106
        %4236 = vmatprep.subr.bf16.mxu0 %v4111
        %4237 = vmatpush1.bf16.msra.mxu0 %v4110
        %4238 = vmatprep.subr.bf16.mxu0 %v4115
        %4239 = vmatpush1.bf16.msra.mxu0 %v4114
        %4240 = vmatprep.subr.bf16.mxu0 %v4119
        %4241 = vmatpush1.bf16.msra.mxu0 %v4118
        %4242 = vmatprep.subr.bf16.mxu0 %v4123
        %4243 = vmatpush1.bf16.msra.mxu0 %v4122
        %4244 = vmatprep.subr.bf16.mxu0 %v4127
        %4245 = vmatpush1.bf16.msra.mxu0 %v4126
        %4246 = vmatprep.subr.bf16.mxu0 %v4131
        %4247 = vmatpush1.bf16.msra.mxu0 %v4130
        %4248 = vmatprep.subr.bf16.mxu0 %v4135
        %4249 = vmatpush1.bf16.msra.mxu0 %v4134
        %4250 = vmatprep.subr.bf16.mxu0 %v4139
        %4251 = vmatpush1.bf16.msra.mxu0 %v4138
        %4252 = vmatprep.subr.bf16.mxu0 %v4143
        %4253 = vmatpush1.bf16.msra.mxu0 %v4142
        %4254 = vmatprep.subr.bf16.mxu0 %v4147
        %4255 = vmatpush1.bf16.msra.mxu0 %v4146
        %4256 = vmatprep.subr.bf16.mxu0 %v4151
        %4257 = vmatpush1.bf16.msra.mxu0 %v4150
        %4258 = vmatprep.subr.bf16.mxu0 %v4155
        %4259 = vmatpush1.bf16.msra.mxu0 %v4154
        %4260 = vmatprep.subr.bf16.mxu0 %v4159
        %4261 = vmatpush1.bf16.msra.mxu0 %v4158
        %4262 = vmatprep.subr.bf16.mxu0 %v4163
        %4263 = vmatpush1.bf16.msra.mxu0 %v4162
        %4264 = vmatprep.subr.bf16.mxu0 %v4167
        %4265 = vmatpush1.bf16.msra.mxu0 %v4166
        %4266 = vmatprep.mubr.bf16.mxu0 %v3827
        %4267 = vmatmul.mubr.bf16.gmra.mrb[0].mxu0 %v3826
        %v4268 = vpop.f32.mrb[0].mxu0
        %v4269 = vadd.f32 %v3897, %v4268
        %v4270 = vpop.f32.mrb[0].mxu0
        %v4271 = vadd.f32 %v3901, %v4270
        %v4272 = vpop.f32.mrb[0].mxu0
        %v4273 = vpop.f32.mrb[0].mxu0
        %4274 = vdwg.mxu0
        %4275 = vmatprep.subr.bf16.mxu0 %v4109
        %4276 = vmatpush1.bf16.msra.mxu0 %v4108
        %4277 = vmatprep.subr.bf16.mxu0 %v4113
        %4278 = vmatpush1.bf16.msra.mxu0 %v4112
        %4279 = vmatprep.subr.bf16.mxu0 %v4117
        %4280 = vmatpush1.bf16.msra.mxu0 %v4116
        %4281 = vmatprep.subr.bf16.mxu0 %v4121
        %4282 = vmatpush1.bf16.msra.mxu0 %v4120
        %4283 = vmatprep.subr.bf16.mxu0 %v4125
        %4284 = vmatpush1.bf16.msra.mxu0 %v4124
        %4285 = vmatprep.subr.bf16.mxu0 %v4129
        %4286 = vmatpush1.bf16.msra.mxu0 %v4128
        %4287 = vmatprep.subr.bf16.mxu0 %v4133
        %4288 = vmatpush1.bf16.msra.mxu0 %v4132
        %4289 = vmatprep.subr.bf16.mxu0 %v4137
        %4290 = vmatpush1.bf16.msra.mxu0 %v4136
        %4291 = vmatprep.subr.bf16.mxu0 %v4141
        %4292 = vmatpush1.bf16.msra.mxu0 %v4140
        %4293 = vmatprep.subr.bf16.mxu0 %v4145
        %4294 = vmatpush1.bf16.msra.mxu0 %v4144
        %4295 = vmatprep.subr.bf16.mxu0 %v4149
        %4296 = vmatpush1.bf16.msra.mxu0 %v4148
        %4297 = vmatprep.subr.bf16.mxu0 %v4153
        %4298 = vmatpush1.bf16.msra.mxu0 %v4152
        %4299 = vmatprep.subr.bf16.mxu0 %v4157
        %4300 = vmatpush1.bf16.msra.mxu0 %v4156
        %4301 = vmatprep.subr.bf16.mxu0 %v4161
        %4302 = vmatpush1.bf16.msra.mxu0 %v4160
        %4303 = vmatprep.subr.bf16.mxu0 %v4165
        %4304 = vmatpush1.bf16.msra.mxu0 %v4164
        %4305 = vmatprep.subr.bf16.mxu0 %v4169
        %4306 = vmatpush1.bf16.msra.mxu0 %v4168
        %4307 = vmatprep.mubr.bf16.mxu0 %v3827
        %4308 = vmatmul.mubr.bf16.gmra.mrb[0].mxu0 %v3826
        %v4309 = vpop.f32.mrb[0].mxu0
        %v4310 = vadd.f32 %v3905, %v4309
        %v4311 = vpop.f32.mrb[0].mxu0
        %v4312 = vadd.f32 %v3909, %v4311
        %v4313 = vpop.f32.mrb[0].mxu0
        %v4314 = vpop.f32.mrb[0].mxu0
        %4315 = vdwg.mxu0
        %v4316 = vmax.f32 %v4269, 0.0
        %v4317 = vmax.f32 %v4271, 0.0
        %v4318 = vmax.f32 %v4310, 0.0
        %v4319 = vmax.f32 %v4312, 0.0
        %v4320 = vpack.c.bf16 %v4316, %v4316
        %v4321 = vpack.c.bf16 %v4317, %v4317
        %v4322 = vpack.c.bf16 %v4318, %v4318
        %v4323 = vpack.c.bf16 %v4319, %v4319
        %v4324 = vld [vmem:[#allocation15] sm:$0xff]
        %v4325 = vld [vmem:[#allocation15 + $0x8] sm:$0xff]
        %v4326 = vld [vmem:[#allocation15 + $0x10] sm:$0xff]
        %v4327 = vld [vmem:[#allocation15 + $0x18] sm:$0xff]
        %v4328 = vld [vmem:[#allocation15 + $0x20] sm:$0xff]
        %v4329 = vld [vmem:[#allocation15 + $0x28] sm:$0xff]
        %v4330 = vld [vmem:[#allocation15 + $0x30] sm:$0xff]
        %v4331 = vld [vmem:[#allocation15 + $0x38] sm:$0xff]
        %v4332 = vld [vmem:[#allocation15 + $0x40] sm:$0xff]
        %v4333 = vld [vmem:[#allocation15 + $0x48] sm:$0xff]
        %v4334 = vld [vmem:[#allocation15 + $0x50] sm:$0xff]
        %v4335 = vld [vmem:[#allocation15 + $0x58] sm:$0xff]
        %v4336 = vld [vmem:[#allocation15 + $0x60] sm:$0xff]
        %v4337 = vld [vmem:[#allocation15 + $0x68] sm:$0xff]
        %v4338 = vld [vmem:[#allocation15 + $0x70] sm:$0xff]
        %v4339 = vld [vmem:[#allocation15 + $0x78] sm:$0xff]
        %v4340 = vld [vmem:[#allocation15 + $0x80] sm:$0xff]
        %v4341 = vld [vmem:[#allocation15 + $0x88] sm:$0xff]
        %v4342 = vld [vmem:[#allocation15 + $0x90] sm:$0xff]
        %v4343 = vld [vmem:[#allocation15 + $0x98] sm:$0xff]
        %v4344 = vld [vmem:[#allocation15 + $0xa0] sm:$0xff]
        %v4345 = vld [vmem:[#allocation15 + $0xa8] sm:$0xff]
        %v4346 = vld [vmem:[#allocation15 + $0xb0] sm:$0xff]
        %v4347 = vld [vmem:[#allocation15 + $0xb8] sm:$0xff]
        %v4348 = vld [vmem:[#allocation15 + $0xc0] sm:$0xff]
        %v4349 = vld [vmem:[#allocation15 + $0xc8] sm:$0xff]
        %v4350 = vld [vmem:[#allocation15 + $0xd0] sm:$0xff]
        %v4351 = vld [vmem:[#allocation15 + $0xd8] sm:$0xff]
        %v4352 = vld [vmem:[#allocation15 + $0xe0] sm:$0xff]
        %v4353 = vld [vmem:[#allocation15 + $0xe8] sm:$0xff]
        %v4354 = vld [vmem:[#allocation15 + $0xf0] sm:$0xff]
        %v4355 = vld [vmem:[#allocation15 + $0xf8] sm:$0xff]
        %v4356 = vld [vmem:[#allocation15 + $0x100] sm:$0xff]
        %v4357 = vld [vmem:[#allocation15 + $0x108] sm:$0xff]
        %v4358 = vld [vmem:[#allocation15 + $0x110] sm:$0xff]
        %v4359 = vld [vmem:[#allocation15 + $0x118] sm:$0xff]
        %v4360 = vld [vmem:[#allocation15 + $0x120] sm:$0xff]
        %v4361 = vld [vmem:[#allocation15 + $0x128] sm:$0xff]
        %v4362 = vld [vmem:[#allocation15 + $0x130] sm:$0xff]
        %v4363 = vld [vmem:[#allocation15 + $0x138] sm:$0xff]
        %v4364 = vld [vmem:[#allocation15 + $0x140] sm:$0xff]
        %v4365 = vld [vmem:[#allocation15 + $0x148] sm:$0xff]
        %v4366 = vld [vmem:[#allocation15 + $0x150] sm:$0xff]
        %v4367 = vld [vmem:[#allocation15 + $0x158] sm:$0xff]
        %v4368 = vld [vmem:[#allocation15 + $0x160] sm:$0xff]
        %v4369 = vld [vmem:[#allocation15 + $0x168] sm:$0xff]
        %v4370 = vld [vmem:[#allocation15 + $0x170] sm:$0xff]
        %v4371 = vld [vmem:[#allocation15 + $0x178] sm:$0xff]
        %v4372 = vld [vmem:[#allocation15 + $0x180] sm:$0xff]
        %v4373 = vld [vmem:[#allocation15 + $0x188] sm:$0xff]
        %v4374 = vld [vmem:[#allocation15 + $0x190] sm:$0xff]
        %v4375 = vld [vmem:[#allocation15 + $0x198] sm:$0xff]
        %v4376 = vld [vmem:[#allocation15 + $0x1a0] sm:$0xff]
        %v4377 = vld [vmem:[#allocation15 + $0x1a8] sm:$0xff]
        %v4378 = vld [vmem:[#allocation15 + $0x1b0] sm:$0xff]
        %v4379 = vld [vmem:[#allocation15 + $0x1b8] sm:$0xff]
        %v4380 = vld [vmem:[#allocation15 + $0x1c0] sm:$0xff]
        %v4381 = vld [vmem:[#allocation15 + $0x1c8] sm:$0xff]
        %v4382 = vld [vmem:[#allocation15 + $0x1d0] sm:$0xff]
        %v4383 = vld [vmem:[#allocation15 + $0x1d8] sm:$0xff]
        %v4384 = vld [vmem:[#allocation15 + $0x1e0] sm:$0xff]
        %v4385 = vld [vmem:[#allocation15 + $0x1e8] sm:$0xff]
        %v4386 = vld [vmem:[#allocation15 + $0x1f0] sm:$0xff]
        %v4387 = vld [vmem:[#allocation15 + $0x1f8] sm:$0xff]
        %s4388 = scalar_lea.vmem %s9, 2
        %v4389 = vld [vmem:[%s4388] ss:$8 sm:$0x3]
        %v4391 = vlaneseq
        %v4392 = vshrl.u32 %v4391, 7
        %v4393 = vsub.s32 0, %v4392
        %v4394 = vrot.slane %v4389, %v4393
        %v4395 = vlaneseq
        %v4396 = vshrl.u32 %v4395, 7
        %v4397 = vsub.s32 1, %v4396
        %v4398 = vrot.slane %v4389, %v4397
        %v4465 = vunpack.c.l.b16 %v4324
        %v4466 = vunpack.c.h.b16 %v4324
        %v4467 = vunpack.c.l.b16 %v4325
        %v4468 = vunpack.c.h.b16 %v4325
        %v4469 = vunpack.c.l.b16 %v4326
        %v4470 = vunpack.c.h.b16 %v4326
        %v4471 = vunpack.c.l.b16 %v4327
        %v4472 = vunpack.c.h.b16 %v4327
        %v4473 = vunpack.c.l.b16 %v4328
        %v4474 = vunpack.c.h.b16 %v4328
        %v4475 = vunpack.c.l.b16 %v4329
        %v4476 = vunpack.c.h.b16 %v4329
        %v4477 = vunpack.c.l.b16 %v4330
        %v4478 = vunpack.c.h.b16 %v4330
        %v4479 = vunpack.c.l.b16 %v4331
        %v4480 = vunpack.c.h.b16 %v4331
        %v4481 = vunpack.c.l.b16 %v4332
        %v4482 = vunpack.c.h.b16 %v4332
        %v4483 = vunpack.c.l.b16 %v4333
        %v4484 = vunpack.c.h.b16 %v4333
        %v4485 = vunpack.c.l.b16 %v4334
        %v4486 = vunpack.c.h.b16 %v4334
        %v4487 = vunpack.c.l.b16 %v4335
        %v4488 = vunpack.c.h.b16 %v4335
        %v4489 = vunpack.c.l.b16 %v4336
        %v4490 = vunpack.c.h.b16 %v4336
        %v4491 = vunpack.c.l.b16 %v4337
        %v4492 = vunpack.c.h.b16 %v4337
        %v4493 = vunpack.c.l.b16 %v4338
        %v4494 = vunpack.c.h.b16 %v4338
        %v4495 = vunpack.c.l.b16 %v4339
        %v4496 = vunpack.c.h.b16 %v4339
        %v4497 = vunpack.c.l.b16 %v4340
        %v4498 = vunpack.c.h.b16 %v4340
        %v4499 = vunpack.c.l.b16 %v4341
        %v4500 = vunpack.c.h.b16 %v4341
        %v4501 = vunpack.c.l.b16 %v4342
        %v4502 = vunpack.c.h.b16 %v4342
        %v4503 = vunpack.c.l.b16 %v4343
        %v4504 = vunpack.c.h.b16 %v4343
        %v4505 = vunpack.c.l.b16 %v4344
        %v4506 = vunpack.c.h.b16 %v4344
        %v4507 = vunpack.c.l.b16 %v4345
        %v4508 = vunpack.c.h.b16 %v4345
        %v4509 = vunpack.c.l.b16 %v4346
        %v4510 = vunpack.c.h.b16 %v4346
        %v4511 = vunpack.c.l.b16 %v4347
        %v4512 = vunpack.c.h.b16 %v4347
        %v4513 = vunpack.c.l.b16 %v4348
        %v4514 = vunpack.c.h.b16 %v4348
        %v4515 = vunpack.c.l.b16 %v4349
        %v4516 = vunpack.c.h.b16 %v4349
        %v4517 = vunpack.c.l.b16 %v4350
        %v4518 = vunpack.c.h.b16 %v4350
        %v4519 = vunpack.c.l.b16 %v4351
        %v4520 = vunpack.c.h.b16 %v4351
        %v4521 = vunpack.c.l.b16 %v4352
        %v4522 = vunpack.c.h.b16 %v4352
        %v4523 = vunpack.c.l.b16 %v4353
        %v4524 = vunpack.c.h.b16 %v4353
        %v4525 = vunpack.c.l.b16 %v4354
        %v4526 = vunpack.c.h.b16 %v4354
        %v4527 = vunpack.c.l.b16 %v4355
        %v4528 = vunpack.c.h.b16 %v4355
        %v4529 = vunpack.c.l.b16 %v4356
        %v4530 = vunpack.c.h.b16 %v4356
        %v4531 = vunpack.c.l.b16 %v4357
        %v4532 = vunpack.c.h.b16 %v4357
        %v4533 = vunpack.c.l.b16 %v4358
        %v4534 = vunpack.c.h.b16 %v4358
        %v4535 = vunpack.c.l.b16 %v4359
        %v4536 = vunpack.c.h.b16 %v4359
        %v4537 = vunpack.c.l.b16 %v4360
        %v4538 = vunpack.c.h.b16 %v4360
        %v4539 = vunpack.c.l.b16 %v4361
        %v4540 = vunpack.c.h.b16 %v4361
        %v4541 = vunpack.c.l.b16 %v4362
        %v4542 = vunpack.c.h.b16 %v4362
        %v4543 = vunpack.c.l.b16 %v4363
        %v4544 = vunpack.c.h.b16 %v4363
        %v4545 = vunpack.c.l.b16 %v4364
        %v4546 = vunpack.c.h.b16 %v4364
        %v4547 = vunpack.c.l.b16 %v4365
        %v4548 = vunpack.c.h.b16 %v4365
        %v4549 = vunpack.c.l.b16 %v4366
        %v4550 = vunpack.c.h.b16 %v4366
        %v4551 = vunpack.c.l.b16 %v4367
        %v4552 = vunpack.c.h.b16 %v4367
        %v4553 = vunpack.c.l.b16 %v4368
        %v4554 = vunpack.c.h.b16 %v4368
        %v4555 = vunpack.c.l.b16 %v4369
        %v4556 = vunpack.c.h.b16 %v4369
        %v4557 = vunpack.c.l.b16 %v4370
        %v4558 = vunpack.c.h.b16 %v4370
        %v4559 = vunpack.c.l.b16 %v4371
        %v4560 = vunpack.c.h.b16 %v4371
        %v4561 = vunpack.c.l.b16 %v4372
        %v4562 = vunpack.c.h.b16 %v4372
        %v4563 = vunpack.c.l.b16 %v4373
        %v4564 = vunpack.c.h.b16 %v4373
        %v4565 = vunpack.c.l.b16 %v4374
        %v4566 = vunpack.c.h.b16 %v4374
        %v4567 = vunpack.c.l.b16 %v4375
        %v4568 = vunpack.c.h.b16 %v4375
        %v4569 = vunpack.c.l.b16 %v4376
        %v4570 = vunpack.c.h.b16 %v4376
        %v4571 = vunpack.c.l.b16 %v4377
        %v4572 = vunpack.c.h.b16 %v4377
        %v4573 = vunpack.c.l.b16 %v4378
        %v4574 = vunpack.c.h.b16 %v4378
        %v4575 = vunpack.c.l.b16 %v4379
        %v4576 = vunpack.c.h.b16 %v4379
        %v4577 = vunpack.c.l.b16 %v4380
        %v4578 = vunpack.c.h.b16 %v4380
        %v4579 = vunpack.c.l.b16 %v4381
        %v4580 = vunpack.c.h.b16 %v4381
        %v4581 = vunpack.c.l.b16 %v4382
        %v4582 = vunpack.c.h.b16 %v4382
        %v4583 = vunpack.c.l.b16 %v4383
        %v4584 = vunpack.c.h.b16 %v4383
        %v4585 = vunpack.c.l.b16 %v4384
        %v4586 = vunpack.c.h.b16 %v4384
        %v4587 = vunpack.c.l.b16 %v4385
        %v4588 = vunpack.c.h.b16 %v4385
        %v4589 = vunpack.c.l.b16 %v4386
        %v4590 = vunpack.c.h.b16 %v4386
        %v4591 = vunpack.c.l.b16 %v4387
        %v4592 = vunpack.c.h.b16 %v4387
        %v4593 = vpack.c.b16 %v4467, %v4465
        %v4594 = vpack.c.b16 %v4468, %v4466
        %v4595 = vpack.c.b16 %v4471, %v4469
        %v4596 = vpack.c.b16 %v4472, %v4470
        %v4597 = vpack.c.b16 %v4475, %v4473
        %v4598 = vpack.c.b16 %v4476, %v4474
        %v4599 = vpack.c.b16 %v4479, %v4477
        %v4600 = vpack.c.b16 %v4480, %v4478
        %v4601 = vpack.c.b16 %v4483, %v4481
        %v4602 = vpack.c.b16 %v4484, %v4482
        %v4603 = vpack.c.b16 %v4487, %v4485
        %v4604 = vpack.c.b16 %v4488, %v4486
        %v4605 = vpack.c.b16 %v4491, %v4489
        %v4606 = vpack.c.b16 %v4492, %v4490
        %v4607 = vpack.c.b16 %v4495, %v4493
        %v4608 = vpack.c.b16 %v4496, %v4494
        %v4609 = vpack.c.b16 %v4499, %v4497
        %v4610 = vpack.c.b16 %v4500, %v4498
        %v4611 = vpack.c.b16 %v4503, %v4501
        %v4612 = vpack.c.b16 %v4504, %v4502
        %v4613 = vpack.c.b16 %v4507, %v4505
        %v4614 = vpack.c.b16 %v4508, %v4506
        %v4615 = vpack.c.b16 %v4511, %v4509
        %v4616 = vpack.c.b16 %v4512, %v4510
        %v4617 = vpack.c.b16 %v4515, %v4513
        %v4618 = vpack.c.b16 %v4516, %v4514
        %v4619 = vpack.c.b16 %v4519, %v4517
        %v4620 = vpack.c.b16 %v4520, %v4518
        %v4621 = vpack.c.b16 %v4523, %v4521
        %v4622 = vpack.c.b16 %v4524, %v4522
        %v4623 = vpack.c.b16 %v4527, %v4525
        %v4624 = vpack.c.b16 %v4528, %v4526
        %v4625 = vpack.c.b16 %v4531, %v4529
        %v4626 = vpack.c.b16 %v4532, %v4530
        %v4627 = vpack.c.b16 %v4535, %v4533
        %v4628 = vpack.c.b16 %v4536, %v4534
        %v4629 = vpack.c.b16 %v4539, %v4537
        %v4630 = vpack.c.b16 %v4540, %v4538
        %v4631 = vpack.c.b16 %v4543, %v4541
        %v4632 = vpack.c.b16 %v4544, %v4542
        %v4633 = vpack.c.b16 %v4547, %v4545
        %v4634 = vpack.c.b16 %v4548, %v4546
        %v4635 = vpack.c.b16 %v4551, %v4549
        %v4636 = vpack.c.b16 %v4552, %v4550
        %v4637 = vpack.c.b16 %v4555, %v4553
        %v4638 = vpack.c.b16 %v4556, %v4554
        %v4639 = vpack.c.b16 %v4559, %v4557
        %v4640 = vpack.c.b16 %v4560, %v4558
        %v4641 = vpack.c.b16 %v4563, %v4561
        %v4642 = vpack.c.b16 %v4564, %v4562
        %v4643 = vpack.c.b16 %v4567, %v4565
        %v4644 = vpack.c.b16 %v4568, %v4566
        %v4645 = vpack.c.b16 %v4571, %v4569
        %v4646 = vpack.c.b16 %v4572, %v4570
        %v4647 = vpack.c.b16 %v4575, %v4573
        %v4648 = vpack.c.b16 %v4576, %v4574
        %v4649 = vpack.c.b16 %v4579, %v4577
        %v4650 = vpack.c.b16 %v4580, %v4578
        %v4651 = vpack.c.b16 %v4583, %v4581
        %v4652 = vpack.c.b16 %v4584, %v4582
        %v4653 = vpack.c.b16 %v4587, %v4585
        %v4654 = vpack.c.b16 %v4588, %v4586
        %v4655 = vpack.c.b16 %v4591, %v4589
        %v4656 = vpack.c.b16 %v4592, %v4590
        %4721 = vmatprep.subr.bf16.mxu0 %v4594
        %4722 = vmatpush1.bf16.msra.mxu0 %v4593
        %4723 = vmatprep.subr.bf16.mxu0 %v4596
        %4724 = vmatpush1.bf16.msra.mxu0 %v4595
        %4725 = vmatprep.subr.bf16.mxu0 %v4598
        %4726 = vmatpush1.bf16.msra.mxu0 %v4597
        %4727 = vmatprep.subr.bf16.mxu0 %v4600
        %4728 = vmatpush1.bf16.msra.mxu0 %v4599
        %4729 = vmatprep.subr.bf16.mxu0 %v4602
        %4730 = vmatpush1.bf16.msra.mxu0 %v4601
        %4731 = vmatprep.subr.bf16.mxu0 %v4604
        %4732 = vmatpush1.bf16.msra.mxu0 %v4603
        %4733 = vmatprep.subr.bf16.mxu0 %v4606
        %4734 = vmatpush1.bf16.msra.mxu0 %v4605
        %4735 = vmatprep.subr.bf16.mxu0 %v4608
        %4736 = vmatpush1.bf16.msra.mxu0 %v4607
        %4737 = vmatprep.subr.bf16.mxu0 %v4610
        %4738 = vmatpush1.bf16.msra.mxu0 %v4609
        %4739 = vmatprep.subr.bf16.mxu0 %v4612
        %4740 = vmatpush1.bf16.msra.mxu0 %v4611
        %4741 = vmatprep.subr.bf16.mxu0 %v4614
        %4742 = vmatpush1.bf16.msra.mxu0 %v4613
        %4743 = vmatprep.subr.bf16.mxu0 %v4616
        %4744 = vmatpush1.bf16.msra.mxu0 %v4615
        %4745 = vmatprep.subr.bf16.mxu0 %v4618
        %4746 = vmatpush1.bf16.msra.mxu0 %v4617
        %4747 = vmatprep.subr.bf16.mxu0 %v4620
        %4748 = vmatpush1.bf16.msra.mxu0 %v4619
        %4749 = vmatprep.subr.bf16.mxu0 %v4622
        %4750 = vmatpush1.bf16.msra.mxu0 %v4621
        %4751 = vmatprep.subr.bf16.mxu0 %v4624
        %4752 = vmatpush1.bf16.msra.mxu0 %v4623
        %4753 = vmatprep.mubr.bf16.mxu0 %v4321
        %4754 = vmatmul.mubr.bf16.gmra.mrb[0].mxu0 %v4320
        %v4755 = vpop.f32.mrb[0].mxu0
        %v4756 = vadd.f32 %v4394, %v4755
        %v4757 = vpop.f32.mrb[0].mxu0
        %v4758 = vadd.f32 %v4398, %v4757
        %v4759 = vpop.f32.mrb[0].mxu0
        %v4760 = vpop.f32.mrb[0].mxu0
        %4761 = vdwg.mxu0
        %4762 = vmatprep.subr.bf16.mxu0 %v4626
        %4763 = vmatpush1.bf16.msra.mxu0 %v4625
        %4764 = vmatprep.subr.bf16.mxu0 %v4628
        %4765 = vmatpush1.bf16.msra.mxu0 %v4627
        %4766 = vmatprep.subr.bf16.mxu0 %v4630
        %4767 = vmatpush1.bf16.msra.mxu0 %v4629
        %4768 = vmatprep.subr.bf16.mxu0 %v4632
        %4769 = vmatpush1.bf16.msra.mxu0 %v4631
        %4770 = vmatprep.subr.bf16.mxu0 %v4634
        %4771 = vmatpush1.bf16.msra.mxu0 %v4633
        %4772 = vmatprep.subr.bf16.mxu0 %v4636
        %4773 = vmatpush1.bf16.msra.mxu0 %v4635
        %4774 = vmatprep.subr.bf16.mxu0 %v4638
        %4775 = vmatpush1.bf16.msra.mxu0 %v4637
        %4776 = vmatprep.subr.bf16.mxu0 %v4640
        %4777 = vmatpush1.bf16.msra.mxu0 %v4639
        %4778 = vmatprep.subr.bf16.mxu0 %v4642
        %4779 = vmatpush1.bf16.msra.mxu0 %v4641
        %4780 = vmatprep.subr.bf16.mxu0 %v4644
        %4781 = vmatpush1.bf16.msra.mxu0 %v4643
        %4782 = vmatprep.subr.bf16.mxu0 %v4646
        %4783 = vmatpush1.bf16.msra.mxu0 %v4645
        %4784 = vmatprep.subr.bf16.mxu0 %v4648
        %4785 = vmatpush1.bf16.msra.mxu0 %v4647
        %4786 = vmatprep.subr.bf16.mxu0 %v4650
        %4787 = vmatpush1.bf16.msra.mxu0 %v4649
        %4788 = vmatprep.subr.bf16.mxu0 %v4652
        %4789 = vmatpush1.bf16.msra.mxu0 %v4651
        %4790 = vmatprep.subr.bf16.mxu0 %v4654
        %4791 = vmatpush1.bf16.msra.mxu0 %v4653
        %4792 = vmatprep.subr.bf16.mxu0 %v4656
        %4793 = vmatpush1.bf16.msra.mxu0 %v4655
        %4794 = vmatprep.mubr.bf16.mxu0 %v4323
        %4795 = vmatmul.mubr.bf16.gmra.mrb[0].mxu0 %v4322
        %v4796 = vpop.f32.mrb[0].mxu0
        %v4797 = vadd.f32 %v4756, %v4796
        %v4798 = vpop.f32.mrb[0].mxu0
        %v4799 = vadd.f32 %v4758, %v4798
        %v4800 = vpop.f32.mrb[0].mxu0
        %v4801 = vpop.f32.mrb[0].mxu0
        %4802 = vdwg.mxu0
        %v4803 = vadd.f32 %v3824, %v4797
        %v4804 = vadd.f32 %v3825, %v4799
        %v4805 = vadd.f32 %v4803, %v4804
        %4806 = vadd.xlane.f32.xlu0 %v4805
        %v4807 = vpop.xlane.xlu0 %4806
        %v4808 = vmul.f32 %v4807, %v3783
        %v4809 = vsub.f32 %v4803, %v4808
        %v4810 = vsub.f32 %v4804, %v4808
        %v4811 = vmul.f32 %v4809, %v4809
        %v4812 = vmul.f32 %v4810, %v4810
        %v4813 = vadd.f32 %v4811, %v4812
        %4814 = vadd.xlane.f32.xlu0 %v4813
        %v4815 = vpop.xlane.xlu0 %4814
        %v4816 = vmul.f32 %v4815, %v3783
        %v4817 = vadd.f32 %v4816, 1e-05
        %v4818 = vrsqrt.pop %v4817
        %v4819 = vmul.f32 %v4809, %v4818
        %v4820 = vmul.f32 %v4810, %v4818
        %s4821 = scalar_lea.vmem %s9, 3
        %v4822 = vld [vmem:[%s4821] ss:$8 sm:$0x3]
        %v4824 = vlaneseq
        %v4825 = vshrl.u32 %v4824, 7
        %v4826 = vsub.s32 0, %v4825
        %v4827 = vrot.slane %v4822, %v4826
        %v4828 = vlaneseq
        %v4829 = vshrl.u32 %v4828, 7
        %v4830 = vsub.s32 1, %v4829
        %v4831 = vrot.slane %v4822, %v4830
        %v4834 = vmul.f32 %v4819, %v4827
        %v4835 = vmul.f32 %v4820, %v4831
        %s4836 = scalar_lea.vmem %s9, 4
        %v4837 = vld [vmem:[%s4836] ss:$8 sm:$0x3]
        %v4839 = vlaneseq
        %v4840 = vshrl.u32 %v4839, 7
        %v4841 = vsub.s32 0, %v4840
        %v4842 = vrot.slane %v4837, %v4841
        %v4843 = vlaneseq
        %v4844 = vshrl.u32 %v4843, 7
        %v4845 = vsub.s32 1, %v4844
        %v4846 = vrot.slane %v4837, %v4845
        %v4849 = vadd.f32 %v4834, %v4842
        %v4850 = vadd.f32 %v4835, %v4846
        %4851 = vst [vmem:[%s530] sm:$0xff] %v4849
        %4852 = vst [vmem:[%s530 + $0x8] sm:$0xff] %v4850
        %s4853 = sand.u32 %s266, 1
        %s4854 = scalar_lea.sflag [#allocation5], %s4853
        %s4855 = sand.u32 %s266, 1
        %s4856 = smul.addr %s4855, 16
        %s4857 = scalar_lea.vmem [#allocation17], %s4856
        %s4858 = sand.u32 %s292, 1
        %s4859 = scalar_lea.sflag [#allocation19], %s4858
        %s4860 = sand.u32 %s292, 1
        %s4861 = smul.addr %s4860, 64
        %s4862 = scalar_lea.vmem [#allocation18], %s4861
        // Predicated region
        $region93: #{tpu_custom_call.1} parent=59 // pred_check
          %p4863 = pneg %p276
        $region94: #{tpu_custom_call.1} parent=59 // pred_check_branch
          %4865 = sbr.rel (%p4863) target = $region96
        $region95: #{tpu_custom_call.1} parent=59 // pred_region
          %s4867 = ssub.s32 256, 256
          %4868 = vsyncadd %s4854, %s4867
          %s4869 = smul.addr %s38, 2
          %s4870 = smul.addr %s4869, 128
          %s4871 = scalar_lea.hbm %s10, %s4870
          %s4873 = sshll.u32 %s4857, 4
          %s4874 = int_to_ptr.vmem [resolvable:$true] %s4873
          %4876 = dma.vmem_to_hbm [thread:$0]  %s4874, 256, %s4871, %s4854
        $region96: #{tpu_custom_call.1} parent=59 // pred_fallthru
          _
        // Predicated region
        $region97: #{tpu_custom_call.1} parent=59 // pred_check
          %p4877 = pneg %p302
        $region98: #{tpu_custom_call.1} parent=59 // pred_check_branch
          %4879 = sbr.rel (%p4877) target = $region100
        $region99: #{tpu_custom_call.1} parent=59 // pred_region
          %s4881 = ssub.s32 1024, 1024
          %4882 = vsyncadd %s4859, %s4881
          %s4883 = smul.addr %s38, 8
          %s4884 = smul.addr %s4883, 128
          %s4885 = scalar_lea.hbm %s11, %s4884
          %s4886 = sshll.u32 %s4862, 4
          %s4887 = int_to_ptr.vmem [resolvable:$true] %s4886
          %4892 = dma.vmem_to_hbm [thread:$0]  %s4887, 1024, %s4885, %s4859, 128, 128, 8
        $region100: #{tpu_custom_call.1} parent=59 // pred_fallthru
          _
      $region60: #{tpu_custom_call.1} parent=5 // pred_fallthru
        _
      %p4893 = scmp.le.s32.totalorder 2, %s33
      // Predicated region
      $region101: #{tpu_custom_call.1} parent=5 // pred_check
        %p4894 = pneg %p4893
      $region102: #{tpu_custom_call.1} parent=5 // pred_check_branch
        %4896 = sbr.rel (%p4894) target = $region104
      $region103: #{tpu_custom_call.1} parent=5 // pred_region
        %s4897 = ssub.s32 %s33, 2
        // Predicated region
        $region105: #{tpu_custom_call.1} parent=103 // pred_check
          %p4898 = pneg %p282
        $region106: #{tpu_custom_call.1} parent=103 // pred_check_branch
          %4900 = sbr.rel (%p4898) target = $region108
        $region107: #{tpu_custom_call.1} parent=103 // pred_region
          %s4901 = sand.u32 %s267, 1
          %s4902 = scalar_lea.sflag [#allocation5], %s4901
          %s4903 = sand.u32 %s267, 1
          %s4904 = smul.addr %s4903, 16
          %s4905 = scalar_lea.vmem [#allocation17], %s4904
          %4906 = dma.done %s4902, 256
        $region108: #{tpu_custom_call.1} parent=103 // pred_fallthru
          _
        // Predicated region
        $region109: #{tpu_custom_call.1} parent=103 // pred_check
          %p4907 = pneg %p308
        $region110: #{tpu_custom_call.1} parent=103 // pred_check_branch
          %4909 = sbr.rel (%p4907) target = $region112
        $region111: #{tpu_custom_call.1} parent=103 // pred_region
          %s4910 = sand.u32 %s293, 1
          %s4911 = scalar_lea.sflag [#allocation19], %s4910
          %s4912 = sand.u32 %s293, 1
          %s4913 = smul.addr %s4912, 64
          %s4914 = scalar_lea.vmem [#allocation18], %s4913
          %4915 = dma.done %s4911, 1024
        $region112: #{tpu_custom_call.1} parent=103 // pred_fallthru
          _
      $region104: #{tpu_custom_call.1} parent=5 // pred_fallthru
        _
    $region6: #{tpu_custom_call.1} parent=1 // loop_footer
      %s37 = sadd.s32 1, %s33
    $region7: #{tpu_custom_call.1} parent=1 // loop_footer_branch
      %32 = sbr.rel target = $region3
    $region8: #{tpu_custom_call.1} parent=1 // loop_exit
      _
    %4916 = vsyncpa [#allocation4], 1
    %s4917 = scalar_lea.sflag [#allocation4], 1
    %4918 = vsyncpa %s4917, 1
    %4919 = vsyncpa [#allocation7], 1
    %s4920 = scalar_lea.sflag [#allocation7], 1
    %4921 = vsyncpa %s4920, 1
    %4922 = vsyncpa [#allocation10], 1
    %4923 = vsyncpa [#allocation13], 1
    %4924 = vsyncpa [#allocation16], 1
    %4925 = vsyncpa [#allocation5], 1
    %s4926 = scalar_lea.sflag [#allocation5], 1
    %4927 = vsyncpa %s4926, 1
    %4928 = vsyncpa [#allocation19], 1
    %s4929 = scalar_lea.sflag [#allocation19], 1
    %4930 = vsyncpa %s4929, 1

</llo_original>
